<compile_context>
chip_gen: v7x
topology: tpu7x:2x2x1
jax: 0.10.0
libtpu: 0.0.40
codegen_flags: <defaults>
</compile_context>

<pallas_src>
import jax
import jax.numpy as jnp
from jax import lax
from jax.experimental import pallas as pl
from jax.experimental.pallas import tpu as pltpu

BN_EPS = 1e-5


# ----------------------------------------------------------------------------
# Fused ConvBlock kernel (one image per grid step, stride=1).
# ----------------------------------------------------------------------------
def _make_conv_block_kernel(H, W, Cin, D, has_shortcut_conv):
    def kernel(*refs):
        if has_shortcut_conv:
            (x_ref, w1_ref, b1_ref, w2_ref, b2_ref, ws_ref, bs_ref,
             o_ref, xp1_ref, xp2_ref) = refs
        else:
            (x_ref, w1_ref, b1_ref, w2_ref, b2_ref,
             o_ref, xp1_ref, xp2_ref) = refs

        x = x_ref[0]                                        # (H, W, Cin) f32

        def conv3x3(xp_ref, w_ref, cin):
            # xp_ref: zero-padded (H+2, W+2, cin) f32 VMEM scratch (pre-filled).
            # w_ref : (9*cin, D) bf16, tap-major (dy*3+dx), BN scale folded in.
            xp = xp_ref[...]
            patches = jnp.concatenate(
                [xp[dy:dy + H, dx:dx + W, :]
                 for dy in range(3) for dx in range(3)], axis=-1)   # (H, W, 9*cin)
            cols = patches.reshape(H * W, 9 * cin).astype(jnp.bfloat16)
            return jnp.dot(cols, w_ref[...],
                           preferred_element_type=jnp.float32)      # (H*W, D) f32

        # ---- conv1 (3x3, pad=1) + folded-BN bias + ReLU --------------------
        xp1_ref[...] = jnp.zeros_like(xp1_ref)              # zero the halo once
        xp1_ref[1:H + 1, 1:W + 1, :] = x                    # interior copy (VMEM)
        h = jnp.maximum(conv3x3(xp1_ref, w1_ref, Cin) + b1_ref[...], 0.0)

        # ---- conv2 (3x3, pad=1) + folded-BN bias (no activation) -----------
        xp2_ref[...] = jnp.zeros_like(xp2_ref)
        xp2_ref[1:H + 1, 1:W + 1, :] = h.reshape(H, W, D)
        res = conv3x3(xp2_ref, w2_ref, D) + b2_ref[...]

        # ---- shortcut -------------------------------------------------------
        if has_shortcut_conv:
            sc = jnp.dot(x.reshape(H * W, Cin).astype(jnp.bfloat16),
                         ws_ref[...],
                         preferred_element_type=jnp.float32) + bs_ref[...]
        else:
            sc = x.reshape(H * W, Cin)                      # identity (Cin == D)

        o_ref[0] = res + sc                                 # (H*W, D) f32

    return kernel


# ----------------------------------------------------------------------------
# Wrapper: NCHW in / NCHW out, single pallas_call for the whole block.
# ----------------------------------------------------------------------------
def conv_block_forward(params, x_nchw):
    # TODO(synk): stride=2 variant (strided im2col + strided 1x1 shortcut) not
    # implemented; this kernel covers the stride=1 ConvBlock.
    x = jnp.transpose(x_nchw, (0, 2, 3, 1)).astype(jnp.float32)   # NCHW -> NHWC
    N, H, W, Cin = x.shape
    D = params["w1"].shape[-1]
    has_sc = "ws" in params

    # HWIO (3,3,Cin,D) -> im2col (9*Cin, D); BN scale already folded in (bf16).
    w1 = params["w1"].reshape(9 * Cin, D)
    w2 = params["w2"].reshape(9 * D, D)
    b1 = params["b1"].reshape(1, D)
    b2 = params["b2"].reshape(1, D)

    inputs = [x, w1, b1, w2, b2]
    in_specs = [
        pl.BlockSpec((1, H, W, Cin), lambda n: (n, 0, 0, 0)),
        pl.BlockSpec((9 * Cin, D), lambda n: (0, 0)),
        pl.BlockSpec((1, D), lambda n: (0, 0)),
        pl.BlockSpec((9 * D, D), lambda n: (0, 0)),
        pl.BlockSpec((1, D), lambda n: (0, 0)),
    ]
    if has_sc:
        inputs += [params["ws"].reshape(Cin, D), params["bs"].reshape(1, D)]
        in_specs += [pl.BlockSpec((Cin, D), lambda n: (0, 0)),
                     pl.BlockSpec((1, D), lambda n: (0, 0))]

    kernel = _make_conv_block_kernel(H, W, Cin, D, has_sc)
    out = pl.pallas_call(
        kernel,
        out_shape=jax.ShapeDtypeStruct((N, H * W, D), jnp.float32),
        grid=(N,),
        in_specs=in_specs,
        out_specs=pl.BlockSpec((1, H * W, D), lambda n: (n, 0, 0)),
        scratch_shapes=[pltpu.VMEM((H + 2, W + 2, Cin), jnp.float32),
                        pltpu.VMEM((H + 2, W + 2, D), jnp.float32)],
        compiler_params=pltpu.CompilerParams(
            dimension_semantics=("parallel",)),   # batch -> both TCs on v7x
    )(*inputs)

    return jnp.transpose(out.reshape(N, H, W, D), (0, 3, 1, 2))    # NHWC -> NCHW


# ----------------------------------------------------------------------------
# Deterministic parameters (inference-mode BatchNorm folded into the convs).
# ----------------------------------------------------------------------------
def _fold_bn(gamma, beta, mean, var):
    scale = gamma / jnp.sqrt(var + BN_EPS)
    return scale, beta - mean * scale


def _make_conv_bn(key, cin, cout, ksize):
    kw, kg, kb, km, kv = jax.random.split(key, 5)
    # PyTorch Conv2d weight is (Cout, Cin, kh, kw); convert to HWIO.
    w_oihw = 0.1 * jax.random.normal(kw, (cout, cin, ksize, ksize), jnp.float32)
    w_hwio = jnp.transpose(w_oihw, (2, 3, 1, 0))
    gamma = 1.0 + 0.1 * jax.random.normal(kg, (cout,), jnp.float32)
    beta = 0.1 * jax.random.normal(kb, (cout,), jnp.float32)
    mean = 0.1 * jax.random.normal(km, (cout,), jnp.float32)
    var = 1.0 + 0.1 * jax.random.uniform(kv, (cout,), jnp.float32)
    scale, bias = _fold_bn(gamma, beta, mean, var)
    w_folded = (w_hwio * scale).astype(jnp.bfloat16)   # fold BN scale once
    return w_folded, bias.astype(jnp.float32)


def init_conv_block_params(key, in_channel, depth, stride=1):
    assert stride == 1, "only stride=1 implemented"
    k1, k2, k3 = jax.random.split(key, 3)
    w1, b1 = _make_conv_bn(k1, in_channel, depth, 3)
    w2, b2 = _make_conv_bn(k2, depth, depth, 3)
    params = {"w1": w1, "b1": b1, "w2": w2, "b2": b2}
    if in_channel != depth:                     # projection shortcut (1x1 conv + BN)
        ws, bs = _make_conv_bn(k3, in_channel, depth, 1)
        params["ws"], params["bs"] = ws, bs
    return params


# ----------------------------------------------------------------------------
# Pure-JAX reference (lax.conv, same bf16-operand / f32-accumulate numerics).
# ----------------------------------------------------------------------------
def conv_block_reference(params, x_nchw):
    x = jnp.transpose(x_nchw, (0, 2, 3, 1)).astype(jnp.float32)
    xb = x.astype(jnp.bfloat16)

    def conv(inp_bf, w_bf):
        return lax.conv_general_dilated(
            inp_bf, w_bf, (1, 1), "SAME",
            dimension_numbers=("NHWC", "HWIO", "NHWC"),
            preferred_element_type=jnp.float32)

    h = jnp.maximum(conv(xb, params["w1"]) + params["b1"], 0.0)
    res = conv(h.astype(jnp.bfloat16), params["w2"]) + params["b2"]
    if "ws" in params:
        sc = conv(xb, params["ws"]) + params["bs"]
    else:
        sc = x
    return jnp.transpose(res + sc, (0, 3, 1, 2))


if __name__ == "__main__":
    key = jax.random.PRNGKey(0)
    kx1, kx2, kp1, kp2 = jax.random.split(key, 4)

    # Case 1: in_channel != depth -> projection shortcut (1x1 conv + BN).
    N, Cin, H, W, D = 2, 8, 16, 16, 16
    x1 = jax.random.normal(kx1, (N, Cin, H, W), jnp.float32)
    p1 = init_conv_block_params(kp1, Cin, D)
    out1 = jax.block_until_ready(jax.jit(conv_block_forward)(p1, x1))
    ref1 = jax.block_until_ready(jax.jit(conv_block_reference)(p1, x1))
    assert out1.shape == (N, D, H, W), out1.shape
    assert jnp.allclose(out1, ref1, atol=1e-2, rtol=1e-2), \
        float(jnp.max(jnp.abs(out1 - ref1)))

    # Case 2: in_channel == depth (stride=1) -> identity shortcut.
    x2 = jax.random.normal(kx2, (N, D, H, W), jnp.float32)
    p2 = init_conv_block_params(kp2, D, D)
    out2 = jax.block_until_ready(jax.jit(conv_block_forward)(p2, x2))
    ref2 = jax.block_until_ready(jax.jit(conv_block_reference)(p2, x2))
    assert out2.shape == (N, D, H, W), out2.shape
    assert jnp.allclose(out2, ref2, atol=1e-2, rtol=1e-2), \
        float(jnp.max(jnp.abs(out2 - ref2)))

    print("KERNEL_OK")
</pallas_src>

<mosaic_0001>
module attributes {stable_mosaic.version = 11 : i64} {
  func.func @kernel(%arg0: i32, %arg1: memref<1x16x16x8xf32, #tpu.memory_space<vmem>>, %arg2: memref<72x16xbf16, #tpu.memory_space<vmem>>, %arg3: memref<1x16xf32, #tpu.memory_space<vmem>>, %arg4: memref<144x16xbf16, #tpu.memory_space<vmem>>, %arg5: memref<1x16xf32, #tpu.memory_space<vmem>>, %arg6: memref<8x16xbf16, #tpu.memory_space<vmem>>, %arg7: memref<1x16xf32, #tpu.memory_space<vmem>>, %arg8: memref<1x256x16xf32, #tpu.memory_space<vmem>>, %arg9: memref<18x18x8xf32, #tpu.memory_space<vmem>>, %arg10: memref<18x18x16xf32, #tpu.memory_space<vmem>>) attributes {dimension_semantics = [#tpu.dimension_semantics<parallel>], iteration_bounds = array<i64: 2>, scalar_prefetch = 0 : i64, scratch_operands = 2 : i64, tpu.core_type = #tpu.core_type<tc>, window_params = [{transform_indices = @transform_0, window_bounds = array<i64: 1, 16, 16, 8>}, {pipeline_mode = #tpu.pipeline_mode<synchronous>, transform_indices = @transform_1, window_bounds = array<i64: 72, 16>}, {pipeline_mode = #tpu.pipeline_mode<synchronous>, transform_indices = @transform_2, window_bounds = array<i64: 1, 16>}, {pipeline_mode = #tpu.pipeline_mode<synchronous>, transform_indices = @transform_3, window_bounds = array<i64: 144, 16>}, {pipeline_mode = #tpu.pipeline_mode<synchronous>, transform_indices = @transform_4, window_bounds = array<i64: 1, 16>}, {pipeline_mode = #tpu.pipeline_mode<synchronous>, transform_indices = @transform_5, window_bounds = array<i64: 8, 16>}, {pipeline_mode = #tpu.pipeline_mode<synchronous>, transform_indices = @transform_6, window_bounds = array<i64: 1, 16>}, {transform_indices = @transform_7, window_bounds = array<i64: 1, 256, 16>}]} {
    %c0 = arith.constant 0 : index
    %c0_0 = arith.constant 0 : index
    %c0_1 = arith.constant 0 : index
    %c0_2 = arith.constant 0 : index
    %0 = vector.load %arg1[%c0, %c0_0, %c0_1, %c0_2] : memref<1x16x16x8xf32, #tpu.memory_space<vmem>>, vector<1x16x16x8xf32>
    %1 = vector.shape_cast %0 : vector<1x16x16x8xf32> to vector<16x16x8xf32>
    %cst = arith.constant 0.000000e+00 : f32
    %2 = vector.broadcast %cst : f32 to vector<18x18x8xf32>
    %c0_3 = arith.constant 0 : index
    %c0_4 = arith.constant 0 : index
    %c0_5 = arith.constant 0 : index
    %3 = vector.load %arg9[%c0_3, %c0_4, %c0_5] : memref<18x18x8xf32, #tpu.memory_space<vmem>>, vector<18x18x8xf32>
    tpu.vector_store %arg9[%c0_3, %c0_4, %c0_5], %2 {strides = array<i32>} : memref<18x18x8xf32, #tpu.memory_space<vmem>>, vector<18x18x8xf32>,
    %c1 = arith.constant 1 : index
    %c1_6 = arith.constant 1 : index
    %c0_7 = arith.constant 0 : index
    %4 = vector.load %arg9[%c1, %c1_6, %c0_7] : memref<18x18x8xf32, #tpu.memory_space<vmem>>, vector<16x16x8xf32>
    tpu.vector_store %arg9[%c1, %c1_6, %c0_7], %1 {strides = array<i32>} : memref<18x18x8xf32, #tpu.memory_space<vmem>>, vector<16x16x8xf32>,
    %c0_8 = arith.constant 0 : index
    %c0_9 = arith.constant 0 : index
    %c0_10 = arith.constant 0 : index
    %5 = vector.load %arg9[%c0_8, %c0_9, %c0_10] : memref<18x18x8xf32, #tpu.memory_space<vmem>>, vector<18x18x8xf32>
    %6 = vector.extract_strided_slice %5 {offsets = [0, 0, 0], sizes = [16, 16, 8], strides = [1, 1, 1]} : vector<18x18x8xf32> to vector<16x16x8xf32>
    %7 = vector.extract_strided_slice %5 {offsets = [0, 1, 0], sizes = [16, 16, 8], strides = [1, 1, 1]} : vector<18x18x8xf32> to vector<16x16x8xf32>
    %8 = vector.extract_strided_slice %5 {offsets = [0, 2, 0], sizes = [16, 16, 8], strides = [1, 1, 1]} : vector<18x18x8xf32> to vector<16x16x8xf32>
    %9 = vector.extract_strided_slice %5 {offsets = [1, 0, 0], sizes = [16, 16, 8], strides = [1, 1, 1]} : vector<18x18x8xf32> to vector<16x16x8xf32>
    %10 = vector.extract_strided_slice %5 {offsets = [1, 1, 0], sizes = [16, 16, 8], strides = [1, 1, 1]} : vector<18x18x8xf32> to vector<16x16x8xf32>
    %11 = vector.extract_strided_slice %5 {offsets = [1, 2, 0], sizes = [16, 16, 8], strides = [1, 1, 1]} : vector<18x18x8xf32> to vector<16x16x8xf32>
    %12 = vector.extract_strided_slice %5 {offsets = [2, 0, 0], sizes = [16, 16, 8], strides = [1, 1, 1]} : vector<18x18x8xf32> to vector<16x16x8xf32>
    %13 = vector.extract_strided_slice %5 {offsets = [2, 1, 0], sizes = [16, 16, 8], strides = [1, 1, 1]} : vector<18x18x8xf32> to vector<16x16x8xf32>
    %14 = vector.extract_strided_slice %5 {offsets = [2, 2, 0], sizes = [16, 16, 8], strides = [1, 1, 1]} : vector<18x18x8xf32> to vector<16x16x8xf32>
    %15 = tpu.concatenate %6, %7, %8, %9, %10, %11, %12, %13, %14 in 2 : vector<16x16x8xf32>, vector<16x16x8xf32>, vector<16x16x8xf32>, vector<16x16x8xf32>, vector<16x16x8xf32>, vector<16x16x8xf32>, vector<16x16x8xf32>, vector<16x16x8xf32>, vector<16x16x8xf32> -> vector<16x16x72xf32>
    %16 = vector.shape_cast %15 : vector<16x16x72xf32> to vector<256x72xf32>
    %17 = arith.truncf %16 : vector<256x72xf32> to vector<256x72xbf16>
    %c0_11 = arith.constant 0 : index
    %c0_12 = arith.constant 0 : index
    %18 = vector.load %arg2[%c0_11, %c0_12] : memref<72x16xbf16, #tpu.memory_space<vmem>>, vector<72x16xbf16>
    %cst_13 = arith.constant dense<0.000000e+00> : vector<256x16xf32>
    %19 = tpu.matmul %17, %18, %cst_13 {dimension_numbers = #tpu.dot_dimension_numbers<[1], [0], [0], [1], [0, 0, 1, 1], [], []>} : vector<256x72xbf16>, vector<72x16xbf16>, vector<256x16xf32> -> vector<256x16xf32>
    %c0_14 = arith.constant 0 : index
    %c0_15 = arith.constant 0 : index
    %20 = vector.load %arg3[%c0_14, %c0_15] : memref<1x16xf32, #tpu.memory_space<vmem>>, vector<1x16xf32>
    %21 = vector.broadcast %20 : vector<1x16xf32> to vector<256x16xf32>
    %22 = arith.addf %19, %21 : vector<256x16xf32>
    %cst_16 = arith.constant 0.000000e+00 : f32
    %23 = vector.broadcast %cst_16 : f32 to vector<256x16xf32>
    %24 = arith.maximumf %22, %23 : vector<256x16xf32>
    %cst_17 = arith.constant 0.000000e+00 : f32
    %25 = vector.broadcast %cst_17 : f32 to vector<18x18x16xf32>
    %c0_18 = arith.constant 0 : index
    %c0_19 = arith.constant 0 : index
    %c0_20 = arith.constant 0 : index
    %26 = vector.load %arg10[%c0_18, %c0_19, %c0_20] : memref<18x18x16xf32, #tpu.memory_space<vmem>>, vector<18x18x16xf32>
    tpu.vector_store %arg10[%c0_18, %c0_19, %c0_20], %25 {strides = array<i32>} : memref<18x18x16xf32, #tpu.memory_space<vmem>>, vector<18x18x16xf32>,
    %27 = vector.shape_cast %24 : vector<256x16xf32> to vector<16x16x16xf32>
    %c1_21 = arith.constant 1 : index
    %c1_22 = arith.constant 1 : index
    %c0_23 = arith.constant 0 : index
    %28 = vector.load %arg10[%c1_21, %c1_22, %c0_23] : memref<18x18x16xf32, #tpu.memory_space<vmem>>, vector<16x16x16xf32>
    tpu.vector_store %arg10[%c1_21, %c1_22, %c0_23], %27 {strides = array<i32>} : memref<18x18x16xf32, #tpu.memory_space<vmem>>, vector<16x16x16xf32>,
    %c0_24 = arith.constant 0 : index
    %c0_25 = arith.constant 0 : index
    %c0_26 = arith.constant 0 : index
    %29 = vector.load %arg10[%c0_24, %c0_25, %c0_26] : memref<18x18x16xf32, #tpu.memory_space<vmem>>, vector<18x18x16xf32>
    %30 = vector.extract_strided_slice %29 {offsets = [0, 0, 0], sizes = [16, 16, 16], strides = [1, 1, 1]} : vector<18x18x16xf32> to vector<16x16x16xf32>
    %31 = vector.extract_strided_slice %29 {offsets = [0, 1, 0], sizes = [16, 16, 16], strides = [1, 1, 1]} : vector<18x18x16xf32> to vector<16x16x16xf32>
    %32 = vector.extract_strided_slice %29 {offsets = [0, 2, 0], sizes = [16, 16, 16], strides = [1, 1, 1]} : vector<18x18x16xf32> to vector<16x16x16xf32>
    %33 = vector.extract_strided_slice %29 {offsets = [1, 0, 0], sizes = [16, 16, 16], strides = [1, 1, 1]} : vector<18x18x16xf32> to vector<16x16x16xf32>
    %34 = vector.extract_strided_slice %29 {offsets = [1, 1, 0], sizes = [16, 16, 16], strides = [1, 1, 1]} : vector<18x18x16xf32> to vector<16x16x16xf32>
    %35 = vector.extract_strided_slice %29 {offsets = [1, 2, 0], sizes = [16, 16, 16], strides = [1, 1, 1]} : vector<18x18x16xf32> to vector<16x16x16xf32>
    %36 = vector.extract_strided_slice %29 {offsets = [2, 0, 0], sizes = [16, 16, 16], strides = [1, 1, 1]} : vector<18x18x16xf32> to vector<16x16x16xf32>
    %37 = vector.extract_strided_slice %29 {offsets = [2, 1, 0], sizes = [16, 16, 16], strides = [1, 1, 1]} : vector<18x18x16xf32> to vector<16x16x16xf32>
    %38 = vector.extract_strided_slice %29 {offsets = [2, 2, 0], sizes = [16, 16, 16], strides = [1, 1, 1]} : vector<18x18x16xf32> to vector<16x16x16xf32>
    %39 = tpu.concatenate %30, %31, %32, %33, %34, %35, %36, %37, %38 in 2 : vector<16x16x16xf32>, vector<16x16x16xf32>, vector<16x16x16xf32>, vector<16x16x16xf32>, vector<16x16x16xf32>, vector<16x16x16xf32>, vector<16x16x16xf32>, vector<16x16x16xf32>, vector<16x16x16xf32> -> vector<16x16x144xf32>
    %40 = vector.shape_cast %39 : vector<16x16x144xf32> to vector<256x144xf32>
    %41 = arith.truncf %40 : vector<256x144xf32> to vector<256x144xbf16>
    %c0_27 = arith.constant 0 : index
    %c0_28 = arith.constant 0 : index
    %42 = vector.load %arg4[%c0_27, %c0_28] : memref<144x16xbf16, #tpu.memory_space<vmem>>, vector<144x16xbf16>
    %cst_29 = arith.constant dense<0.000000e+00> : vector<256x16xf32>
    %43 = tpu.matmul %41, %42, %cst_29 {dimension_numbers = #tpu.dot_dimension_numbers<[1], [0], [0], [1], [0, 0, 1, 1], [], []>} : vector<256x144xbf16>, vector<144x16xbf16>, vector<256x16xf32> -> vector<256x16xf32>
    %c0_30 = arith.constant 0 : index
    %c0_31 = arith.constant 0 : index
    %44 = vector.load %arg5[%c0_30, %c0_31] : memref<1x16xf32, #tpu.memory_space<vmem>>, vector<1x16xf32>
    %45 = vector.broadcast %44 : vector<1x16xf32> to vector<256x16xf32>
    %46 = arith.addf %43, %45 : vector<256x16xf32>
    %47 = vector.shape_cast %1 : vector<16x16x8xf32> to vector<256x8xf32>
    %48 = arith.truncf %47 : vector<256x8xf32> to vector<256x8xbf16>
    %c0_32 = arith.constant 0 : index
    %c0_33 = arith.constant 0 : index
    %49 = vector.load %arg6[%c0_32, %c0_33] : memref<8x16xbf16, #tpu.memory_space<vmem>>, vector<8x16xbf16>
    %cst_34 = arith.constant dense<0.000000e+00> : vector<256x16xf32>
    %50 = tpu.matmul %48, %49, %cst_34 {dimension_numbers = #tpu.dot_dimension_numbers<[1], [0], [0], [1], [0, 0, 1, 1], [], []>} : vector<256x8xbf16>, vector<8x16xbf16>, vector<256x16xf32> -> vector<256x16xf32>
    %c0_35 = arith.constant 0 : index
    %c0_36 = arith.constant 0 : index
    %51 = vector.load %arg7[%c0_35, %c0_36] : memref<1x16xf32, #tpu.memory_space<vmem>>, vector<1x16xf32>
    %52 = vector.broadcast %51 : vector<1x16xf32> to vector<256x16xf32>
    %53 = arith.addf %50, %52 : vector<256x16xf32>
    %54 = arith.addf %46, %53 : vector<256x16xf32>
    %c0_37 = arith.constant 0 : index
    %c0_38 = arith.constant 0 : index
    %c0_39 = arith.constant 0 : index
    %55 = vector.load %arg8[%c0_37, %c0_38, %c0_39] : memref<1x256x16xf32, #tpu.memory_space<vmem>>, vector<1x256x16xf32>
    %56 = vector.shape_cast %55 : vector<1x256x16xf32> to vector<256x16xf32>
    %57 = vector.shape_cast %54 : vector<256x16xf32> to vector<1x256x16xf32>
    tpu.vector_store %arg8[%c0_37, %c0_38, %c0_39], %57 {strides = array<i32>} : memref<1x256x16xf32, #tpu.memory_space<vmem>>, vector<1x256x16xf32>,
    return
  }
  func.func @transform_0(%arg0: i32) -> (i32, i32, i32, i32) {
    %c0_i32 = arith.constant 0 : i32
    %c0_i32_0 = arith.constant 0 : i32
    %c0_i32_1 = arith.constant 0 : i32
    %c0_i32_2 = arith.constant 0 : i32
    return %arg0, %c0_i32, %c0_i32_0, %c0_i32_1 : i32, i32, i32, i32
  }
  func.func @transform_1(%arg0: i32) -> (i32, i32) {
    %c0_i32 = arith.constant 0 : i32
    %c0_i32_0 = arith.constant 0 : i32
    %c0_i32_1 = arith.constant 0 : i32
    return %c0_i32, %c0_i32_0 : i32, i32
  }
  func.func @transform_2(%arg0: i32) -> (i32, i32) {
    %c0_i32 = arith.constant 0 : i32
    %c0_i32_0 = arith.constant 0 : i32
    %c0_i32_1 = arith.constant 0 : i32
    return %c0_i32, %c0_i32_0 : i32, i32
  }
  func.func @transform_3(%arg0: i32) -> (i32, i32) {
    %c0_i32 = arith.constant 0 : i32
    %c0_i32_0 = arith.constant 0 : i32
    %c0_i32_1 = arith.constant 0 : i32
    return %c0_i32, %c0_i32_0 : i32, i32
  }
  func.func @transform_4(%arg0: i32) -> (i32, i32) {
    %c0_i32 = arith.constant 0 : i32
    %c0_i32_0 = arith.constant 0 : i32
    %c0_i32_1 = arith.constant 0 : i32
    return %c0_i32, %c0_i32_0 : i32, i32
  }
  func.func @transform_5(%arg0: i32) -> (i32, i32) {
    %c0_i32 = arith.constant 0 : i32
    %c0_i32_0 = arith.constant 0 : i32
    %c0_i32_1 = arith.constant 0 : i32
    return %c0_i32, %c0_i32_0 : i32, i32
  }
  func.func @transform_6(%arg0: i32) -> (i32, i32) {
    %c0_i32 = arith.constant 0 : i32
    %c0_i32_0 = arith.constant 0 : i32
    %c0_i32_1 = arith.constant 0 : i32
    return %c0_i32, %c0_i32_0 : i32, i32
  }
  func.func @transform_7(%arg0: i32) -> (i32, i32, i32) {
    %c0_i32 = arith.constant 0 : i32
    %c0_i32_0 = arith.constant 0 : i32
    %c0_i32_1 = arith.constant 0 : i32
    return %arg0, %c0_i32, %c0_i32_0 : i32, i32, i32
  }
}

</mosaic_0001>

<llo_original>
// kernel: conv_block_forward.1
$region0: #{conv_block_forward.1}
  #allocation0 [shape = 'u32[]', space=smem, size = 0x4, offset = 0x4, fixed_abs, tag = 'smem constant byte address 0x4 - core index']
  #allocation1 [shape = 'u32[144,128]{1,0:T(1,128)}', space=vmem, size = 0x12000, scoped, tag = 'internal scratch']
  #allocation2 [shape = 'f32[18,18,8]{2,1,0:T(8,128)}', space=vmem, size = 0x36000, scoped, tag = 'scratch operand']
  #allocation3 [shape = 'f32[18,18,16]{2,1,0:T(8,128)}', space=vmem, size = 0x36000, scoped, tag = 'scratch operand']
  %s0 = inlined_call_operand.vmem [shape: f32[2,16,16,8], index: 0, kind: input, shape index: {}]
  %s1 = inlined_call_operand.vmem [shape: bf16[72,16], index: 1, kind: input, shape index: {}]
  %s2 = inlined_call_operand.vmem [shape: f32[1,16], index: 2, kind: input, shape index: {}]
  %s3 = inlined_call_operand.vmem [shape: bf16[144,16], index: 3, kind: input, shape index: {}]
  %s4 = inlined_call_operand.vmem [shape: f32[1,16], index: 4, kind: input, shape index: {}]
  %s5 = inlined_call_operand.vmem [shape: bf16[8,16], index: 5, kind: input, shape index: {}]
  %s6 = inlined_call_operand.vmem [shape: f32[1,16], index: 6, kind: input, shape index: {}]
  %s7 = inlined_call_operand.vmem [shape: f32[2,256,16], index: 7, kind: output, shape index: {}]
  %s8 = sld [smem:[#allocation0]]
  $region61: #{conv_block_forward.1} parent=0
    _
  %s10 = ssub.s32 1, %s8
  %s11 = scalar_select 0, %s10, %s8
  loop: start=0, step=1, limit=4
  $region2: #{conv_block_forward.1} parent=0 // loop_pre_header
    _
  $region3: #{conv_block_forward.1} parent=0 // loop_header
    %s13 = sphi 0, %s17
    %p14 = scmp.ge.s32.totalorder %s13, 4
    %s23 = sphi 0, %s25
    %s26 = sphi 0, %s23
    %s27 = sphi 0, %s26
    %s43 = sphi 0, %s27
    %s47 = sphi 0, %s47
    %s49 = sphi 0, %s47
    %s50 = sphi 0, %s49
    %s64 = sphi 0, %s50
    %s68 = sphi 0, %s68
    %s70 = sphi 0, %s68
    %s71 = sphi 0, %s70
    %s85 = sphi 0, %s71
    %s89 = sphi 0, %s89
    %s91 = sphi 0, %s89
    %s92 = sphi 0, %s91
    %s106 = sphi 0, %s92
    %s110 = sphi 0, %s110
    %s112 = sphi 0, %s110
    %s113 = sphi 0, %s112
    %s127 = sphi 0, %s113
    %s131 = sphi 0, %s131
    %s133 = sphi 0, %s131
    %s134 = sphi 0, %s133
    %s148 = sphi 0, %s134
    %s152 = sphi 0, %s152
    %s154 = sphi 0, %s152
    %s155 = sphi 0, %s154
    %s169 = sphi 0, %s155
    %s175 = sphi 0, %s177
    %s178 = sphi 0, %s175
    %s179 = sphi 0, %s178
    %s195 = sphi 0, %s179
  $region4: #{conv_block_forward.1} parent=0 // loop_header_branch
    %16 = sbr.rel (%p14) target = $region8
  $region5: #{conv_block_forward.1} parent=0 // loop_body
    %s18 = ssub.s32 %s13, 1
    %s19 = ssub.s32 %s13, 2
    %s20 = sadd.s32 %s13, 1
    %s21 = ssub.s32 %s13, %s20
    %p22 = scmp.eq.s32.totalorder %s21, 0
    %s24 = sadd.s32 %s23, 1
    %s25 = scalar_select %p22, %s23, %s24
    %p28 = pneg %p22
    %p29 = scmp.eq.s32.totalorder %s13, 1
    %p30 = por %p28, %p29
    %p31 = scmp.ne.s32.totalorder %s23, %s26
    %p32 = scmp.eq.s32.totalorder %s13, 0
    %p33 = por %p31, %p32
    %p34 = scmp.ne.s32.totalorder %s23, %s26
    %p35 = scmp.eq.s32.totalorder %s18, 1
    %p36 = por %p34, %p35
    %p37 = scmp.ne.s32.totalorder %s26, %s27
    %p38 = scmp.eq.s32.totalorder %s18, 0
    %p39 = por %p37, %p38
    %p40 = scmp.ne.s32.totalorder %s26, %s27
    %p41 = scmp.eq.s32.totalorder %s19, 1
    %p42 = por %p40, %p41
    %p44 = scmp.ne.s32.totalorder %s27, %s43
    %p45 = scmp.eq.s32.totalorder %s19, 0
    %p46 = por %p44, %p45
    %s48 = sadd.s32 %s47, 1
    %p51 = scmp.eq.s32.totalorder %s13, 1
    %p52 = scmp.ne.s32.totalorder %s47, %s49
    %p53 = scmp.eq.s32.totalorder %s13, 0
    %p54 = por %p52, %p53
    %p55 = scmp.ne.s32.totalorder %s47, %s49
    %p56 = scmp.eq.s32.totalorder %s18, 1
    %p57 = por %p55, %p56
    %p58 = scmp.ne.s32.totalorder %s49, %s50
    %p59 = scmp.eq.s32.totalorder %s18, 0
    %p60 = por %p58, %p59
    %p61 = scmp.ne.s32.totalorder %s49, %s50
    %p62 = scmp.eq.s32.totalorder %s19, 1
    %p63 = por %p61, %p62
    %p65 = scmp.ne.s32.totalorder %s50, %s64
    %p66 = scmp.eq.s32.totalorder %s19, 0
    %p67 = por %p65, %p66
    %s69 = sadd.s32 %s68, 1
    %p72 = scmp.eq.s32.totalorder %s13, 1
    %p73 = scmp.ne.s32.totalorder %s68, %s70
    %p74 = scmp.eq.s32.totalorder %s13, 0
    %p75 = por %p73, %p74
    %p76 = scmp.ne.s32.totalorder %s68, %s70
    %p77 = scmp.eq.s32.totalorder %s18, 1
    %p78 = por %p76, %p77
    %p79 = scmp.ne.s32.totalorder %s70, %s71
    %p80 = scmp.eq.s32.totalorder %s18, 0
    %p81 = por %p79, %p80
    %p82 = scmp.ne.s32.totalorder %s70, %s71
    %p83 = scmp.eq.s32.totalorder %s19, 1
    %p84 = por %p82, %p83
    %p86 = scmp.ne.s32.totalorder %s71, %s85
    %p87 = scmp.eq.s32.totalorder %s19, 0
    %p88 = por %p86, %p87
    %s90 = sadd.s32 %s89, 1
    %p93 = scmp.eq.s32.totalorder %s13, 1
    %p94 = scmp.ne.s32.totalorder %s89, %s91
    %p95 = scmp.eq.s32.totalorder %s13, 0
    %p96 = por %p94, %p95
    %p97 = scmp.ne.s32.totalorder %s89, %s91
    %p98 = scmp.eq.s32.totalorder %s18, 1
    %p99 = por %p97, %p98
    %p100 = scmp.ne.s32.totalorder %s91, %s92
    %p101 = scmp.eq.s32.totalorder %s18, 0
    %p102 = por %p100, %p101
    %p103 = scmp.ne.s32.totalorder %s91, %s92
    %p104 = scmp.eq.s32.totalorder %s19, 1
    %p105 = por %p103, %p104
    %p107 = scmp.ne.s32.totalorder %s92, %s106
    %p108 = scmp.eq.s32.totalorder %s19, 0
    %p109 = por %p107, %p108
    %s111 = sadd.s32 %s110, 1
    %p114 = scmp.eq.s32.totalorder %s13, 1
    %p115 = scmp.ne.s32.totalorder %s110, %s112
    %p116 = scmp.eq.s32.totalorder %s13, 0
    %p117 = por %p115, %p116
    %p118 = scmp.ne.s32.totalorder %s110, %s112
    %p119 = scmp.eq.s32.totalorder %s18, 1
    %p120 = por %p118, %p119
    %p121 = scmp.ne.s32.totalorder %s112, %s113
    %p122 = scmp.eq.s32.totalorder %s18, 0
    %p123 = por %p121, %p122
    %p124 = scmp.ne.s32.totalorder %s112, %s113
    %p125 = scmp.eq.s32.totalorder %s19, 1
    %p126 = por %p124, %p125
    %p128 = scmp.ne.s32.totalorder %s113, %s127
    %p129 = scmp.eq.s32.totalorder %s19, 0
    %p130 = por %p128, %p129
    %s132 = sadd.s32 %s131, 1
    %p135 = scmp.eq.s32.totalorder %s13, 1
    %p136 = scmp.ne.s32.totalorder %s131, %s133
    %p137 = scmp.eq.s32.totalorder %s13, 0
    %p138 = por %p136, %p137
    %p139 = scmp.ne.s32.totalorder %s131, %s133
    %p140 = scmp.eq.s32.totalorder %s18, 1
    %p141 = por %p139, %p140
    %p142 = scmp.ne.s32.totalorder %s133, %s134
    %p143 = scmp.eq.s32.totalorder %s18, 0
    %p144 = por %p142, %p143
    %p145 = scmp.ne.s32.totalorder %s133, %s134
    %p146 = scmp.eq.s32.totalorder %s19, 1
    %p147 = por %p145, %p146
    %p149 = scmp.ne.s32.totalorder %s134, %s148
    %p150 = scmp.eq.s32.totalorder %s19, 0
    %p151 = por %p149, %p150
    %s153 = sadd.s32 %s152, 1
    %p156 = scmp.eq.s32.totalorder %s13, 1
    %p157 = scmp.ne.s32.totalorder %s152, %s154
    %p158 = scmp.eq.s32.totalorder %s13, 0
    %p159 = por %p157, %p158
    %p160 = scmp.ne.s32.totalorder %s152, %s154
    %p161 = scmp.eq.s32.totalorder %s18, 1
    %p162 = por %p160, %p161
    %p163 = scmp.ne.s32.totalorder %s154, %s155
    %p164 = scmp.eq.s32.totalorder %s18, 0
    %p165 = por %p163, %p164
    %p166 = scmp.ne.s32.totalorder %s154, %s155
    %p167 = scmp.eq.s32.totalorder %s19, 1
    %p168 = por %p166, %p167
    %p170 = scmp.ne.s32.totalorder %s155, %s169
    %p171 = scmp.eq.s32.totalorder %s19, 0
    %p172 = por %p170, %p171
    %s173 = ssub.s32 %s13, %s20
    %p174 = scmp.eq.s32.totalorder %s173, 0
    %s176 = sadd.s32 %s175, 1
    %s177 = scalar_select %p174, %s175, %s176
    %p180 = pneg %p174
    %p181 = scmp.eq.s32.totalorder %s13, 1
    %p182 = por %p180, %p181
    %p183 = scmp.ne.s32.totalorder %s175, %s178
    %p184 = scmp.eq.s32.totalorder %s13, 0
    %p185 = por %p183, %p184
    %p186 = scmp.ne.s32.totalorder %s175, %s178
    %p187 = scmp.eq.s32.totalorder %s18, 1
    %p188 = por %p186, %p187
    %p189 = scmp.ne.s32.totalorder %s178, %s179
    %p190 = scmp.eq.s32.totalorder %s18, 0
    %p191 = por %p189, %p190
    %p192 = scmp.ne.s32.totalorder %s178, %s179
    %p193 = scmp.eq.s32.totalorder %s19, 1
    %p194 = por %p192, %p193
    %p196 = scmp.ne.s32.totalorder %s179, %s195
    %p197 = scmp.eq.s32.totalorder %s19, 0
    %p198 = por %p196, %p197
    %p199 = scmp.le.s32.totalorder 1, %s13
    %p200 = scmp.lt.s32.totalorder %s13, 3
    %p201 = pnand %p199, %p200
    %p202 = pneg %p201
    // Predicated region
    $region9: #{conv_block_forward.1} parent=5 // pred_check
      _
    $region10: #{conv_block_forward.1} parent=5 // pred_check_branch
      %204 = sbr.rel (%p201) target = $region12
    $region11: #{conv_block_forward.1} parent=5 // pred_region
      %s205 = ssub.s32 %s13, 1
      // Predicated region
      $region13: #{conv_block_forward.1} parent=11 // pred_check
        %p206 = pneg %p60
      $region14: #{conv_block_forward.1} parent=11 // pred_check_branch
        %208 = sbr.rel (%p206) target = $region16
      $region15: #{conv_block_forward.1} parent=11 // pred_region
        _
      $region16: #{conv_block_forward.1} parent=11 // pred_fallthru
        _
      // Predicated region
      $region17: #{conv_block_forward.1} parent=11 // pred_check
        %p209 = pneg %p81
      $region18: #{conv_block_forward.1} parent=11 // pred_check_branch
        %211 = sbr.rel (%p209) target = $region20
      $region19: #{conv_block_forward.1} parent=11 // pred_region
        _
      $region20: #{conv_block_forward.1} parent=11 // pred_fallthru
        _
      // Predicated region
      $region21: #{conv_block_forward.1} parent=11 // pred_check
        %p212 = pneg %p102
      $region22: #{conv_block_forward.1} parent=11 // pred_check_branch
        %214 = sbr.rel (%p212) target = $region24
      $region23: #{conv_block_forward.1} parent=11 // pred_region
        _
      $region24: #{conv_block_forward.1} parent=11 // pred_fallthru
        _
      // Predicated region
      $region25: #{conv_block_forward.1} parent=11 // pred_check
        %p215 = pneg %p123
      $region26: #{conv_block_forward.1} parent=11 // pred_check_branch
        %217 = sbr.rel (%p215) target = $region28
      $region27: #{conv_block_forward.1} parent=11 // pred_region
        _
      $region28: #{conv_block_forward.1} parent=11 // pred_fallthru
        _
      // Predicated region
      $region29: #{conv_block_forward.1} parent=11 // pred_check
        %p218 = pneg %p144
      $region30: #{conv_block_forward.1} parent=11 // pred_check_branch
        %220 = sbr.rel (%p218) target = $region32
      $region31: #{conv_block_forward.1} parent=11 // pred_region
        _
      $region32: #{conv_block_forward.1} parent=11 // pred_fallthru
        _
      // Predicated region
      $region33: #{conv_block_forward.1} parent=11 // pred_check
        %p221 = pneg %p165
      $region34: #{conv_block_forward.1} parent=11 // pred_check_branch
        %223 = sbr.rel (%p221) target = $region36
      $region35: #{conv_block_forward.1} parent=11 // pred_region
        _
      $region36: #{conv_block_forward.1} parent=11 // pred_fallthru
        _
    $region12: #{conv_block_forward.1} parent=5 // pred_fallthru
      _
    %p224 = scmp.lt.s32.totalorder %s13, 2
    // Predicated region
    $region37: #{conv_block_forward.1} parent=5 // pred_check
      %p225 = pneg %p224
    $region38: #{conv_block_forward.1} parent=5 // pred_check_branch
      %227 = sbr.rel (%p225) target = $region40
    $region39: #{conv_block_forward.1} parent=5 // pred_region
      // Predicated region
      $region41: #{conv_block_forward.1} parent=39 // pred_check
        %p228 = pneg %p33
      $region42: #{conv_block_forward.1} parent=39 // pred_check_branch
        %230 = sbr.rel (%p228) target = $region44
      $region43: #{conv_block_forward.1} parent=39 // pred_region
        %p231 = scmp.lt.s32.totalorder %s13, 1
        %s232 = scalar_select %p231, %s13, 1
        %s233 = smul.addr %s232, 32
        %s234 = smul.addr %s233, 8
        %s235 = scalar_lea.vmem %s0, %s234
      $region44: #{conv_block_forward.1} parent=39 // pred_fallthru
        _
    $region40: #{conv_block_forward.1} parent=5 // pred_fallthru
      _
    %p236 = scmp.le.s32.totalorder 1, %s13
    %p237 = scmp.lt.s32.totalorder %s13, 3
    %p238 = pnand %p236, %p237
    %p239 = pneg %p238
    // Predicated region
    $region45: #{conv_block_forward.1} parent=5 // pred_check
      _
    $region46: #{conv_block_forward.1} parent=5 // pred_check_branch
      %241 = sbr.rel (%p238) target = $region48
    $region47: #{conv_block_forward.1} parent=5 // pred_region
      %s242 = ssub.s32 %s13, 1
      %p243 = scmp.lt.s32.totalorder %s18, 1
      %s244 = scalar_select %p243, %s18, 1
      %s245 = smul.addr %s244, 32
      %s246 = smul.addr %s245, 8
      %s247 = scalar_lea.vmem %s0, %s246
      %p248 = pneg %p39
      %p249 = pneg %p36
      %p250 = pneg %p60
      %p251 = pneg %p57
      %p252 = pneg %p81
      %p253 = pneg %p78
      %p254 = pneg %p102
      %p255 = pneg %p99
      %p256 = pneg %p123
      %p257 = pneg %p120
      %p258 = pneg %p144
      %p259 = pneg %p141
      %p260 = pneg %p165
      %p261 = pneg %p162
      %p262 = pneg %p191
      %p263 = pneg %p188
      %p264 = scmp.lt.s32.totalorder %s18, 1
      %s265 = scalar_select %p264, %s18, 1
      %s266 = smul.addr %s265, 32
      %s267 = smul.addr %s266, 8
      %s268 = scalar_lea.vmem %s7, %s267
      %p269 = scmp.lt.s32.totalorder %s18, 1
      %s270 = scalar_select %p269, %s18, 1
      %s271 = smul.addr %s270, 32
      %s272 = smul.addr %s271, 8
      %s273 = scalar_lea.vmem %s0, %s272
      %p274 = scmp.lt.s32.totalorder %s18, 1
      %s275 = scalar_select %p274, %s18, 1
      %s276 = smul.addr %s275, 32
      %s277 = smul.addr %s276, 8
      %s278 = scalar_lea.vmem %s7, %s277
      %v280 = vld [vmem:[%s273] sm:$0xff]
      %v281 = vld [vmem:[%s273 + $0x8] sm:$0xff]
      %v282 = vld [vmem:[%s273 + $0x10] sm:$0xff]
      %v283 = vld [vmem:[%s273 + $0x18] sm:$0xff]
      %v284 = vld [vmem:[%s273 + $0x20] sm:$0xff]
      %v285 = vld [vmem:[%s273 + $0x28] sm:$0xff]
      %v286 = vld [vmem:[%s273 + $0x30] sm:$0xff]
      %v287 = vld [vmem:[%s273 + $0x38] sm:$0xff]
      %v288 = vld [vmem:[%s273 + $0x40] sm:$0xff]
      %v289 = vld [vmem:[%s273 + $0x48] sm:$0xff]
      %v290 = vld [vmem:[%s273 + $0x50] sm:$0xff]
      %v291 = vld [vmem:[%s273 + $0x58] sm:$0xff]
      %v292 = vld [vmem:[%s273 + $0x60] sm:$0xff]
      %v293 = vld [vmem:[%s273 + $0x68] sm:$0xff]
      %v294 = vld [vmem:[%s273 + $0x70] sm:$0xff]
      %v295 = vld [vmem:[%s273 + $0x78] sm:$0xff]
      %v296 = vld [vmem:[%s273 + $0x80] sm:$0xff]
      %v297 = vld [vmem:[%s273 + $0x88] sm:$0xff]
      %v298 = vld [vmem:[%s273 + $0x90] sm:$0xff]
      %v299 = vld [vmem:[%s273 + $0x98] sm:$0xff]
      %v300 = vld [vmem:[%s273 + $0xa0] sm:$0xff]
      %v301 = vld [vmem:[%s273 + $0xa8] sm:$0xff]
      %v302 = vld [vmem:[%s273 + $0xb0] sm:$0xff]
      %v303 = vld [vmem:[%s273 + $0xb8] sm:$0xff]
      %v304 = vld [vmem:[%s273 + $0xc0] sm:$0xff]
      %v305 = vld [vmem:[%s273 + $0xc8] sm:$0xff]
      %v306 = vld [vmem:[%s273 + $0xd0] sm:$0xff]
      %v307 = vld [vmem:[%s273 + $0xd8] sm:$0xff]
      %v308 = vld [vmem:[%s273 + $0xe0] sm:$0xff]
      %v309 = vld [vmem:[%s273 + $0xe8] sm:$0xff]
      %v310 = vld [vmem:[%s273 + $0xf0] sm:$0xff]
      %v311 = vld [vmem:[%s273 + $0xf8] sm:$0xff]
      %vm312 = vcmask 64512
      %313 = vst.msk [vmem:[#allocation2] sm:$0xff] %vm312, 0.0
      %314 = vst.msk [vmem:[#allocation2 + $0x8] sm:$0xff] %vm312, 0.0
      %vm315 = vcmask 58368
      %316 = vst.msk [vmem:[#allocation2 + $0x10] sm:$0x3] %vm315, 0.0
      %317 = vst.msk [vmem:[#allocation2 + $0x18] sm:$0xff] %vm312, 0.0
      %318 = vst.msk [vmem:[#allocation2 + $0x20] sm:$0xff] %vm312, 0.0
      %319 = vst.msk [vmem:[#allocation2 + $0x28] sm:$0x3] %vm315, 0.0
      %320 = vst.msk [vmem:[#allocation2 + $0x30] sm:$0xff] %vm312, 0.0
      %321 = vst.msk [vmem:[#allocation2 + $0x38] sm:$0xff] %vm312, 0.0
      %322 = vst.msk [vmem:[#allocation2 + $0x40] sm:$0x3] %vm315, 0.0
      %323 = vst.msk [vmem:[#allocation2 + $0x48] sm:$0xff] %vm312, 0.0
      %324 = vst.msk [vmem:[#allocation2 + $0x50] sm:$0xff] %vm312, 0.0
      %325 = vst.msk [vmem:[#allocation2 + $0x58] sm:$0x3] %vm315, 0.0
      %326 = vst.msk [vmem:[#allocation2 + $0x60] sm:$0xff] %vm312, 0.0
      %327 = vst.msk [vmem:[#allocation2 + $0x68] sm:$0xff] %vm312, 0.0
      %328 = vst.msk [vmem:[#allocation2 + $0x70] sm:$0x3] %vm315, 0.0
      %329 = vst.msk [vmem:[#allocation2 + $0x78] sm:$0xff] %vm312, 0.0
      %330 = vst.msk [vmem:[#allocation2 + $0x80] sm:$0xff] %vm312, 0.0
      %331 = vst.msk [vmem:[#allocation2 + $0x88] sm:$0x3] %vm315, 0.0
      %332 = vst.msk [vmem:[#allocation2 + $0x90] sm:$0xff] %vm312, 0.0
      %333 = vst.msk [vmem:[#allocation2 + $0x98] sm:$0xff] %vm312, 0.0
      %334 = vst.msk [vmem:[#allocation2 + $0xa0] sm:$0x3] %vm315, 0.0
      %335 = vst.msk [vmem:[#allocation2 + $0xa8] sm:$0xff] %vm312, 0.0
      %336 = vst.msk [vmem:[#allocation2 + $0xb0] sm:$0xff] %vm312, 0.0
      %337 = vst.msk [vmem:[#allocation2 + $0xb8] sm:$0x3] %vm315, 0.0
      %338 = vst.msk [vmem:[#allocation2 + $0xc0] sm:$0xff] %vm312, 0.0
      %339 = vst.msk [vmem:[#allocation2 + $0xc8] sm:$0xff] %vm312, 0.0
      %340 = vst.msk [vmem:[#allocation2 + $0xd0] sm:$0x3] %vm315, 0.0
      %341 = vst.msk [vmem:[#allocation2 + $0xd8] sm:$0xff] %vm312, 0.0
      %342 = vst.msk [vmem:[#allocation2 + $0xe0] sm:$0xff] %vm312, 0.0
      %343 = vst.msk [vmem:[#allocation2 + $0xe8] sm:$0x3] %vm315, 0.0
      %344 = vst.msk [vmem:[#allocation2 + $0xf0] sm:$0xff] %vm312, 0.0
      %345 = vst.msk [vmem:[#allocation2 + $0xf8] sm:$0xff] %vm312, 0.0
      %346 = vst.msk [vmem:[#allocation2 + $0x100] sm:$0x3] %vm315, 0.0
      %347 = vst.msk [vmem:[#allocation2 + $0x108] sm:$0xff] %vm312, 0.0
      %348 = vst.msk [vmem:[#allocation2 + $0x110] sm:$0xff] %vm312, 0.0
      %349 = vst.msk [vmem:[#allocation2 + $0x118] sm:$0x3] %vm315, 0.0
      %350 = vst.msk [vmem:[#allocation2 + $0x120] sm:$0xff] %vm312, 0.0
      %351 = vst.msk [vmem:[#allocation2 + $0x128] sm:$0xff] %vm312, 0.0
      %352 = vst.msk [vmem:[#allocation2 + $0x130] sm:$0x3] %vm315, 0.0
      %353 = vst.msk [vmem:[#allocation2 + $0x138] sm:$0xff] %vm312, 0.0
      %354 = vst.msk [vmem:[#allocation2 + $0x140] sm:$0xff] %vm312, 0.0
      %355 = vst.msk [vmem:[#allocation2 + $0x148] sm:$0x3] %vm315, 0.0
      %356 = vst.msk [vmem:[#allocation2 + $0x150] sm:$0xff] %vm312, 0.0
      %357 = vst.msk [vmem:[#allocation2 + $0x158] sm:$0xff] %vm312, 0.0
      %358 = vst.msk [vmem:[#allocation2 + $0x160] sm:$0x3] %vm315, 0.0
      %359 = vst.msk [vmem:[#allocation2 + $0x168] sm:$0xff] %vm312, 0.0
      %360 = vst.msk [vmem:[#allocation2 + $0x170] sm:$0xff] %vm312, 0.0
      %361 = vst.msk [vmem:[#allocation2 + $0x178] sm:$0x3] %vm315, 0.0
      %362 = vst.msk [vmem:[#allocation2 + $0x180] sm:$0xff] %vm312, 0.0
      %363 = vst.msk [vmem:[#allocation2 + $0x188] sm:$0xff] %vm312, 0.0
      %364 = vst.msk [vmem:[#allocation2 + $0x190] sm:$0x3] %vm315, 0.0
      %365 = vst.msk [vmem:[#allocation2 + $0x198] sm:$0xff] %vm312, 0.0
      %366 = vst.msk [vmem:[#allocation2 + $0x1a0] sm:$0xff] %vm312, 0.0
      %367 = vst.msk [vmem:[#allocation2 + $0x1a8] sm:$0x3] %vm315, 0.0
      %s368 = scalar_lea.vmem [#allocation2], 24
      %369 = vst.msk [vmem:[%s368 + $0x1] sm:$0xff] %vm312, %v280
      %370 = vst.msk [vmem:[%s368 + $0x9] sm:$0xff] %vm312, %v281
      %371 = vst.msk [vmem:[%s368 + $0x19] sm:$0xff] %vm312, %v282
      %372 = vst.msk [vmem:[%s368 + $0x21] sm:$0xff] %vm312, %v283
      %373 = vst.msk [vmem:[%s368 + $0x31] sm:$0xff] %vm312, %v284
      %374 = vst.msk [vmem:[%s368 + $0x39] sm:$0xff] %vm312, %v285
      %375 = vst.msk [vmem:[%s368 + $0x49] sm:$0xff] %vm312, %v286
      %376 = vst.msk [vmem:[%s368 + $0x51] sm:$0xff] %vm312, %v287
      %377 = vst.msk [vmem:[%s368 + $0x61] sm:$0xff] %vm312, %v288
      %378 = vst.msk [vmem:[%s368 + $0x69] sm:$0xff] %vm312, %v289
      %379 = vst.msk [vmem:[%s368 + $0x79] sm:$0xff] %vm312, %v290
      %380 = vst.msk [vmem:[%s368 + $0x81] sm:$0xff] %vm312, %v291
      %381 = vst.msk [vmem:[%s368 + $0x91] sm:$0xff] %vm312, %v292
      %382 = vst.msk [vmem:[%s368 + $0x99] sm:$0xff] %vm312, %v293
      %383 = vst.msk [vmem:[%s368 + $0xa9] sm:$0xff] %vm312, %v294
      %384 = vst.msk [vmem:[%s368 + $0xb1] sm:$0xff] %vm312, %v295
      %385 = vst.msk [vmem:[%s368 + $0xc1] sm:$0xff] %vm312, %v296
      %386 = vst.msk [vmem:[%s368 + $0xc9] sm:$0xff] %vm312, %v297
      %387 = vst.msk [vmem:[%s368 + $0xd9] sm:$0xff] %vm312, %v298
      %388 = vst.msk [vmem:[%s368 + $0xe1] sm:$0xff] %vm312, %v299
      %389 = vst.msk [vmem:[%s368 + $0xf1] sm:$0xff] %vm312, %v300
      %390 = vst.msk [vmem:[%s368 + $0xf9] sm:$0xff] %vm312, %v301
      %391 = vst.msk [vmem:[%s368 + $0x109] sm:$0xff] %vm312, %v302
      %392 = vst.msk [vmem:[%s368 + $0x111] sm:$0xff] %vm312, %v303
      %393 = vst.msk [vmem:[%s368 + $0x121] sm:$0xff] %vm312, %v304
      %394 = vst.msk [vmem:[%s368 + $0x129] sm:$0xff] %vm312, %v305
      %395 = vst.msk [vmem:[%s368 + $0x139] sm:$0xff] %vm312, %v306
      %396 = vst.msk [vmem:[%s368 + $0x141] sm:$0xff] %vm312, %v307
      %397 = vst.msk [vmem:[%s368 + $0x151] sm:$0xff] %vm312, %v308
      %398 = vst.msk [vmem:[%s368 + $0x159] sm:$0xff] %vm312, %v309
      %399 = vst.msk [vmem:[%s368 + $0x169] sm:$0xff] %vm312, %v310
      %400 = vst.msk [vmem:[%s368 + $0x171] sm:$0xff] %vm312, %v311
      %v401 = vld [vmem:[#allocation2] sm:$0xff]
      %v402 = vld [vmem:[#allocation2 + $0x8] sm:$0xff]
      %v403 = vld [vmem:[#allocation2 + $0x10] sm:$0x3]
      %v404 = vld [vmem:[#allocation2 + $0x18] sm:$0xff]
      %v405 = vld [vmem:[#allocation2 + $0x20] sm:$0xff]
      %v406 = vld [vmem:[#allocation2 + $0x28] sm:$0x3]
      %v407 = vld [vmem:[#allocation2 + $0x30] sm:$0xff]
      %v408 = vld [vmem:[#allocation2 + $0x38] sm:$0xff]
      %v409 = vld [vmem:[#allocation2 + $0x40] sm:$0x3]
      %v410 = vld [vmem:[#allocation2 + $0x48] sm:$0xff]
      %v411 = vld [vmem:[#allocation2 + $0x50] sm:$0xff]
      %v412 = vld [vmem:[#allocation2 + $0x58] sm:$0x3]
      %v413 = vld [vmem:[#allocation2 + $0x60] sm:$0xff]
      %v414 = vld [vmem:[#allocation2 + $0x68] sm:$0xff]
      %v415 = vld [vmem:[#allocation2 + $0x70] sm:$0x3]
      %v416 = vld [vmem:[#allocation2 + $0x78] sm:$0xff]
      %v417 = vld [vmem:[#allocation2 + $0x80] sm:$0xff]
      %v418 = vld [vmem:[#allocation2 + $0x88] sm:$0x3]
      %v419 = vld [vmem:[#allocation2 + $0x90] sm:$0xff]
      %v420 = vld [vmem:[#allocation2 + $0x98] sm:$0xff]
      %v421 = vld [vmem:[#allocation2 + $0xa0] sm:$0x3]
      %v422 = vld [vmem:[#allocation2 + $0xa8] sm:$0xff]
      %v423 = vld [vmem:[#allocation2 + $0xb0] sm:$0xff]
      %v424 = vld [vmem:[#allocation2 + $0xb8] sm:$0x3]
      %v425 = vld [vmem:[#allocation2 + $0xc0] sm:$0xff]
      %v426 = vld [vmem:[#allocation2 + $0xc8] sm:$0xff]
      %v427 = vld [vmem:[#allocation2 + $0xd0] sm:$0x3]
      %v428 = vld [vmem:[#allocation2 + $0xd8] sm:$0xff]
      %v429 = vld [vmem:[#allocation2 + $0xe0] sm:$0xff]
      %v430 = vld [vmem:[#allocation2 + $0xe8] sm:$0x3]
      %v431 = vld [vmem:[#allocation2 + $0xf0] sm:$0xff]
      %v432 = vld [vmem:[#allocation2 + $0xf8] sm:$0xff]
      %v433 = vld [vmem:[#allocation2 + $0x100] sm:$0x3]
      %v434 = vld [vmem:[#allocation2 + $0x108] sm:$0xff]
      %v435 = vld [vmem:[#allocation2 + $0x110] sm:$0xff]
      %v436 = vld [vmem:[#allocation2 + $0x118] sm:$0x3]
      %v437 = vld [vmem:[#allocation2 + $0x120] sm:$0xff]
      %v438 = vld [vmem:[#allocation2 + $0x128] sm:$0xff]
      %v439 = vld [vmem:[#allocation2 + $0x130] sm:$0x3]
      %v440 = vld [vmem:[#allocation2 + $0x138] sm:$0xff]
      %v441 = vld [vmem:[#allocation2 + $0x140] sm:$0xff]
      %v442 = vld [vmem:[#allocation2 + $0x148] sm:$0x3]
      %v443 = vld [vmem:[#allocation2 + $0x150] sm:$0xff]
      %v444 = vld [vmem:[#allocation2 + $0x158] sm:$0xff]
      %v445 = vld [vmem:[#allocation2 + $0x160] sm:$0x3]
      %v446 = vld [vmem:[#allocation2 + $0x168] sm:$0xff]
      %v447 = vld [vmem:[#allocation2 + $0x170] sm:$0xff]
      %v448 = vld [vmem:[#allocation2 + $0x178] sm:$0x3]
      %v449 = vld [vmem:[#allocation2 + $0x180] sm:$0xff]
      %v450 = vld [vmem:[#allocation2 + $0x188] sm:$0xff]
      %v451 = vld [vmem:[#allocation2 + $0x190] sm:$0x3]
      %v452 = vld [vmem:[#allocation2 + $0x198] sm:$0xff]
      %v453 = vld [vmem:[#allocation2 + $0x1a0] sm:$0xff]
      %v454 = vld [vmem:[#allocation2 + $0x1a8] sm:$0x3]
      %vm503 = vcmask 1046528
      %v504 = vrot.slane %v401, 1
      %v505 = vrot.slane %v402, 1
      %v506 = vsel %vm503, %v504, %v505
      %v507 = vrot.slane %v403, 1
      %v508 = vsel %vm503, %v505, %v507
      %v509 = vrot.slane %v404, 1
      %v510 = vrot.slane %v405, 1
      %v511 = vsel %vm503, %v509, %v510
      %v512 = vrot.slane %v406, 1
      %v513 = vsel %vm503, %v510, %v512
      %v514 = vrot.slane %v407, 1
      %v515 = vrot.slane %v408, 1
      %v516 = vsel %vm503, %v514, %v515
      %v517 = vrot.slane %v409, 1
      %v518 = vsel %vm503, %v515, %v517
      %v519 = vrot.slane %v410, 1
      %v520 = vrot.slane %v411, 1
      %v521 = vsel %vm503, %v519, %v520
      %v522 = vrot.slane %v412, 1
      %v523 = vsel %vm503, %v520, %v522
      %v524 = vrot.slane %v413, 1
      %v525 = vrot.slane %v414, 1
      %v526 = vsel %vm503, %v524, %v525
      %v527 = vrot.slane %v415, 1
      %v528 = vsel %vm503, %v525, %v527
      %v529 = vrot.slane %v416, 1
      %v530 = vrot.slane %v417, 1
      %v531 = vsel %vm503, %v529, %v530
      %v532 = vrot.slane %v418, 1
      %v533 = vsel %vm503, %v530, %v532
      %v534 = vrot.slane %v419, 1
      %v535 = vrot.slane %v420, 1
      %v536 = vsel %vm503, %v534, %v535
      %v537 = vrot.slane %v421, 1
      %v538 = vsel %vm503, %v535, %v537
      %v539 = vrot.slane %v422, 1
      %v540 = vrot.slane %v423, 1
      %v541 = vsel %vm503, %v539, %v540
      %v542 = vrot.slane %v424, 1
      %v543 = vsel %vm503, %v540, %v542
      %v544 = vrot.slane %v425, 1
      %v545 = vrot.slane %v426, 1
      %v546 = vsel %vm503, %v544, %v545
      %v547 = vrot.slane %v427, 1
      %v548 = vsel %vm503, %v545, %v547
      %v549 = vrot.slane %v428, 1
      %v550 = vrot.slane %v429, 1
      %v551 = vsel %vm503, %v549, %v550
      %v552 = vrot.slane %v430, 1
      %v553 = vsel %vm503, %v550, %v552
      %v554 = vrot.slane %v431, 1
      %v555 = vrot.slane %v432, 1
      %v556 = vsel %vm503, %v554, %v555
      %v557 = vrot.slane %v433, 1
      %v558 = vsel %vm503, %v555, %v557
      %v559 = vrot.slane %v434, 1
      %v560 = vrot.slane %v435, 1
      %v561 = vsel %vm503, %v559, %v560
      %v562 = vrot.slane %v436, 1
      %v563 = vsel %vm503, %v560, %v562
      %v564 = vrot.slane %v437, 1
      %v565 = vrot.slane %v438, 1
      %v566 = vsel %vm503, %v564, %v565
      %v567 = vrot.slane %v439, 1
      %v568 = vsel %vm503, %v565, %v567
      %v569 = vrot.slane %v440, 1
      %v570 = vrot.slane %v441, 1
      %v571 = vsel %vm503, %v569, %v570
      %v572 = vrot.slane %v442, 1
      %v573 = vsel %vm503, %v570, %v572
      %v574 = vrot.slane %v443, 1
      %v575 = vrot.slane %v444, 1
      %v576 = vsel %vm503, %v574, %v575
      %v577 = vrot.slane %v445, 1
      %v578 = vsel %vm503, %v575, %v577
      %v579 = vrot.slane %v446, 1
      %v580 = vrot.slane %v447, 1
      %v581 = vsel %vm503, %v579, %v580
      %v582 = vrot.slane %v448, 1
      %v583 = vsel %vm503, %v580, %v582
      %584 = vrot.lane.b32.xlu0 %v506, 8
      %v585 = vpop.permute.xlu0 %584
      %586 = vrot.lane.b32.xlu0 %v508, 8
      %v587 = vpop.permute.xlu0 %586
      %588 = vrot.lane.b32.xlu0 %v511, 8
      %v589 = vpop.permute.xlu0 %588
      %590 = vrot.lane.b32.xlu0 %v513, 8
      %v591 = vpop.permute.xlu0 %590
      %592 = vrot.lane.b32.xlu0 %v516, 8
      %v593 = vpop.permute.xlu0 %592
      %594 = vrot.lane.b32.xlu0 %v518, 8
      %v595 = vpop.permute.xlu0 %594
      %596 = vrot.lane.b32.xlu0 %v521, 8
      %v597 = vpop.permute.xlu0 %596
      %598 = vrot.lane.b32.xlu0 %v523, 8
      %v599 = vpop.permute.xlu0 %598
      %600 = vrot.lane.b32.xlu0 %v526, 8
      %v601 = vpop.permute.xlu0 %600
      %602 = vrot.lane.b32.xlu0 %v528, 8
      %v603 = vpop.permute.xlu0 %602
      %604 = vrot.lane.b32.xlu0 %v531, 8
      %v605 = vpop.permute.xlu0 %604
      %606 = vrot.lane.b32.xlu0 %v533, 8
      %v607 = vpop.permute.xlu0 %606
      %608 = vrot.lane.b32.xlu0 %v536, 8
      %v609 = vpop.permute.xlu0 %608
      %610 = vrot.lane.b32.xlu0 %v538, 8
      %v611 = vpop.permute.xlu0 %610
      %612 = vrot.lane.b32.xlu0 %v541, 8
      %v613 = vpop.permute.xlu0 %612
      %614 = vrot.lane.b32.xlu0 %v543, 8
      %v615 = vpop.permute.xlu0 %614
      %616 = vrot.lane.b32.xlu0 %v546, 8
      %v617 = vpop.permute.xlu0 %616
      %618 = vrot.lane.b32.xlu0 %v548, 8
      %v619 = vpop.permute.xlu0 %618
      %620 = vrot.lane.b32.xlu0 %v551, 8
      %v621 = vpop.permute.xlu0 %620
      %622 = vrot.lane.b32.xlu0 %v553, 8
      %v623 = vpop.permute.xlu0 %622
      %624 = vrot.lane.b32.xlu0 %v556, 8
      %v625 = vpop.permute.xlu0 %624
      %626 = vrot.lane.b32.xlu0 %v558, 8
      %v627 = vpop.permute.xlu0 %626
      %628 = vrot.lane.b32.xlu0 %v561, 8
      %v629 = vpop.permute.xlu0 %628
      %630 = vrot.lane.b32.xlu0 %v563, 8
      %v631 = vpop.permute.xlu0 %630
      %632 = vrot.lane.b32.xlu0 %v566, 8
      %v633 = vpop.permute.xlu0 %632
      %634 = vrot.lane.b32.xlu0 %v568, 8
      %v635 = vpop.permute.xlu0 %634
      %636 = vrot.lane.b32.xlu0 %v571, 8
      %v637 = vpop.permute.xlu0 %636
      %638 = vrot.lane.b32.xlu0 %v573, 8
      %v639 = vpop.permute.xlu0 %638
      %640 = vrot.lane.b32.xlu0 %v576, 8
      %v641 = vpop.permute.xlu0 %640
      %642 = vrot.lane.b32.xlu0 %v578, 8
      %v643 = vpop.permute.xlu0 %642
      %644 = vrot.lane.b32.xlu0 %v581, 8
      %v645 = vpop.permute.xlu0 %644
      %646 = vrot.lane.b32.xlu0 %v583, 8
      %v647 = vpop.permute.xlu0 %646
      %vm680 = vcmask 1045504
      %v681 = vrot.slane %v401, 2
      %v682 = vrot.slane %v402, 2
      %v683 = vsel %vm680, %v681, %v682
      %v684 = vrot.slane %v403, 2
      %v685 = vsel %vm680, %v682, %v684
      %v686 = vrot.slane %v404, 2
      %v687 = vrot.slane %v405, 2
      %v688 = vsel %vm680, %v686, %v687
      %v689 = vrot.slane %v406, 2
      %v690 = vsel %vm680, %v687, %v689
      %v691 = vrot.slane %v407, 2
      %v692 = vrot.slane %v408, 2
      %v693 = vsel %vm680, %v691, %v692
      %v694 = vrot.slane %v409, 2
      %v695 = vsel %vm680, %v692, %v694
      %v696 = vrot.slane %v410, 2
      %v697 = vrot.slane %v411, 2
      %v698 = vsel %vm680, %v696, %v697
      %v699 = vrot.slane %v412, 2
      %v700 = vsel %vm680, %v697, %v699
      %v701 = vrot.slane %v413, 2
      %v702 = vrot.slane %v414, 2
      %v703 = vsel %vm680, %v701, %v702
      %v704 = vrot.slane %v415, 2
      %v705 = vsel %vm680, %v702, %v704
      %v706 = vrot.slane %v416, 2
      %v707 = vrot.slane %v417, 2
      %v708 = vsel %vm680, %v706, %v707
      %v709 = vrot.slane %v418, 2
      %v710 = vsel %vm680, %v707, %v709
      %v711 = vrot.slane %v419, 2
      %v712 = vrot.slane %v420, 2
      %v713 = vsel %vm680, %v711, %v712
      %v714 = vrot.slane %v421, 2
      %v715 = vsel %vm680, %v712, %v714
      %v716 = vrot.slane %v422, 2
      %v717 = vrot.slane %v423, 2
      %v718 = vsel %vm680, %v716, %v717
      %v719 = vrot.slane %v424, 2
      %v720 = vsel %vm680, %v717, %v719
      %v721 = vrot.slane %v425, 2
      %v722 = vrot.slane %v426, 2
      %v723 = vsel %vm680, %v721, %v722
      %v724 = vrot.slane %v427, 2
      %v725 = vsel %vm680, %v722, %v724
      %v726 = vrot.slane %v428, 2
      %v727 = vrot.slane %v429, 2
      %v728 = vsel %vm680, %v726, %v727
      %v729 = vrot.slane %v430, 2
      %v730 = vsel %vm680, %v727, %v729
      %v731 = vrot.slane %v431, 2
      %v732 = vrot.slane %v432, 2
      %v733 = vsel %vm680, %v731, %v732
      %v734 = vrot.slane %v433, 2
      %v735 = vsel %vm680, %v732, %v734
      %v736 = vrot.slane %v434, 2
      %v737 = vrot.slane %v435, 2
      %v738 = vsel %vm680, %v736, %v737
      %v739 = vrot.slane %v436, 2
      %v740 = vsel %vm680, %v737, %v739
      %v741 = vrot.slane %v437, 2
      %v742 = vrot.slane %v438, 2
      %v743 = vsel %vm680, %v741, %v742
      %v744 = vrot.slane %v439, 2
      %v745 = vsel %vm680, %v742, %v744
      %v746 = vrot.slane %v440, 2
      %v747 = vrot.slane %v441, 2
      %v748 = vsel %vm680, %v746, %v747
      %v749 = vrot.slane %v442, 2
      %v750 = vsel %vm680, %v747, %v749
      %v751 = vrot.slane %v443, 2
      %v752 = vrot.slane %v444, 2
      %v753 = vsel %vm680, %v751, %v752
      %v754 = vrot.slane %v445, 2
      %v755 = vsel %vm680, %v752, %v754
      %v756 = vrot.slane %v446, 2
      %v757 = vrot.slane %v447, 2
      %v758 = vsel %vm680, %v756, %v757
      %v759 = vrot.slane %v448, 2
      %v760 = vsel %vm680, %v757, %v759
      %761 = vrot.lane.b32.xlu0 %v683, 16
      %v762 = vpop.permute.xlu0 %761
      %763 = vrot.lane.b32.xlu0 %v685, 16
      %v764 = vpop.permute.xlu0 %763
      %765 = vrot.lane.b32.xlu0 %v688, 16
      %v766 = vpop.permute.xlu0 %765
      %767 = vrot.lane.b32.xlu0 %v690, 16
      %v768 = vpop.permute.xlu0 %767
      %769 = vrot.lane.b32.xlu0 %v693, 16
      %v770 = vpop.permute.xlu0 %769
      %771 = vrot.lane.b32.xlu0 %v695, 16
      %v772 = vpop.permute.xlu0 %771
      %773 = vrot.lane.b32.xlu0 %v698, 16
      %v774 = vpop.permute.xlu0 %773
      %775 = vrot.lane.b32.xlu0 %v700, 16
      %v776 = vpop.permute.xlu0 %775
      %777 = vrot.lane.b32.xlu0 %v703, 16
      %v778 = vpop.permute.xlu0 %777
      %779 = vrot.lane.b32.xlu0 %v705, 16
      %v780 = vpop.permute.xlu0 %779
      %781 = vrot.lane.b32.xlu0 %v708, 16
      %v782 = vpop.permute.xlu0 %781
      %783 = vrot.lane.b32.xlu0 %v710, 16
      %v784 = vpop.permute.xlu0 %783
      %785 = vrot.lane.b32.xlu0 %v713, 16
      %v786 = vpop.permute.xlu0 %785
      %787 = vrot.lane.b32.xlu0 %v715, 16
      %v788 = vpop.permute.xlu0 %787
      %789 = vrot.lane.b32.xlu0 %v718, 16
      %v790 = vpop.permute.xlu0 %789
      %791 = vrot.lane.b32.xlu0 %v720, 16
      %v792 = vpop.permute.xlu0 %791
      %793 = vrot.lane.b32.xlu0 %v723, 16
      %v794 = vpop.permute.xlu0 %793
      %795 = vrot.lane.b32.xlu0 %v725, 16
      %v796 = vpop.permute.xlu0 %795
      %797 = vrot.lane.b32.xlu0 %v728, 16
      %v798 = vpop.permute.xlu0 %797
      %799 = vrot.lane.b32.xlu0 %v730, 16
      %v800 = vpop.permute.xlu0 %799
      %801 = vrot.lane.b32.xlu0 %v733, 16
      %v802 = vpop.permute.xlu0 %801
      %803 = vrot.lane.b32.xlu0 %v735, 16
      %v804 = vpop.permute.xlu0 %803
      %805 = vrot.lane.b32.xlu0 %v738, 16
      %v806 = vpop.permute.xlu0 %805
      %807 = vrot.lane.b32.xlu0 %v740, 16
      %v808 = vpop.permute.xlu0 %807
      %809 = vrot.lane.b32.xlu0 %v743, 16
      %v810 = vpop.permute.xlu0 %809
      %811 = vrot.lane.b32.xlu0 %v745, 16
      %v812 = vpop.permute.xlu0 %811
      %813 = vrot.lane.b32.xlu0 %v748, 16
      %v814 = vpop.permute.xlu0 %813
      %815 = vrot.lane.b32.xlu0 %v750, 16
      %v816 = vpop.permute.xlu0 %815
      %817 = vrot.lane.b32.xlu0 %v753, 16
      %v818 = vpop.permute.xlu0 %817
      %819 = vrot.lane.b32.xlu0 %v755, 16
      %v820 = vpop.permute.xlu0 %819
      %821 = vrot.lane.b32.xlu0 %v758, 16
      %v822 = vpop.permute.xlu0 %821
      %823 = vrot.lane.b32.xlu0 %v760, 16
      %v824 = vpop.permute.xlu0 %823
      %859 = vrot.lane.b32.xlu0 %v404, 24
      %v860 = vpop.permute.xlu0 %859
      %861 = vrot.lane.b32.xlu0 %v405, 24
      %v862 = vpop.permute.xlu0 %861
      %863 = vrot.lane.b32.xlu0 %v407, 24
      %v864 = vpop.permute.xlu0 %863
      %865 = vrot.lane.b32.xlu0 %v408, 24
      %v866 = vpop.permute.xlu0 %865
      %867 = vrot.lane.b32.xlu0 %v410, 24
      %v868 = vpop.permute.xlu0 %867
      %869 = vrot.lane.b32.xlu0 %v411, 24
      %v870 = vpop.permute.xlu0 %869
      %871 = vrot.lane.b32.xlu0 %v413, 24
      %v872 = vpop.permute.xlu0 %871
      %873 = vrot.lane.b32.xlu0 %v414, 24
      %v874 = vpop.permute.xlu0 %873
      %875 = vrot.lane.b32.xlu0 %v416, 24
      %v876 = vpop.permute.xlu0 %875
      %877 = vrot.lane.b32.xlu0 %v417, 24
      %v878 = vpop.permute.xlu0 %877
      %879 = vrot.lane.b32.xlu0 %v419, 24
      %v880 = vpop.permute.xlu0 %879
      %881 = vrot.lane.b32.xlu0 %v420, 24
      %v882 = vpop.permute.xlu0 %881
      %883 = vrot.lane.b32.xlu0 %v422, 24
      %v884 = vpop.permute.xlu0 %883
      %885 = vrot.lane.b32.xlu0 %v423, 24
      %v886 = vpop.permute.xlu0 %885
      %887 = vrot.lane.b32.xlu0 %v425, 24
      %v888 = vpop.permute.xlu0 %887
      %889 = vrot.lane.b32.xlu0 %v426, 24
      %v890 = vpop.permute.xlu0 %889
      %891 = vrot.lane.b32.xlu0 %v428, 24
      %v892 = vpop.permute.xlu0 %891
      %893 = vrot.lane.b32.xlu0 %v429, 24
      %v894 = vpop.permute.xlu0 %893
      %895 = vrot.lane.b32.xlu0 %v431, 24
      %v896 = vpop.permute.xlu0 %895
      %897 = vrot.lane.b32.xlu0 %v432, 24
      %v898 = vpop.permute.xlu0 %897
      %899 = vrot.lane.b32.xlu0 %v434, 24
      %v900 = vpop.permute.xlu0 %899
      %901 = vrot.lane.b32.xlu0 %v435, 24
      %v902 = vpop.permute.xlu0 %901
      %903 = vrot.lane.b32.xlu0 %v437, 24
      %v904 = vpop.permute.xlu0 %903
      %905 = vrot.lane.b32.xlu0 %v438, 24
      %v906 = vpop.permute.xlu0 %905
      %907 = vrot.lane.b32.xlu0 %v440, 24
      %v908 = vpop.permute.xlu0 %907
      %909 = vrot.lane.b32.xlu0 %v441, 24
      %v910 = vpop.permute.xlu0 %909
      %911 = vrot.lane.b32.xlu0 %v443, 24
      %v912 = vpop.permute.xlu0 %911
      %913 = vrot.lane.b32.xlu0 %v444, 24
      %v914 = vpop.permute.xlu0 %913
      %915 = vrot.lane.b32.xlu0 %v446, 24
      %v916 = vpop.permute.xlu0 %915
      %917 = vrot.lane.b32.xlu0 %v447, 24
      %v918 = vpop.permute.xlu0 %917
      %919 = vrot.lane.b32.xlu0 %v449, 24
      %v920 = vpop.permute.xlu0 %919
      %921 = vrot.lane.b32.xlu0 %v450, 24
      %v922 = vpop.permute.xlu0 %921
      %v956 = vrot.slane %v449, 1
      %v957 = vrot.slane %v450, 1
      %v958 = vsel %vm503, %v956, %v957
      %v959 = vrot.slane %v451, 1
      %v960 = vsel %vm503, %v957, %v959
      %961 = vrot.lane.b32.xlu0 %v511, 32
      %v962 = vpop.permute.xlu0 %961
      %963 = vrot.lane.b32.xlu0 %v513, 32
      %v964 = vpop.permute.xlu0 %963
      %965 = vrot.lane.b32.xlu0 %v516, 32
      %v966 = vpop.permute.xlu0 %965
      %967 = vrot.lane.b32.xlu0 %v518, 32
      %v968 = vpop.permute.xlu0 %967
      %969 = vrot.lane.b32.xlu0 %v521, 32
      %v970 = vpop.permute.xlu0 %969
      %971 = vrot.lane.b32.xlu0 %v523, 32
      %v972 = vpop.permute.xlu0 %971
      %973 = vrot.lane.b32.xlu0 %v526, 32
      %v974 = vpop.permute.xlu0 %973
      %975 = vrot.lane.b32.xlu0 %v528, 32
      %v976 = vpop.permute.xlu0 %975
      %977 = vrot.lane.b32.xlu0 %v531, 32
      %v978 = vpop.permute.xlu0 %977
      %979 = vrot.lane.b32.xlu0 %v533, 32
      %v980 = vpop.permute.xlu0 %979
      %981 = vrot.lane.b32.xlu0 %v536, 32
      %v982 = vpop.permute.xlu0 %981
      %983 = vrot.lane.b32.xlu0 %v538, 32
      %v984 = vpop.permute.xlu0 %983
      %985 = vrot.lane.b32.xlu0 %v541, 32
      %v986 = vpop.permute.xlu0 %985
      %987 = vrot.lane.b32.xlu0 %v543, 32
      %v988 = vpop.permute.xlu0 %987
      %989 = vrot.lane.b32.xlu0 %v546, 32
      %v990 = vpop.permute.xlu0 %989
      %991 = vrot.lane.b32.xlu0 %v548, 32
      %v992 = vpop.permute.xlu0 %991
      %993 = vrot.lane.b32.xlu0 %v551, 32
      %v994 = vpop.permute.xlu0 %993
      %995 = vrot.lane.b32.xlu0 %v553, 32
      %v996 = vpop.permute.xlu0 %995
      %997 = vrot.lane.b32.xlu0 %v556, 32
      %v998 = vpop.permute.xlu0 %997
      %999 = vrot.lane.b32.xlu0 %v558, 32
      %v1000 = vpop.permute.xlu0 %999
      %1001 = vrot.lane.b32.xlu0 %v561, 32
      %v1002 = vpop.permute.xlu0 %1001
      %1003 = vrot.lane.b32.xlu0 %v563, 32
      %v1004 = vpop.permute.xlu0 %1003
      %1005 = vrot.lane.b32.xlu0 %v566, 32
      %v1006 = vpop.permute.xlu0 %1005
      %1007 = vrot.lane.b32.xlu0 %v568, 32
      %v1008 = vpop.permute.xlu0 %1007
      %1009 = vrot.lane.b32.xlu0 %v571, 32
      %v1010 = vpop.permute.xlu0 %1009
      %1011 = vrot.lane.b32.xlu0 %v573, 32
      %v1012 = vpop.permute.xlu0 %1011
      %1013 = vrot.lane.b32.xlu0 %v576, 32
      %v1014 = vpop.permute.xlu0 %1013
      %1015 = vrot.lane.b32.xlu0 %v578, 32
      %v1016 = vpop.permute.xlu0 %1015
      %1017 = vrot.lane.b32.xlu0 %v581, 32
      %v1018 = vpop.permute.xlu0 %1017
      %1019 = vrot.lane.b32.xlu0 %v583, 32
      %v1020 = vpop.permute.xlu0 %1019
      %1021 = vrot.lane.b32.xlu0 %v958, 32
      %v1022 = vpop.permute.xlu0 %1021
      %1023 = vrot.lane.b32.xlu0 %v960, 32
      %v1024 = vpop.permute.xlu0 %1023
      %v1057 = vrot.slane %v449, 2
      %v1058 = vrot.slane %v450, 2
      %v1059 = vsel %vm680, %v1057, %v1058
      %v1060 = vrot.slane %v451, 2
      %v1061 = vsel %vm680, %v1058, %v1060
      %1062 = vrot.lane.b32.xlu0 %v688, 40
      %v1063 = vpop.permute.xlu0 %1062
      %1064 = vrot.lane.b32.xlu0 %v690, 40
      %v1065 = vpop.permute.xlu0 %1064
      %1066 = vrot.lane.b32.xlu0 %v693, 40
      %v1067 = vpop.permute.xlu0 %1066
      %1068 = vrot.lane.b32.xlu0 %v695, 40
      %v1069 = vpop.permute.xlu0 %1068
      %1070 = vrot.lane.b32.xlu0 %v698, 40
      %v1071 = vpop.permute.xlu0 %1070
      %1072 = vrot.lane.b32.xlu0 %v700, 40
      %v1073 = vpop.permute.xlu0 %1072
      %1074 = vrot.lane.b32.xlu0 %v703, 40
      %v1075 = vpop.permute.xlu0 %1074
      %1076 = vrot.lane.b32.xlu0 %v705, 40
      %v1077 = vpop.permute.xlu0 %1076
      %1078 = vrot.lane.b32.xlu0 %v708, 40
      %v1079 = vpop.permute.xlu0 %1078
      %1080 = vrot.lane.b32.xlu0 %v710, 40
      %v1081 = vpop.permute.xlu0 %1080
      %1082 = vrot.lane.b32.xlu0 %v713, 40
      %v1083 = vpop.permute.xlu0 %1082
      %1084 = vrot.lane.b32.xlu0 %v715, 40
      %v1085 = vpop.permute.xlu0 %1084
      %1086 = vrot.lane.b32.xlu0 %v718, 40
      %v1087 = vpop.permute.xlu0 %1086
      %1088 = vrot.lane.b32.xlu0 %v720, 40
      %v1089 = vpop.permute.xlu0 %1088
      %1090 = vrot.lane.b32.xlu0 %v723, 40
      %v1091 = vpop.permute.xlu0 %1090
      %1092 = vrot.lane.b32.xlu0 %v725, 40
      %v1093 = vpop.permute.xlu0 %1092
      %1094 = vrot.lane.b32.xlu0 %v728, 40
      %v1095 = vpop.permute.xlu0 %1094
      %1096 = vrot.lane.b32.xlu0 %v730, 40
      %v1097 = vpop.permute.xlu0 %1096
      %1098 = vrot.lane.b32.xlu0 %v733, 40
      %v1099 = vpop.permute.xlu0 %1098
      %1100 = vrot.lane.b32.xlu0 %v735, 40
      %v1101 = vpop.permute.xlu0 %1100
      %1102 = vrot.lane.b32.xlu0 %v738, 40
      %v1103 = vpop.permute.xlu0 %1102
      %1104 = vrot.lane.b32.xlu0 %v740, 40
      %v1105 = vpop.permute.xlu0 %1104
      %1106 = vrot.lane.b32.xlu0 %v743, 40
      %v1107 = vpop.permute.xlu0 %1106
      %1108 = vrot.lane.b32.xlu0 %v745, 40
      %v1109 = vpop.permute.xlu0 %1108
      %1110 = vrot.lane.b32.xlu0 %v748, 40
      %v1111 = vpop.permute.xlu0 %1110
      %1112 = vrot.lane.b32.xlu0 %v750, 40
      %v1113 = vpop.permute.xlu0 %1112
      %1114 = vrot.lane.b32.xlu0 %v753, 40
      %v1115 = vpop.permute.xlu0 %1114
      %1116 = vrot.lane.b32.xlu0 %v755, 40
      %v1117 = vpop.permute.xlu0 %1116
      %1118 = vrot.lane.b32.xlu0 %v758, 40
      %v1119 = vpop.permute.xlu0 %1118
      %1120 = vrot.lane.b32.xlu0 %v760, 40
      %v1121 = vpop.permute.xlu0 %1120
      %1122 = vrot.lane.b32.xlu0 %v1059, 40
      %v1123 = vpop.permute.xlu0 %1122
      %1124 = vrot.lane.b32.xlu0 %v1061, 40
      %v1125 = vpop.permute.xlu0 %1124
      %1160 = vrot.lane.b32.xlu0 %v407, 48
      %v1161 = vpop.permute.xlu0 %1160
      %1162 = vrot.lane.b32.xlu0 %v408, 48
      %v1163 = vpop.permute.xlu0 %1162
      %1164 = vrot.lane.b32.xlu0 %v410, 48
      %v1165 = vpop.permute.xlu0 %1164
      %1166 = vrot.lane.b32.xlu0 %v411, 48
      %v1167 = vpop.permute.xlu0 %1166
      %1168 = vrot.lane.b32.xlu0 %v413, 48
      %v1169 = vpop.permute.xlu0 %1168
      %1170 = vrot.lane.b32.xlu0 %v414, 48
      %v1171 = vpop.permute.xlu0 %1170
      %1172 = vrot.lane.b32.xlu0 %v416, 48
      %v1173 = vpop.permute.xlu0 %1172
      %1174 = vrot.lane.b32.xlu0 %v417, 48
      %v1175 = vpop.permute.xlu0 %1174
      %1176 = vrot.lane.b32.xlu0 %v419, 48
      %v1177 = vpop.permute.xlu0 %1176
      %1178 = vrot.lane.b32.xlu0 %v420, 48
      %v1179 = vpop.permute.xlu0 %1178
      %1180 = vrot.lane.b32.xlu0 %v422, 48
      %v1181 = vpop.permute.xlu0 %1180
      %1182 = vrot.lane.b32.xlu0 %v423, 48
      %v1183 = vpop.permute.xlu0 %1182
      %1184 = vrot.lane.b32.xlu0 %v425, 48
      %v1185 = vpop.permute.xlu0 %1184
      %1186 = vrot.lane.b32.xlu0 %v426, 48
      %v1187 = vpop.permute.xlu0 %1186
      %1188 = vrot.lane.b32.xlu0 %v428, 48
      %v1189 = vpop.permute.xlu0 %1188
      %1190 = vrot.lane.b32.xlu0 %v429, 48
      %v1191 = vpop.permute.xlu0 %1190
      %1192 = vrot.lane.b32.xlu0 %v431, 48
      %v1193 = vpop.permute.xlu0 %1192
      %1194 = vrot.lane.b32.xlu0 %v432, 48
      %v1195 = vpop.permute.xlu0 %1194
      %1196 = vrot.lane.b32.xlu0 %v434, 48
      %v1197 = vpop.permute.xlu0 %1196
      %1198 = vrot.lane.b32.xlu0 %v435, 48
      %v1199 = vpop.permute.xlu0 %1198
      %1200 = vrot.lane.b32.xlu0 %v437, 48
      %v1201 = vpop.permute.xlu0 %1200
      %1202 = vrot.lane.b32.xlu0 %v438, 48
      %v1203 = vpop.permute.xlu0 %1202
      %1204 = vrot.lane.b32.xlu0 %v440, 48
      %v1205 = vpop.permute.xlu0 %1204
      %1206 = vrot.lane.b32.xlu0 %v441, 48
      %v1207 = vpop.permute.xlu0 %1206
      %1208 = vrot.lane.b32.xlu0 %v443, 48
      %v1209 = vpop.permute.xlu0 %1208
      %1210 = vrot.lane.b32.xlu0 %v444, 48
      %v1211 = vpop.permute.xlu0 %1210
      %1212 = vrot.lane.b32.xlu0 %v446, 48
      %v1213 = vpop.permute.xlu0 %1212
      %1214 = vrot.lane.b32.xlu0 %v447, 48
      %v1215 = vpop.permute.xlu0 %1214
      %1216 = vrot.lane.b32.xlu0 %v449, 48
      %v1217 = vpop.permute.xlu0 %1216
      %1218 = vrot.lane.b32.xlu0 %v450, 48
      %v1219 = vpop.permute.xlu0 %1218
      %1220 = vrot.lane.b32.xlu0 %v452, 48
      %v1221 = vpop.permute.xlu0 %1220
      %1222 = vrot.lane.b32.xlu0 %v453, 48
      %v1223 = vpop.permute.xlu0 %1222
      %v1257 = vrot.slane %v452, 1
      %v1258 = vrot.slane %v453, 1
      %v1259 = vsel %vm503, %v1257, %v1258
      %v1260 = vrot.slane %v454, 1
      %v1261 = vsel %vm503, %v1258, %v1260
      %1262 = vrot.lane.b32.xlu0 %v516, 56
      %v1263 = vpop.permute.xlu0 %1262
      %1264 = vrot.lane.b32.xlu0 %v518, 56
      %v1265 = vpop.permute.xlu0 %1264
      %1266 = vrot.lane.b32.xlu0 %v521, 56
      %v1267 = vpop.permute.xlu0 %1266
      %1268 = vrot.lane.b32.xlu0 %v523, 56
      %v1269 = vpop.permute.xlu0 %1268
      %1270 = vrot.lane.b32.xlu0 %v526, 56
      %v1271 = vpop.permute.xlu0 %1270
      %1272 = vrot.lane.b32.xlu0 %v528, 56
      %v1273 = vpop.permute.xlu0 %1272
      %1274 = vrot.lane.b32.xlu0 %v531, 56
      %v1275 = vpop.permute.xlu0 %1274
      %1276 = vrot.lane.b32.xlu0 %v533, 56
      %v1277 = vpop.permute.xlu0 %1276
      %1278 = vrot.lane.b32.xlu0 %v536, 56
      %v1279 = vpop.permute.xlu0 %1278
      %1280 = vrot.lane.b32.xlu0 %v538, 56
      %v1281 = vpop.permute.xlu0 %1280
      %1282 = vrot.lane.b32.xlu0 %v541, 56
      %v1283 = vpop.permute.xlu0 %1282
      %1284 = vrot.lane.b32.xlu0 %v543, 56
      %v1285 = vpop.permute.xlu0 %1284
      %1286 = vrot.lane.b32.xlu0 %v546, 56
      %v1287 = vpop.permute.xlu0 %1286
      %1288 = vrot.lane.b32.xlu0 %v548, 56
      %v1289 = vpop.permute.xlu0 %1288
      %1290 = vrot.lane.b32.xlu0 %v551, 56
      %v1291 = vpop.permute.xlu0 %1290
      %1292 = vrot.lane.b32.xlu0 %v553, 56
      %v1293 = vpop.permute.xlu0 %1292
      %1294 = vrot.lane.b32.xlu0 %v556, 56
      %v1295 = vpop.permute.xlu0 %1294
      %1296 = vrot.lane.b32.xlu0 %v558, 56
      %v1297 = vpop.permute.xlu0 %1296
      %1298 = vrot.lane.b32.xlu0 %v561, 56
      %v1299 = vpop.permute.xlu0 %1298
      %1300 = vrot.lane.b32.xlu0 %v563, 56
      %v1301 = vpop.permute.xlu0 %1300
      %1302 = vrot.lane.b32.xlu0 %v566, 56
      %v1303 = vpop.permute.xlu0 %1302
      %1304 = vrot.lane.b32.xlu0 %v568, 56
      %v1305 = vpop.permute.xlu0 %1304
      %1306 = vrot.lane.b32.xlu0 %v571, 56
      %v1307 = vpop.permute.xlu0 %1306
      %1308 = vrot.lane.b32.xlu0 %v573, 56
      %v1309 = vpop.permute.xlu0 %1308
      %1310 = vrot.lane.b32.xlu0 %v576, 56
      %v1311 = vpop.permute.xlu0 %1310
      %1312 = vrot.lane.b32.xlu0 %v578, 56
      %v1313 = vpop.permute.xlu0 %1312
      %1314 = vrot.lane.b32.xlu0 %v581, 56
      %v1315 = vpop.permute.xlu0 %1314
      %1316 = vrot.lane.b32.xlu0 %v583, 56
      %v1317 = vpop.permute.xlu0 %1316
      %1318 = vrot.lane.b32.xlu0 %v958, 56
      %v1319 = vpop.permute.xlu0 %1318
      %1320 = vrot.lane.b32.xlu0 %v960, 56
      %v1321 = vpop.permute.xlu0 %1320
      %1322 = vrot.lane.b32.xlu0 %v1259, 56
      %v1323 = vpop.permute.xlu0 %1322
      %1324 = vrot.lane.b32.xlu0 %v1261, 56
      %v1325 = vpop.permute.xlu0 %1324
      %v1358 = vrot.slane %v452, 2
      %v1359 = vrot.slane %v453, 2
      %v1360 = vsel %vm680, %v1358, %v1359
      %v1361 = vrot.slane %v454, 2
      %v1362 = vsel %vm680, %v1359, %v1361
      %1363 = vrot.lane.b32.xlu0 %v693, 64
      %v1364 = vpop.permute.xlu0 %1363
      %1365 = vrot.lane.b32.xlu0 %v695, 64
      %v1366 = vpop.permute.xlu0 %1365
      %1367 = vrot.lane.b32.xlu0 %v698, 64
      %v1368 = vpop.permute.xlu0 %1367
      %1369 = vrot.lane.b32.xlu0 %v700, 64
      %v1370 = vpop.permute.xlu0 %1369
      %1371 = vrot.lane.b32.xlu0 %v703, 64
      %v1372 = vpop.permute.xlu0 %1371
      %1373 = vrot.lane.b32.xlu0 %v705, 64
      %v1374 = vpop.permute.xlu0 %1373
      %1375 = vrot.lane.b32.xlu0 %v708, 64
      %v1376 = vpop.permute.xlu0 %1375
      %1377 = vrot.lane.b32.xlu0 %v710, 64
      %v1378 = vpop.permute.xlu0 %1377
      %1379 = vrot.lane.b32.xlu0 %v713, 64
      %v1380 = vpop.permute.xlu0 %1379
      %1381 = vrot.lane.b32.xlu0 %v715, 64
      %v1382 = vpop.permute.xlu0 %1381
      %1383 = vrot.lane.b32.xlu0 %v718, 64
      %v1384 = vpop.permute.xlu0 %1383
      %1385 = vrot.lane.b32.xlu0 %v720, 64
      %v1386 = vpop.permute.xlu0 %1385
      %1387 = vrot.lane.b32.xlu0 %v723, 64
      %v1388 = vpop.permute.xlu0 %1387
      %1389 = vrot.lane.b32.xlu0 %v725, 64
      %v1390 = vpop.permute.xlu0 %1389
      %1391 = vrot.lane.b32.xlu0 %v728, 64
      %v1392 = vpop.permute.xlu0 %1391
      %1393 = vrot.lane.b32.xlu0 %v730, 64
      %v1394 = vpop.permute.xlu0 %1393
      %1395 = vrot.lane.b32.xlu0 %v733, 64
      %v1396 = vpop.permute.xlu0 %1395
      %1397 = vrot.lane.b32.xlu0 %v735, 64
      %v1398 = vpop.permute.xlu0 %1397
      %1399 = vrot.lane.b32.xlu0 %v738, 64
      %v1400 = vpop.permute.xlu0 %1399
      %1401 = vrot.lane.b32.xlu0 %v740, 64
      %v1402 = vpop.permute.xlu0 %1401
      %1403 = vrot.lane.b32.xlu0 %v743, 64
      %v1404 = vpop.permute.xlu0 %1403
      %1405 = vrot.lane.b32.xlu0 %v745, 64
      %v1406 = vpop.permute.xlu0 %1405
      %1407 = vrot.lane.b32.xlu0 %v748, 64
      %v1408 = vpop.permute.xlu0 %1407
      %1409 = vrot.lane.b32.xlu0 %v750, 64
      %v1410 = vpop.permute.xlu0 %1409
      %1411 = vrot.lane.b32.xlu0 %v753, 64
      %v1412 = vpop.permute.xlu0 %1411
      %1413 = vrot.lane.b32.xlu0 %v755, 64
      %v1414 = vpop.permute.xlu0 %1413
      %1415 = vrot.lane.b32.xlu0 %v758, 64
      %v1416 = vpop.permute.xlu0 %1415
      %1417 = vrot.lane.b32.xlu0 %v760, 64
      %v1418 = vpop.permute.xlu0 %1417
      %1419 = vrot.lane.b32.xlu0 %v1059, 64
      %v1420 = vpop.permute.xlu0 %1419
      %1421 = vrot.lane.b32.xlu0 %v1061, 64
      %v1422 = vpop.permute.xlu0 %1421
      %1423 = vrot.lane.b32.xlu0 %v1360, 64
      %v1424 = vpop.permute.xlu0 %1423
      %1425 = vrot.lane.b32.xlu0 %v1362, 64
      %v1426 = vpop.permute.xlu0 %1425
      %v1459 = vsel %vm312, %v401, %v585
      %v1460 = vsel %vm312, %v402, %v587
      %v1461 = vsel %vm312, %v404, %v589
      %v1462 = vsel %vm312, %v405, %v591
      %v1463 = vsel %vm312, %v407, %v593
      %v1464 = vsel %vm312, %v408, %v595
      %v1465 = vsel %vm312, %v410, %v597
      %v1466 = vsel %vm312, %v411, %v599
      %v1467 = vsel %vm312, %v413, %v601
      %v1468 = vsel %vm312, %v414, %v603
      %v1469 = vsel %vm312, %v416, %v605
      %v1470 = vsel %vm312, %v417, %v607
      %v1471 = vsel %vm312, %v419, %v609
      %v1472 = vsel %vm312, %v420, %v611
      %v1473 = vsel %vm312, %v422, %v613
      %v1474 = vsel %vm312, %v423, %v615
      %v1475 = vsel %vm312, %v425, %v617
      %v1476 = vsel %vm312, %v426, %v619
      %v1477 = vsel %vm312, %v428, %v621
      %v1478 = vsel %vm312, %v429, %v623
      %v1479 = vsel %vm312, %v431, %v625
      %v1480 = vsel %vm312, %v432, %v627
      %v1481 = vsel %vm312, %v434, %v629
      %v1482 = vsel %vm312, %v435, %v631
      %v1483 = vsel %vm312, %v437, %v633
      %v1484 = vsel %vm312, %v438, %v635
      %v1485 = vsel %vm312, %v440, %v637
      %v1486 = vsel %vm312, %v441, %v639
      %v1487 = vsel %vm312, %v443, %v641
      %v1488 = vsel %vm312, %v444, %v643
      %v1489 = vsel %vm312, %v446, %v645
      %v1490 = vsel %vm312, %v447, %v647
      %vm1491 = vcmask 130048
      %v1492 = vsel %vm1491, %v1459, %v762
      %v1493 = vsel %vm1491, %v1460, %v764
      %v1494 = vsel %vm1491, %v1461, %v766
      %v1495 = vsel %vm1491, %v1462, %v768
      %v1496 = vsel %vm1491, %v1463, %v770
      %v1497 = vsel %vm1491, %v1464, %v772
      %v1498 = vsel %vm1491, %v1465, %v774
      %v1499 = vsel %vm1491, %v1466, %v776
      %v1500 = vsel %vm1491, %v1467, %v778
      %v1501 = vsel %vm1491, %v1468, %v780
      %v1502 = vsel %vm1491, %v1469, %v782
      %v1503 = vsel %vm1491, %v1470, %v784
      %v1504 = vsel %vm1491, %v1471, %v786
      %v1505 = vsel %vm1491, %v1472, %v788
      %v1506 = vsel %vm1491, %v1473, %v790
      %v1507 = vsel %vm1491, %v1474, %v792
      %v1508 = vsel %vm1491, %v1475, %v794
      %v1509 = vsel %vm1491, %v1476, %v796
      %v1510 = vsel %vm1491, %v1477, %v798
      %v1511 = vsel %vm1491, %v1478, %v800
      %v1512 = vsel %vm1491, %v1479, %v802
      %v1513 = vsel %vm1491, %v1480, %v804
      %v1514 = vsel %vm1491, %v1481, %v806
      %v1515 = vsel %vm1491, %v1482, %v808
      %v1516 = vsel %vm1491, %v1483, %v810
      %v1517 = vsel %vm1491, %v1484, %v812
      %v1518 = vsel %vm1491, %v1485, %v814
      %v1519 = vsel %vm1491, %v1486, %v816
      %v1520 = vsel %vm1491, %v1487, %v818
      %v1521 = vsel %vm1491, %v1488, %v820
      %v1522 = vsel %vm1491, %v1489, %v822
      %v1523 = vsel %vm1491, %v1490, %v824
      %vm1524 = vcmask 195584
      %v1525 = vsel %vm1524, %v1492, %v860
      %v1526 = vsel %vm1524, %v1493, %v862
      %v1527 = vsel %vm1524, %v1494, %v864
      %v1528 = vsel %vm1524, %v1495, %v866
      %v1529 = vsel %vm1524, %v1496, %v868
      %v1530 = vsel %vm1524, %v1497, %v870
      %v1531 = vsel %vm1524, %v1498, %v872
      %v1532 = vsel %vm1524, %v1499, %v874
      %v1533 = vsel %vm1524, %v1500, %v876
      %v1534 = vsel %vm1524, %v1501, %v878
      %v1535 = vsel %vm1524, %v1502, %v880
      %v1536 = vsel %vm1524, %v1503, %v882
      %v1537 = vsel %vm1524, %v1504, %v884
      %v1538 = vsel %vm1524, %v1505, %v886
      %v1539 = vsel %vm1524, %v1506, %v888
      %v1540 = vsel %vm1524, %v1507, %v890
      %v1541 = vsel %vm1524, %v1508, %v892
      %v1542 = vsel %vm1524, %v1509, %v894
      %v1543 = vsel %vm1524, %v1510, %v896
      %v1544 = vsel %vm1524, %v1511, %v898
      %v1545 = vsel %vm1524, %v1512, %v900
      %v1546 = vsel %vm1524, %v1513, %v902
      %v1547 = vsel %vm1524, %v1514, %v904
      %v1548 = vsel %vm1524, %v1515, %v906
      %v1549 = vsel %vm1524, %v1516, %v908
      %v1550 = vsel %vm1524, %v1517, %v910
      %v1551 = vsel %vm1524, %v1518, %v912
      %v1552 = vsel %vm1524, %v1519, %v914
      %v1553 = vsel %vm1524, %v1520, %v916
      %v1554 = vsel %vm1524, %v1521, %v918
      %v1555 = vsel %vm1524, %v1522, %v920
      %v1556 = vsel %vm1524, %v1523, %v922
      %vm1557 = vcmask 261120
      %v1558 = vsel %vm1557, %v1525, %v962
      %v1559 = vsel %vm1557, %v1526, %v964
      %v1560 = vsel %vm1557, %v1527, %v966
      %v1561 = vsel %vm1557, %v1528, %v968
      %v1562 = vsel %vm1557, %v1529, %v970
      %v1563 = vsel %vm1557, %v1530, %v972
      %v1564 = vsel %vm1557, %v1531, %v974
      %v1565 = vsel %vm1557, %v1532, %v976
      %v1566 = vsel %vm1557, %v1533, %v978
      %v1567 = vsel %vm1557, %v1534, %v980
      %v1568 = vsel %vm1557, %v1535, %v982
      %v1569 = vsel %vm1557, %v1536, %v984
      %v1570 = vsel %vm1557, %v1537, %v986
      %v1571 = vsel %vm1557, %v1538, %v988
      %v1572 = vsel %vm1557, %v1539, %v990
      %v1573 = vsel %vm1557, %v1540, %v992
      %v1574 = vsel %vm1557, %v1541, %v994
      %v1575 = vsel %vm1557, %v1542, %v996
      %v1576 = vsel %vm1557, %v1543, %v998
      %v1577 = vsel %vm1557, %v1544, %v1000
      %v1578 = vsel %vm1557, %v1545, %v1002
      %v1579 = vsel %vm1557, %v1546, %v1004
      %v1580 = vsel %vm1557, %v1547, %v1006
      %v1581 = vsel %vm1557, %v1548, %v1008
      %v1582 = vsel %vm1557, %v1549, %v1010
      %v1583 = vsel %vm1557, %v1550, %v1012
      %v1584 = vsel %vm1557, %v1551, %v1014
      %v1585 = vsel %vm1557, %v1552, %v1016
      %v1586 = vsel %vm1557, %v1553, %v1018
      %v1587 = vsel %vm1557, %v1554, %v1020
      %v1588 = vsel %vm1557, %v1555, %v1022
      %v1589 = vsel %vm1557, %v1556, %v1024
      %vm1590 = vcmask 326656
      %v1591 = vsel %vm1590, %v1558, %v1063
      %v1592 = vsel %vm1590, %v1559, %v1065
      %v1593 = vsel %vm1590, %v1560, %v1067
      %v1594 = vsel %vm1590, %v1561, %v1069
      %v1595 = vsel %vm1590, %v1562, %v1071
      %v1596 = vsel %vm1590, %v1563, %v1073
      %v1597 = vsel %vm1590, %v1564, %v1075
      %v1598 = vsel %vm1590, %v1565, %v1077
      %v1599 = vsel %vm1590, %v1566, %v1079
      %v1600 = vsel %vm1590, %v1567, %v1081
      %v1601 = vsel %vm1590, %v1568, %v1083
      %v1602 = vsel %vm1590, %v1569, %v1085
      %v1603 = vsel %vm1590, %v1570, %v1087
      %v1604 = vsel %vm1590, %v1571, %v1089
      %v1605 = vsel %vm1590, %v1572, %v1091
      %v1606 = vsel %vm1590, %v1573, %v1093
      %v1607 = vsel %vm1590, %v1574, %v1095
      %v1608 = vsel %vm1590, %v1575, %v1097
      %v1609 = vsel %vm1590, %v1576, %v1099
      %v1610 = vsel %vm1590, %v1577, %v1101
      %v1611 = vsel %vm1590, %v1578, %v1103
      %v1612 = vsel %vm1590, %v1579, %v1105
      %v1613 = vsel %vm1590, %v1580, %v1107
      %v1614 = vsel %vm1590, %v1581, %v1109
      %v1615 = vsel %vm1590, %v1582, %v1111
      %v1616 = vsel %vm1590, %v1583, %v1113
      %v1617 = vsel %vm1590, %v1584, %v1115
      %v1618 = vsel %vm1590, %v1585, %v1117
      %v1619 = vsel %vm1590, %v1586, %v1119
      %v1620 = vsel %vm1590, %v1587, %v1121
      %v1621 = vsel %vm1590, %v1588, %v1123
      %v1622 = vsel %vm1590, %v1589, %v1125
      %vm1623 = vcmask 392192
      %v1624 = vsel %vm1623, %v1591, %v1161
      %v1625 = vsel %vm1623, %v1592, %v1163
      %v1626 = vsel %vm1623, %v1593, %v1165
      %v1627 = vsel %vm1623, %v1594, %v1167
      %v1628 = vsel %vm1623, %v1595, %v1169
      %v1629 = vsel %vm1623, %v1596, %v1171
      %v1630 = vsel %vm1623, %v1597, %v1173
      %v1631 = vsel %vm1623, %v1598, %v1175
      %v1632 = vsel %vm1623, %v1599, %v1177
      %v1633 = vsel %vm1623, %v1600, %v1179
      %v1634 = vsel %vm1623, %v1601, %v1181
      %v1635 = vsel %vm1623, %v1602, %v1183
      %v1636 = vsel %vm1623, %v1603, %v1185
      %v1637 = vsel %vm1623, %v1604, %v1187
      %v1638 = vsel %vm1623, %v1605, %v1189
      %v1639 = vsel %vm1623, %v1606, %v1191
      %v1640 = vsel %vm1623, %v1607, %v1193
      %v1641 = vsel %vm1623, %v1608, %v1195
      %v1642 = vsel %vm1623, %v1609, %v1197
      %v1643 = vsel %vm1623, %v1610, %v1199
      %v1644 = vsel %vm1623, %v1611, %v1201
      %v1645 = vsel %vm1623, %v1612, %v1203
      %v1646 = vsel %vm1623, %v1613, %v1205
      %v1647 = vsel %vm1623, %v1614, %v1207
      %v1648 = vsel %vm1623, %v1615, %v1209
      %v1649 = vsel %vm1623, %v1616, %v1211
      %v1650 = vsel %vm1623, %v1617, %v1213
      %v1651 = vsel %vm1623, %v1618, %v1215
      %v1652 = vsel %vm1623, %v1619, %v1217
      %v1653 = vsel %vm1623, %v1620, %v1219
      %v1654 = vsel %vm1623, %v1621, %v1221
      %v1655 = vsel %vm1623, %v1622, %v1223
      %vm1656 = vcmask 457728
      %v1657 = vsel %vm1656, %v1624, %v1263
      %v1658 = vsel %vm1656, %v1625, %v1265
      %v1659 = vsel %vm1656, %v1626, %v1267
      %v1660 = vsel %vm1656, %v1627, %v1269
      %v1661 = vsel %vm1656, %v1628, %v1271
      %v1662 = vsel %vm1656, %v1629, %v1273
      %v1663 = vsel %vm1656, %v1630, %v1275
      %v1664 = vsel %vm1656, %v1631, %v1277
      %v1665 = vsel %vm1656, %v1632, %v1279
      %v1666 = vsel %vm1656, %v1633, %v1281
      %v1667 = vsel %vm1656, %v1634, %v1283
      %v1668 = vsel %vm1656, %v1635, %v1285
      %v1669 = vsel %vm1656, %v1636, %v1287
      %v1670 = vsel %vm1656, %v1637, %v1289
      %v1671 = vsel %vm1656, %v1638, %v1291
      %v1672 = vsel %vm1656, %v1639, %v1293
      %v1673 = vsel %vm1656, %v1640, %v1295
      %v1674 = vsel %vm1656, %v1641, %v1297
      %v1675 = vsel %vm1656, %v1642, %v1299
      %v1676 = vsel %vm1656, %v1643, %v1301
      %v1677 = vsel %vm1656, %v1644, %v1303
      %v1678 = vsel %vm1656, %v1645, %v1305
      %v1679 = vsel %vm1656, %v1646, %v1307
      %v1680 = vsel %vm1656, %v1647, %v1309
      %v1681 = vsel %vm1656, %v1648, %v1311
      %v1682 = vsel %vm1656, %v1649, %v1313
      %v1683 = vsel %vm1656, %v1650, %v1315
      %v1684 = vsel %vm1656, %v1651, %v1317
      %v1685 = vsel %vm1656, %v1652, %v1319
      %v1686 = vsel %vm1656, %v1653, %v1321
      %v1687 = vsel %vm1656, %v1654, %v1323
      %v1688 = vsel %vm1656, %v1655, %v1325
      %vm1689 = vcmask 523264
      %v1690 = vsel %vm1689, %v1657, %v1364
      %v1691 = vsel %vm1689, %v1658, %v1366
      %v1692 = vsel %vm1689, %v1659, %v1368
      %v1693 = vsel %vm1689, %v1660, %v1370
      %v1694 = vsel %vm1689, %v1661, %v1372
      %v1695 = vsel %vm1689, %v1662, %v1374
      %v1696 = vsel %vm1689, %v1663, %v1376
      %v1697 = vsel %vm1689, %v1664, %v1378
      %v1698 = vsel %vm1689, %v1665, %v1380
      %v1699 = vsel %vm1689, %v1666, %v1382
      %v1700 = vsel %vm1689, %v1667, %v1384
      %v1701 = vsel %vm1689, %v1668, %v1386
      %v1702 = vsel %vm1689, %v1669, %v1388
      %v1703 = vsel %vm1689, %v1670, %v1390
      %v1704 = vsel %vm1689, %v1671, %v1392
      %v1705 = vsel %vm1689, %v1672, %v1394
      %v1706 = vsel %vm1689, %v1673, %v1396
      %v1707 = vsel %vm1689, %v1674, %v1398
      %v1708 = vsel %vm1689, %v1675, %v1400
      %v1709 = vsel %vm1689, %v1676, %v1402
      %v1710 = vsel %vm1689, %v1677, %v1404
      %v1711 = vsel %vm1689, %v1678, %v1406
      %v1712 = vsel %vm1689, %v1679, %v1408
      %v1713 = vsel %vm1689, %v1680, %v1410
      %v1714 = vsel %vm1689, %v1681, %v1412
      %v1715 = vsel %vm1689, %v1682, %v1414
      %v1716 = vsel %vm1689, %v1683, %v1416
      %v1717 = vsel %vm1689, %v1684, %v1418
      %v1718 = vsel %vm1689, %v1685, %v1420
      %v1719 = vsel %vm1689, %v1686, %v1422
      %v1720 = vsel %vm1689, %v1687, %v1424
      %v1721 = vsel %vm1689, %v1688, %v1426
      %v1722 = vpack.c.bf16 %v1691, %v1690
      %v1723 = vpack.c.bf16 %v1693, %v1692
      %v1724 = vpack.c.bf16 %v1695, %v1694
      %v1725 = vpack.c.bf16 %v1697, %v1696
      %v1726 = vpack.c.bf16 %v1699, %v1698
      %v1727 = vpack.c.bf16 %v1701, %v1700
      %v1728 = vpack.c.bf16 %v1703, %v1702
      %v1729 = vpack.c.bf16 %v1705, %v1704
      %v1730 = vpack.c.bf16 %v1707, %v1706
      %v1731 = vpack.c.bf16 %v1709, %v1708
      %v1732 = vpack.c.bf16 %v1711, %v1710
      %v1733 = vpack.c.bf16 %v1713, %v1712
      %v1734 = vpack.c.bf16 %v1715, %v1714
      %v1735 = vpack.c.bf16 %v1717, %v1716
      %v1736 = vpack.c.bf16 %v1719, %v1718
      %v1737 = vpack.c.bf16 %v1721, %v1720
      %v1738 = vld [vmem:[%s1] sm:$0xf]
      %v1739 = vld [vmem:[%s1 + $0x4] sm:$0xf]
      %v1740 = vld [vmem:[%s1 + $0x8] sm:$0xf]
      %v1741 = vld [vmem:[%s1 + $0xc] sm:$0xf]
      %v1742 = vld [vmem:[%s1 + $0x10] sm:$0xf]
      %v1743 = vld [vmem:[%s1 + $0x14] sm:$0xf]
      %v1744 = vld [vmem:[%s1 + $0x18] sm:$0xf]
      %v1745 = vld [vmem:[%s1 + $0x1c] sm:$0xf]
      %v1746 = vld [vmem:[%s1 + $0x20] sm:$0xf]
      %v1747 = vld [vmem:[%s2] sm:$0x1]
      %v1749 = vlaneseq
      %v1750 = vshrl.u32 %v1749, 7
      %v1751 = vsub.s32 0, %v1750
      %v1752 = vrot.slane %v1747, %v1751
      %v1763 = vunpack.c.l.b16 %v1738
      %v1764 = vunpack.c.l.b16 %v1739
      %v1765 = vunpack.c.l.b16 %v1740
      %v1766 = vunpack.c.l.b16 %v1741
      %v1767 = vunpack.c.l.b16 %v1742
      %v1768 = vunpack.c.l.b16 %v1743
      %v1769 = vunpack.c.l.b16 %v1744
      %v1770 = vunpack.c.l.b16 %v1745
      %v1771 = vunpack.c.l.b16 %v1746
      %v1772 = vpack.c.b16 %v1764, %v1763
      %v1773 = vpack.c.b16 %v1766, %v1765
      %v1774 = vpack.c.b16 %v1768, %v1767
      %v1775 = vpack.c.b16 %v1770, %v1769
      %v1776 = vpack.c.b16 %v1771, %v1771
      %vm1781 = vcmask 588800
      %v1783 = vsel %vm1781, %v1722, 0
      %v1786 = vsel %vm1781, %v1723, 0
      %v1789 = vsel %vm1781, %v1724, 0
      %v1792 = vsel %vm1781, %v1725, 0
      %v1795 = vsel %vm1781, %v1726, 0
      %v1798 = vsel %vm1781, %v1727, 0
      %v1801 = vsel %vm1781, %v1728, 0
      %v1804 = vsel %vm1781, %v1729, 0
      %v1807 = vsel %vm1781, %v1730, 0
      %v1810 = vsel %vm1781, %v1731, 0
      %v1813 = vsel %vm1781, %v1732, 0
      %v1816 = vsel %vm1781, %v1733, 0
      %v1819 = vsel %vm1781, %v1734, 0
      %v1822 = vsel %vm1781, %v1735, 0
      %v1825 = vsel %vm1781, %v1736, 0
      %v1828 = vsel %vm1781, %v1737, 0
      %vm1830 = vcmask 1043456
      %v1832 = vsel %vm1830, %v1776, 0
      %1834 = vmatprep.subr.bf16.mxu0 0
      %1835 = vmatpush1.bf16.msra.mxu0 %v1772
      %1836 = vmatprep.subr.bf16.mxu0 0
      %1837 = vmatpush1.bf16.msra.mxu0 %v1773
      %1838 = vmatprep.subr.bf16.mxu0 0
      %1839 = vmatpush1.bf16.msra.mxu0 %v1774
      %1840 = vmatprep.subr.bf16.mxu0 0
      %1841 = vmatpush1.bf16.msra.mxu0 %v1775
      %1842 = vmatprep.subr.bf16.mxu0 0
      %1843 = vmatpush1.bf16.msra.mxu0 %v1832
      %1844 = vmatprep.subr.bf16.mxu0 0
      %1845 = vmatpush1.bf16.msra.mxu0 0
      %1846 = vmatprep.subr.bf16.mxu0 0
      %1847 = vmatpush1.bf16.msra.mxu0 0
      %1848 = vmatprep.subr.bf16.mxu0 0
      %1849 = vmatpush1.bf16.msra.mxu0 0
      %1850 = vmatprep.subr.bf16.mxu0 0
      %1851 = vmatpush1.bf16.msra.mxu0 0
      %1852 = vmatprep.subr.bf16.mxu0 0
      %1853 = vmatpush1.bf16.msra.mxu0 0
      %1854 = vmatprep.subr.bf16.mxu0 0
      %1855 = vmatpush1.bf16.msra.mxu0 0
      %1856 = vmatprep.subr.bf16.mxu0 0
      %1857 = vmatpush1.bf16.msra.mxu0 0
      %1858 = vmatprep.subr.bf16.mxu0 0
      %1859 = vmatpush1.bf16.msra.mxu0 0
      %1860 = vmatprep.subr.bf16.mxu0 0
      %1861 = vmatpush1.bf16.msra.mxu0 0
      %1862 = vmatprep.subr.bf16.mxu0 0
      %1863 = vmatpush1.bf16.msra.mxu0 0
      %1864 = vmatprep.subr.bf16.mxu0 0
      %1865 = vmatpush1.bf16.msra.mxu0 0
      %1866 = vmatprep.mubr.bf16.mxu0 0
      %1867 = vmatmul.mubr.bf16.gmra.mrb[0].mxu0 %v1783
      %v1868 = vpop.f32.mrb[0].mxu0
      %v1869 = vadd.f32 %v1752, %v1868
      %v1870 = vpop.f32.mrb[0].mxu0
      %v1871 = vpop.f32.mrb[0].mxu0
      %v1872 = vadd.f32 %v1752, %v1871
      %v1873 = vpop.f32.mrb[0].mxu0
      %1874 = vmatprep.mubr.bf16.mxu0 0
      %1875 = vmatmul.mubr.bf16.gmra.mrb[0].mxu0 %v1786
      %v1876 = vpop.f32.mrb[0].mxu0
      %v1877 = vadd.f32 %v1752, %v1876
      %v1878 = vpop.f32.mrb[0].mxu0
      %v1879 = vpop.f32.mrb[0].mxu0
      %v1880 = vadd.f32 %v1752, %v1879
      %v1881 = vpop.f32.mrb[0].mxu0
      %1882 = vmatprep.mubr.bf16.mxu0 0
      %1883 = vmatmul.mubr.bf16.gmra.mrb[0].mxu0 %v1789
      %v1884 = vpop.f32.mrb[0].mxu0
      %v1885 = vadd.f32 %v1752, %v1884
      %v1886 = vpop.f32.mrb[0].mxu0
      %v1887 = vpop.f32.mrb[0].mxu0
      %v1888 = vadd.f32 %v1752, %v1887
      %v1889 = vpop.f32.mrb[0].mxu0
      %1890 = vmatprep.mubr.bf16.mxu0 0
      %1891 = vmatmul.mubr.bf16.gmra.mrb[0].mxu0 %v1792
      %v1892 = vpop.f32.mrb[0].mxu0
      %v1893 = vadd.f32 %v1752, %v1892
      %v1894 = vpop.f32.mrb[0].mxu0
      %v1895 = vpop.f32.mrb[0].mxu0
      %v1896 = vadd.f32 %v1752, %v1895
      %v1897 = vpop.f32.mrb[0].mxu0
      %1898 = vmatprep.mubr.bf16.mxu0 0
      %1899 = vmatmul.mubr.bf16.gmra.mrb[0].mxu0 %v1795
      %v1900 = vpop.f32.mrb[0].mxu0
      %v1901 = vadd.f32 %v1752, %v1900
      %v1902 = vpop.f32.mrb[0].mxu0
      %v1903 = vpop.f32.mrb[0].mxu0
      %v1904 = vadd.f32 %v1752, %v1903
      %v1905 = vpop.f32.mrb[0].mxu0
      %1906 = vmatprep.mubr.bf16.mxu0 0
      %1907 = vmatmul.mubr.bf16.gmra.mrb[0].mxu0 %v1798
      %v1908 = vpop.f32.mrb[0].mxu0
      %v1909 = vadd.f32 %v1752, %v1908
      %v1910 = vpop.f32.mrb[0].mxu0
      %v1911 = vpop.f32.mrb[0].mxu0
      %v1912 = vadd.f32 %v1752, %v1911
      %v1913 = vpop.f32.mrb[0].mxu0
      %1914 = vmatprep.mubr.bf16.mxu0 0
      %1915 = vmatmul.mubr.bf16.gmra.mrb[0].mxu0 %v1801
      %v1916 = vpop.f32.mrb[0].mxu0
      %v1917 = vadd.f32 %v1752, %v1916
      %v1918 = vpop.f32.mrb[0].mxu0
      %v1919 = vpop.f32.mrb[0].mxu0
      %v1920 = vadd.f32 %v1752, %v1919
      %v1921 = vpop.f32.mrb[0].mxu0
      %1922 = vmatprep.mubr.bf16.mxu0 0
      %1923 = vmatmul.mubr.bf16.gmra.mrb[0].mxu0 %v1804
      %v1924 = vpop.f32.mrb[0].mxu0
      %v1925 = vadd.f32 %v1752, %v1924
      %v1926 = vpop.f32.mrb[0].mxu0
      %v1927 = vpop.f32.mrb[0].mxu0
      %v1928 = vadd.f32 %v1752, %v1927
      %v1929 = vpop.f32.mrb[0].mxu0
      %1930 = vmatprep.mubr.bf16.mxu0 0
      %1931 = vmatmul.mubr.bf16.gmra.mrb[0].mxu0 %v1807
      %v1932 = vpop.f32.mrb[0].mxu0
      %v1933 = vadd.f32 %v1752, %v1932
      %v1934 = vpop.f32.mrb[0].mxu0
      %v1935 = vpop.f32.mrb[0].mxu0
      %v1936 = vadd.f32 %v1752, %v1935
      %v1937 = vpop.f32.mrb[0].mxu0
      %1938 = vmatprep.mubr.bf16.mxu0 0
      %1939 = vmatmul.mubr.bf16.gmra.mrb[0].mxu0 %v1810
      %v1940 = vpop.f32.mrb[0].mxu0
      %v1941 = vadd.f32 %v1752, %v1940
      %v1942 = vpop.f32.mrb[0].mxu0
      %v1943 = vpop.f32.mrb[0].mxu0
      %v1944 = vadd.f32 %v1752, %v1943
      %v1945 = vpop.f32.mrb[0].mxu0
      %1946 = vmatprep.mubr.bf16.mxu0 0
      %1947 = vmatmul.mubr.bf16.gmra.mrb[0].mxu0 %v1813
      %v1948 = vpop.f32.mrb[0].mxu0
      %v1949 = vadd.f32 %v1752, %v1948
      %v1950 = vpop.f32.mrb[0].mxu0
      %v1951 = vpop.f32.mrb[0].mxu0
      %v1952 = vadd.f32 %v1752, %v1951
      %v1953 = vpop.f32.mrb[0].mxu0
      %1954 = vmatprep.mubr.bf16.mxu0 0
      %1955 = vmatmul.mubr.bf16.gmra.mrb[0].mxu0 %v1816
      %v1956 = vpop.f32.mrb[0].mxu0
      %v1957 = vadd.f32 %v1752, %v1956
      %v1958 = vpop.f32.mrb[0].mxu0
      %v1959 = vpop.f32.mrb[0].mxu0
      %v1960 = vadd.f32 %v1752, %v1959
      %v1961 = vpop.f32.mrb[0].mxu0
      %1962 = vmatprep.mubr.bf16.mxu0 0
      %1963 = vmatmul.mubr.bf16.gmra.mrb[0].mxu0 %v1819
      %v1964 = vpop.f32.mrb[0].mxu0
      %v1965 = vadd.f32 %v1752, %v1964
      %v1966 = vpop.f32.mrb[0].mxu0
      %v1967 = vpop.f32.mrb[0].mxu0
      %v1968 = vadd.f32 %v1752, %v1967
      %v1969 = vpop.f32.mrb[0].mxu0
      %1970 = vmatprep.mubr.bf16.mxu0 0
      %1971 = vmatmul.mubr.bf16.gmra.mrb[0].mxu0 %v1822
      %v1972 = vpop.f32.mrb[0].mxu0
      %v1973 = vadd.f32 %v1752, %v1972
      %v1974 = vpop.f32.mrb[0].mxu0
      %v1975 = vpop.f32.mrb[0].mxu0
      %v1976 = vadd.f32 %v1752, %v1975
      %v1977 = vpop.f32.mrb[0].mxu0
      %1978 = vmatprep.mubr.bf16.mxu0 0
      %1979 = vmatmul.mubr.bf16.gmra.mrb[0].mxu0 %v1825
      %v1980 = vpop.f32.mrb[0].mxu0
      %v1981 = vadd.f32 %v1752, %v1980
      %v1982 = vpop.f32.mrb[0].mxu0
      %v1983 = vpop.f32.mrb[0].mxu0
      %v1984 = vadd.f32 %v1752, %v1983
      %v1985 = vpop.f32.mrb[0].mxu0
      %1986 = vmatprep.mubr.bf16.mxu0 0
      %1987 = vmatmul.mubr.bf16.gmra.mrb[0].mxu0 %v1828
      %v1988 = vpop.f32.mrb[0].mxu0
      %v1989 = vadd.f32 %v1752, %v1988
      %v1990 = vpop.f32.mrb[0].mxu0
      %v1991 = vpop.f32.mrb[0].mxu0
      %v1992 = vadd.f32 %v1752, %v1991
      %v1993 = vpop.f32.mrb[0].mxu0
      %1994 = vdwg.mxu0
      %v1995 = vmax.f32 %v1869, 0.0
      %v1996 = vmax.f32 %v1872, 0.0
      %v1997 = vmax.f32 %v1877, 0.0
      %v1998 = vmax.f32 %v1880, 0.0
      %v1999 = vmax.f32 %v1885, 0.0
      %v2000 = vmax.f32 %v1888, 0.0
      %v2001 = vmax.f32 %v1893, 0.0
      %v2002 = vmax.f32 %v1896, 0.0
      %v2003 = vmax.f32 %v1901, 0.0
      %v2004 = vmax.f32 %v1904, 0.0
      %v2005 = vmax.f32 %v1909, 0.0
      %v2006 = vmax.f32 %v1912, 0.0
      %v2007 = vmax.f32 %v1917, 0.0
      %v2008 = vmax.f32 %v1920, 0.0
      %v2009 = vmax.f32 %v1925, 0.0
      %v2010 = vmax.f32 %v1928, 0.0
      %v2011 = vmax.f32 %v1933, 0.0
      %v2012 = vmax.f32 %v1936, 0.0
      %v2013 = vmax.f32 %v1941, 0.0
      %v2014 = vmax.f32 %v1944, 0.0
      %v2015 = vmax.f32 %v1949, 0.0
      %v2016 = vmax.f32 %v1952, 0.0
      %v2017 = vmax.f32 %v1957, 0.0
      %v2018 = vmax.f32 %v1960, 0.0
      %v2019 = vmax.f32 %v1965, 0.0
      %v2020 = vmax.f32 %v1968, 0.0
      %v2021 = vmax.f32 %v1973, 0.0
      %v2022 = vmax.f32 %v1976, 0.0
      %v2023 = vmax.f32 %v1981, 0.0
      %v2024 = vmax.f32 %v1984, 0.0
      %v2025 = vmax.f32 %v1989, 0.0
      %v2026 = vmax.f32 %v1992, 0.0
      %2027 = vst.msk [vmem:[#allocation3] sm:$0xff] %vm1491, 0.0
      %2028 = vst.msk [vmem:[#allocation3 + $0x8] sm:$0xff] %vm1491, 0.0
      %vm2029 = vcmask 123904
      %2030 = vst.msk [vmem:[#allocation3 + $0x10] sm:$0x3] %vm2029, 0.0
      %2031 = vst.msk [vmem:[#allocation3 + $0x18] sm:$0xff] %vm1491, 0.0
      %2032 = vst.msk [vmem:[#allocation3 + $0x20] sm:$0xff] %vm1491, 0.0
      %2033 = vst.msk [vmem:[#allocation3 + $0x28] sm:$0x3] %vm2029, 0.0
      %2034 = vst.msk [vmem:[#allocation3 + $0x30] sm:$0xff] %vm1491, 0.0
      %2035 = vst.msk [vmem:[#allocation3 + $0x38] sm:$0xff] %vm1491, 0.0
      %2036 = vst.msk [vmem:[#allocation3 + $0x40] sm:$0x3] %vm2029, 0.0
      %2037 = vst.msk [vmem:[#allocation3 + $0x48] sm:$0xff] %vm1491, 0.0
      %2038 = vst.msk [vmem:[#allocation3 + $0x50] sm:$0xff] %vm1491, 0.0
      %2039 = vst.msk [vmem:[#allocation3 + $0x58] sm:$0x3] %vm2029, 0.0
      %2040 = vst.msk [vmem:[#allocation3 + $0x60] sm:$0xff] %vm1491, 0.0
      %2041 = vst.msk [vmem:[#allocation3 + $0x68] sm:$0xff] %vm1491, 0.0
      %2042 = vst.msk [vmem:[#allocation3 + $0x70] sm:$0x3] %vm2029, 0.0
      %2043 = vst.msk [vmem:[#allocation3 + $0x78] sm:$0xff] %vm1491, 0.0
      %2044 = vst.msk [vmem:[#allocation3 + $0x80] sm:$0xff] %vm1491, 0.0
      %2045 = vst.msk [vmem:[#allocation3 + $0x88] sm:$0x3] %vm2029, 0.0
      %2046 = vst.msk [vmem:[#allocation3 + $0x90] sm:$0xff] %vm1491, 0.0
      %2047 = vst.msk [vmem:[#allocation3 + $0x98] sm:$0xff] %vm1491, 0.0
      %2048 = vst.msk [vmem:[#allocation3 + $0xa0] sm:$0x3] %vm2029, 0.0
      %2049 = vst.msk [vmem:[#allocation3 + $0xa8] sm:$0xff] %vm1491, 0.0
      %2050 = vst.msk [vmem:[#allocation3 + $0xb0] sm:$0xff] %vm1491, 0.0
      %2051 = vst.msk [vmem:[#allocation3 + $0xb8] sm:$0x3] %vm2029, 0.0
      %2052 = vst.msk [vmem:[#allocation3 + $0xc0] sm:$0xff] %vm1491, 0.0
      %2053 = vst.msk [vmem:[#allocation3 + $0xc8] sm:$0xff] %vm1491, 0.0
      %2054 = vst.msk [vmem:[#allocation3 + $0xd0] sm:$0x3] %vm2029, 0.0
      %2055 = vst.msk [vmem:[#allocation3 + $0xd8] sm:$0xff] %vm1491, 0.0
      %2056 = vst.msk [vmem:[#allocation3 + $0xe0] sm:$0xff] %vm1491, 0.0
      %2057 = vst.msk [vmem:[#allocation3 + $0xe8] sm:$0x3] %vm2029, 0.0
      %2058 = vst.msk [vmem:[#allocation3 + $0xf0] sm:$0xff] %vm1491, 0.0
      %2059 = vst.msk [vmem:[#allocation3 + $0xf8] sm:$0xff] %vm1491, 0.0
      %2060 = vst.msk [vmem:[#allocation3 + $0x100] sm:$0x3] %vm2029, 0.0
      %2061 = vst.msk [vmem:[#allocation3 + $0x108] sm:$0xff] %vm1491, 0.0
      %2062 = vst.msk [vmem:[#allocation3 + $0x110] sm:$0xff] %vm1491, 0.0
      %2063 = vst.msk [vmem:[#allocation3 + $0x118] sm:$0x3] %vm2029, 0.0
      %2064 = vst.msk [vmem:[#allocation3 + $0x120] sm:$0xff] %vm1491, 0.0
      %2065 = vst.msk [vmem:[#allocation3 + $0x128] sm:$0xff] %vm1491, 0.0
      %2066 = vst.msk [vmem:[#allocation3 + $0x130] sm:$0x3] %vm2029, 0.0
      %2067 = vst.msk [vmem:[#allocation3 + $0x138] sm:$0xff] %vm1491, 0.0
      %2068 = vst.msk [vmem:[#allocation3 + $0x140] sm:$0xff] %vm1491, 0.0
      %2069 = vst.msk [vmem:[#allocation3 + $0x148] sm:$0x3] %vm2029, 0.0
      %2070 = vst.msk [vmem:[#allocation3 + $0x150] sm:$0xff] %vm1491, 0.0
      %2071 = vst.msk [vmem:[#allocation3 + $0x158] sm:$0xff] %vm1491, 0.0
      %2072 = vst.msk [vmem:[#allocation3 + $0x160] sm:$0x3] %vm2029, 0.0
      %2073 = vst.msk [vmem:[#allocation3 + $0x168] sm:$0xff] %vm1491, 0.0
      %2074 = vst.msk [vmem:[#allocation3 + $0x170] sm:$0xff] %vm1491, 0.0
      %2075 = vst.msk [vmem:[#allocation3 + $0x178] sm:$0x3] %vm2029, 0.0
      %2076 = vst.msk [vmem:[#allocation3 + $0x180] sm:$0xff] %vm1491, 0.0
      %2077 = vst.msk [vmem:[#allocation3 + $0x188] sm:$0xff] %vm1491, 0.0
      %2078 = vst.msk [vmem:[#allocation3 + $0x190] sm:$0x3] %vm2029, 0.0
      %2079 = vst.msk [vmem:[#allocation3 + $0x198] sm:$0xff] %vm1491, 0.0
      %2080 = vst.msk [vmem:[#allocation3 + $0x1a0] sm:$0xff] %vm1491, 0.0
      %2081 = vst.msk [vmem:[#allocation3 + $0x1a8] sm:$0x3] %vm2029, 0.0
      %s2082 = scalar_lea.vmem [#allocation3], 24
      %2083 = vst.msk [vmem:[%s2082 + $0x1] sm:$0xff] %vm1491, %v1995
      %2084 = vst.msk [vmem:[%s2082 + $0x9] sm:$0xff] %vm1491, %v1996
      %2085 = vst.msk [vmem:[%s2082 + $0x19] sm:$0xff] %vm1491, %v1997
      %2086 = vst.msk [vmem:[%s2082 + $0x21] sm:$0xff] %vm1491, %v1998
      %2087 = vst.msk [vmem:[%s2082 + $0x31] sm:$0xff] %vm1491, %v1999
      %2088 = vst.msk [vmem:[%s2082 + $0x39] sm:$0xff] %vm1491, %v2000
      %2089 = vst.msk [vmem:[%s2082 + $0x49] sm:$0xff] %vm1491, %v2001
      %2090 = vst.msk [vmem:[%s2082 + $0x51] sm:$0xff] %vm1491, %v2002
      %2091 = vst.msk [vmem:[%s2082 + $0x61] sm:$0xff] %vm1491, %v2003
      %2092 = vst.msk [vmem:[%s2082 + $0x69] sm:$0xff] %vm1491, %v2004
      %2093 = vst.msk [vmem:[%s2082 + $0x79] sm:$0xff] %vm1491, %v2005
      %2094 = vst.msk [vmem:[%s2082 + $0x81] sm:$0xff] %vm1491, %v2006
      %2095 = vst.msk [vmem:[%s2082 + $0x91] sm:$0xff] %vm1491, %v2007
      %2096 = vst.msk [vmem:[%s2082 + $0x99] sm:$0xff] %vm1491, %v2008
      %2097 = vst.msk [vmem:[%s2082 + $0xa9] sm:$0xff] %vm1491, %v2009
      %2098 = vst.msk [vmem:[%s2082 + $0xb1] sm:$0xff] %vm1491, %v2010
      %2099 = vst.msk [vmem:[%s2082 + $0xc1] sm:$0xff] %vm1491, %v2011
      %2100 = vst.msk [vmem:[%s2082 + $0xc9] sm:$0xff] %vm1491, %v2012
      %2101 = vst.msk [vmem:[%s2082 + $0xd9] sm:$0xff] %vm1491, %v2013
      %2102 = vst.msk [vmem:[%s2082 + $0xe1] sm:$0xff] %vm1491, %v2014
      %2103 = vst.msk [vmem:[%s2082 + $0xf1] sm:$0xff] %vm1491, %v2015
      %2104 = vst.msk [vmem:[%s2082 + $0xf9] sm:$0xff] %vm1491, %v2016
      %2105 = vst.msk [vmem:[%s2082 + $0x109] sm:$0xff] %vm1491, %v2017
      %2106 = vst.msk [vmem:[%s2082 + $0x111] sm:$0xff] %vm1491, %v2018
      %2107 = vst.msk [vmem:[%s2082 + $0x121] sm:$0xff] %vm1491, %v2019
      %2108 = vst.msk [vmem:[%s2082 + $0x129] sm:$0xff] %vm1491, %v2020
      %2109 = vst.msk [vmem:[%s2082 + $0x139] sm:$0xff] %vm1491, %v2021
      %2110 = vst.msk [vmem:[%s2082 + $0x141] sm:$0xff] %vm1491, %v2022
      %2111 = vst.msk [vmem:[%s2082 + $0x151] sm:$0xff] %vm1491, %v2023
      %2112 = vst.msk [vmem:[%s2082 + $0x159] sm:$0xff] %vm1491, %v2024
      %2113 = vst.msk [vmem:[%s2082 + $0x169] sm:$0xff] %vm1491, %v2025
      %2114 = vst.msk [vmem:[%s2082 + $0x171] sm:$0xff] %vm1491, %v2026
      %v2115 = vld [vmem:[#allocation3] sm:$0xff]
      %v2116 = vld [vmem:[#allocation3 + $0x8] sm:$0xff]
      %v2117 = vld [vmem:[#allocation3 + $0x10] sm:$0x3]
      %v2118 = vld [vmem:[#allocation3 + $0x18] sm:$0xff]
      %v2119 = vld [vmem:[#allocation3 + $0x20] sm:$0xff]
      %v2120 = vld [vmem:[#allocation3 + $0x28] sm:$0x3]
      %v2121 = vld [vmem:[#allocation3 + $0x30] sm:$0xff]
      %v2122 = vld [vmem:[#allocation3 + $0x38] sm:$0xff]
      %v2123 = vld [vmem:[#allocation3 + $0x40] sm:$0x3]
      %v2124 = vld [vmem:[#allocation3 + $0x48] sm:$0xff]
      %v2125 = vld [vmem:[#allocation3 + $0x50] sm:$0xff]
      %v2126 = vld [vmem:[#allocation3 + $0x58] sm:$0x3]
      %v2127 = vld [vmem:[#allocation3 + $0x60] sm:$0xff]
      %v2128 = vld [vmem:[#allocation3 + $0x68] sm:$0xff]
      %v2129 = vld [vmem:[#allocation3 + $0x70] sm:$0x3]
      %v2130 = vld [vmem:[#allocation3 + $0x78] sm:$0xff]
      %v2131 = vld [vmem:[#allocation3 + $0x80] sm:$0xff]
      %v2132 = vld [vmem:[#allocation3 + $0x88] sm:$0x3]
      %v2133 = vld [vmem:[#allocation3 + $0x90] sm:$0xff]
      %v2134 = vld [vmem:[#allocation3 + $0x98] sm:$0xff]
      %v2135 = vld [vmem:[#allocation3 + $0xa0] sm:$0x3]
      %v2136 = vld [vmem:[#allocation3 + $0xa8] sm:$0xff]
      %v2137 = vld [vmem:[#allocation3 + $0xb0] sm:$0xff]
      %v2138 = vld [vmem:[#allocation3 + $0xb8] sm:$0x3]
      %v2139 = vld [vmem:[#allocation3 + $0xc0] sm:$0xff]
      %v2140 = vld [vmem:[#allocation3 + $0xc8] sm:$0xff]
      %v2141 = vld [vmem:[#allocation3 + $0xd0] sm:$0x3]
      %v2142 = vld [vmem:[#allocation3 + $0xd8] sm:$0xff]
      %v2143 = vld [vmem:[#allocation3 + $0xe0] sm:$0xff]
      %v2144 = vld [vmem:[#allocation3 + $0xe8] sm:$0x3]
      %v2145 = vld [vmem:[#allocation3 + $0xf0] sm:$0xff]
      %v2146 = vld [vmem:[#allocation3 + $0xf8] sm:$0xff]
      %v2147 = vld [vmem:[#allocation3 + $0x100] sm:$0x3]
      %v2148 = vld [vmem:[#allocation3 + $0x108] sm:$0xff]
      %v2149 = vld [vmem:[#allocation3 + $0x110] sm:$0xff]
      %v2150 = vld [vmem:[#allocation3 + $0x118] sm:$0x3]
      %v2151 = vld [vmem:[#allocation3 + $0x120] sm:$0xff]
      %v2152 = vld [vmem:[#allocation3 + $0x128] sm:$0xff]
      %v2153 = vld [vmem:[#allocation3 + $0x130] sm:$0x3]
      %v2154 = vld [vmem:[#allocation3 + $0x138] sm:$0xff]
      %v2155 = vld [vmem:[#allocation3 + $0x140] sm:$0xff]
      %v2156 = vld [vmem:[#allocation3 + $0x148] sm:$0x3]
      %v2157 = vld [vmem:[#allocation3 + $0x150] sm:$0xff]
      %v2158 = vld [vmem:[#allocation3 + $0x158] sm:$0xff]
      %v2159 = vld [vmem:[#allocation3 + $0x160] sm:$0x3]
      %v2160 = vld [vmem:[#allocation3 + $0x168] sm:$0xff]
      %v2161 = vld [vmem:[#allocation3 + $0x170] sm:$0xff]
      %v2162 = vld [vmem:[#allocation3 + $0x178] sm:$0x3]
      %v2163 = vld [vmem:[#allocation3 + $0x180] sm:$0xff]
      %v2164 = vld [vmem:[#allocation3 + $0x188] sm:$0xff]
      %v2165 = vld [vmem:[#allocation3 + $0x190] sm:$0x3]
      %v2166 = vld [vmem:[#allocation3 + $0x198] sm:$0xff]
      %v2167 = vld [vmem:[#allocation3 + $0x1a0] sm:$0xff]
      %v2168 = vld [vmem:[#allocation3 + $0x1a8] sm:$0x3]
      %v2217 = vrot.slane %v2115, 1
      %v2218 = vrot.slane %v2116, 1
      %v2219 = vsel %vm503, %v2217, %v2218
      %v2220 = vrot.slane %v2117, 1
      %v2221 = vsel %vm503, %v2218, %v2220
      %v2222 = vrot.slane %v2118, 1
      %v2223 = vrot.slane %v2119, 1
      %v2224 = vsel %vm503, %v2222, %v2223
      %v2225 = vrot.slane %v2120, 1
      %v2226 = vsel %vm503, %v2223, %v2225
      %v2227 = vrot.slane %v2121, 1
      %v2228 = vrot.slane %v2122, 1
      %v2229 = vsel %vm503, %v2227, %v2228
      %v2230 = vrot.slane %v2123, 1
      %v2231 = vsel %vm503, %v2228, %v2230
      %v2232 = vrot.slane %v2124, 1
      %v2233 = vrot.slane %v2125, 1
      %v2234 = vsel %vm503, %v2232, %v2233
      %v2235 = vrot.slane %v2126, 1
      %v2236 = vsel %vm503, %v2233, %v2235
      %v2237 = vrot.slane %v2127, 1
      %v2238 = vrot.slane %v2128, 1
      %v2239 = vsel %vm503, %v2237, %v2238
      %v2240 = vrot.slane %v2129, 1
      %v2241 = vsel %vm503, %v2238, %v2240
      %v2242 = vrot.slane %v2130, 1
      %v2243 = vrot.slane %v2131, 1
      %v2244 = vsel %vm503, %v2242, %v2243
      %v2245 = vrot.slane %v2132, 1
      %v2246 = vsel %vm503, %v2243, %v2245
      %v2247 = vrot.slane %v2133, 1
      %v2248 = vrot.slane %v2134, 1
      %v2249 = vsel %vm503, %v2247, %v2248
      %v2250 = vrot.slane %v2135, 1
      %v2251 = vsel %vm503, %v2248, %v2250
      %v2252 = vrot.slane %v2136, 1
      %v2253 = vrot.slane %v2137, 1
      %v2254 = vsel %vm503, %v2252, %v2253
      %v2255 = vrot.slane %v2138, 1
      %v2256 = vsel %vm503, %v2253, %v2255
      %v2257 = vrot.slane %v2139, 1
      %v2258 = vrot.slane %v2140, 1
      %v2259 = vsel %vm503, %v2257, %v2258
      %v2260 = vrot.slane %v2141, 1
      %v2261 = vsel %vm503, %v2258, %v2260
      %v2262 = vrot.slane %v2142, 1
      %v2263 = vrot.slane %v2143, 1
      %v2264 = vsel %vm503, %v2262, %v2263
      %v2265 = vrot.slane %v2144, 1
      %v2266 = vsel %vm503, %v2263, %v2265
      %v2267 = vrot.slane %v2145, 1
      %v2268 = vrot.slane %v2146, 1
      %v2269 = vsel %vm503, %v2267, %v2268
      %v2270 = vrot.slane %v2147, 1
      %v2271 = vsel %vm503, %v2268, %v2270
      %v2272 = vrot.slane %v2148, 1
      %v2273 = vrot.slane %v2149, 1
      %v2274 = vsel %vm503, %v2272, %v2273
      %v2275 = vrot.slane %v2150, 1
      %v2276 = vsel %vm503, %v2273, %v2275
      %v2277 = vrot.slane %v2151, 1
      %v2278 = vrot.slane %v2152, 1
      %v2279 = vsel %vm503, %v2277, %v2278
      %v2280 = vrot.slane %v2153, 1
      %v2281 = vsel %vm503, %v2278, %v2280
      %v2282 = vrot.slane %v2154, 1
      %v2283 = vrot.slane %v2155, 1
      %v2284 = vsel %vm503, %v2282, %v2283
      %v2285 = vrot.slane %v2156, 1
      %v2286 = vsel %vm503, %v2283, %v2285
      %v2287 = vrot.slane %v2157, 1
      %v2288 = vrot.slane %v2158, 1
      %v2289 = vsel %vm503, %v2287, %v2288
      %v2290 = vrot.slane %v2159, 1
      %v2291 = vsel %vm503, %v2288, %v2290
      %v2292 = vrot.slane %v2160, 1
      %v2293 = vrot.slane %v2161, 1
      %v2294 = vsel %vm503, %v2292, %v2293
      %v2295 = vrot.slane %v2162, 1
      %v2296 = vsel %vm503, %v2293, %v2295
      %2297 = vrot.lane.b32.xlu0 %v2219, 16
      %v2298 = vpop.permute.xlu0 %2297
      %2299 = vrot.lane.b32.xlu0 %v2221, 16
      %v2300 = vpop.permute.xlu0 %2299
      %2301 = vrot.lane.b32.xlu0 %v2224, 16
      %v2302 = vpop.permute.xlu0 %2301
      %2303 = vrot.lane.b32.xlu0 %v2226, 16
      %v2304 = vpop.permute.xlu0 %2303
      %2305 = vrot.lane.b32.xlu0 %v2229, 16
      %v2306 = vpop.permute.xlu0 %2305
      %2307 = vrot.lane.b32.xlu0 %v2231, 16
      %v2308 = vpop.permute.xlu0 %2307
      %2309 = vrot.lane.b32.xlu0 %v2234, 16
      %v2310 = vpop.permute.xlu0 %2309
      %2311 = vrot.lane.b32.xlu0 %v2236, 16
      %v2312 = vpop.permute.xlu0 %2311
      %2313 = vrot.lane.b32.xlu0 %v2239, 16
      %v2314 = vpop.permute.xlu0 %2313
      %2315 = vrot.lane.b32.xlu0 %v2241, 16
      %v2316 = vpop.permute.xlu0 %2315
      %2317 = vrot.lane.b32.xlu0 %v2244, 16
      %v2318 = vpop.permute.xlu0 %2317
      %2319 = vrot.lane.b32.xlu0 %v2246, 16
      %v2320 = vpop.permute.xlu0 %2319
      %2321 = vrot.lane.b32.xlu0 %v2249, 16
      %v2322 = vpop.permute.xlu0 %2321
      %2323 = vrot.lane.b32.xlu0 %v2251, 16
      %v2324 = vpop.permute.xlu0 %2323
      %2325 = vrot.lane.b32.xlu0 %v2254, 16
      %v2326 = vpop.permute.xlu0 %2325
      %2327 = vrot.lane.b32.xlu0 %v2256, 16
      %v2328 = vpop.permute.xlu0 %2327
      %2329 = vrot.lane.b32.xlu0 %v2259, 16
      %v2330 = vpop.permute.xlu0 %2329
      %2331 = vrot.lane.b32.xlu0 %v2261, 16
      %v2332 = vpop.permute.xlu0 %2331
      %2333 = vrot.lane.b32.xlu0 %v2264, 16
      %v2334 = vpop.permute.xlu0 %2333
      %2335 = vrot.lane.b32.xlu0 %v2266, 16
      %v2336 = vpop.permute.xlu0 %2335
      %2337 = vrot.lane.b32.xlu0 %v2269, 16
      %v2338 = vpop.permute.xlu0 %2337
      %2339 = vrot.lane.b32.xlu0 %v2271, 16
      %v2340 = vpop.permute.xlu0 %2339
      %2341 = vrot.lane.b32.xlu0 %v2274, 16
      %v2342 = vpop.permute.xlu0 %2341
      %2343 = vrot.lane.b32.xlu0 %v2276, 16
      %v2344 = vpop.permute.xlu0 %2343
      %2345 = vrot.lane.b32.xlu0 %v2279, 16
      %v2346 = vpop.permute.xlu0 %2345
      %2347 = vrot.lane.b32.xlu0 %v2281, 16
      %v2348 = vpop.permute.xlu0 %2347
      %2349 = vrot.lane.b32.xlu0 %v2284, 16
      %v2350 = vpop.permute.xlu0 %2349
      %2351 = vrot.lane.b32.xlu0 %v2286, 16
      %v2352 = vpop.permute.xlu0 %2351
      %2353 = vrot.lane.b32.xlu0 %v2289, 16
      %v2354 = vpop.permute.xlu0 %2353
      %2355 = vrot.lane.b32.xlu0 %v2291, 16
      %v2356 = vpop.permute.xlu0 %2355
      %2357 = vrot.lane.b32.xlu0 %v2294, 16
      %v2358 = vpop.permute.xlu0 %2357
      %2359 = vrot.lane.b32.xlu0 %v2296, 16
      %v2360 = vpop.permute.xlu0 %2359
      %v2393 = vrot.slane %v2115, 2
      %v2394 = vrot.slane %v2116, 2
      %v2395 = vsel %vm680, %v2393, %v2394
      %v2396 = vrot.slane %v2117, 2
      %v2397 = vsel %vm680, %v2394, %v2396
      %v2398 = vrot.slane %v2118, 2
      %v2399 = vrot.slane %v2119, 2
      %v2400 = vsel %vm680, %v2398, %v2399
      %v2401 = vrot.slane %v2120, 2
      %v2402 = vsel %vm680, %v2399, %v2401
      %v2403 = vrot.slane %v2121, 2
      %v2404 = vrot.slane %v2122, 2
      %v2405 = vsel %vm680, %v2403, %v2404
      %v2406 = vrot.slane %v2123, 2
      %v2407 = vsel %vm680, %v2404, %v2406
      %v2408 = vrot.slane %v2124, 2
      %v2409 = vrot.slane %v2125, 2
      %v2410 = vsel %vm680, %v2408, %v2409
      %v2411 = vrot.slane %v2126, 2
      %v2412 = vsel %vm680, %v2409, %v2411
      %v2413 = vrot.slane %v2127, 2
      %v2414 = vrot.slane %v2128, 2
      %v2415 = vsel %vm680, %v2413, %v2414
      %v2416 = vrot.slane %v2129, 2
      %v2417 = vsel %vm680, %v2414, %v2416
      %v2418 = vrot.slane %v2130, 2
      %v2419 = vrot.slane %v2131, 2
      %v2420 = vsel %vm680, %v2418, %v2419
      %v2421 = vrot.slane %v2132, 2
      %v2422 = vsel %vm680, %v2419, %v2421
      %v2423 = vrot.slane %v2133, 2
      %v2424 = vrot.slane %v2134, 2
      %v2425 = vsel %vm680, %v2423, %v2424
      %v2426 = vrot.slane %v2135, 2
      %v2427 = vsel %vm680, %v2424, %v2426
      %v2428 = vrot.slane %v2136, 2
      %v2429 = vrot.slane %v2137, 2
      %v2430 = vsel %vm680, %v2428, %v2429
      %v2431 = vrot.slane %v2138, 2
      %v2432 = vsel %vm680, %v2429, %v2431
      %v2433 = vrot.slane %v2139, 2
      %v2434 = vrot.slane %v2140, 2
      %v2435 = vsel %vm680, %v2433, %v2434
      %v2436 = vrot.slane %v2141, 2
      %v2437 = vsel %vm680, %v2434, %v2436
      %v2438 = vrot.slane %v2142, 2
      %v2439 = vrot.slane %v2143, 2
      %v2440 = vsel %vm680, %v2438, %v2439
      %v2441 = vrot.slane %v2144, 2
      %v2442 = vsel %vm680, %v2439, %v2441
      %v2443 = vrot.slane %v2145, 2
      %v2444 = vrot.slane %v2146, 2
      %v2445 = vsel %vm680, %v2443, %v2444
      %v2446 = vrot.slane %v2147, 2
      %v2447 = vsel %vm680, %v2444, %v2446
      %v2448 = vrot.slane %v2148, 2
      %v2449 = vrot.slane %v2149, 2
      %v2450 = vsel %vm680, %v2448, %v2449
      %v2451 = vrot.slane %v2150, 2
      %v2452 = vsel %vm680, %v2449, %v2451
      %v2453 = vrot.slane %v2151, 2
      %v2454 = vrot.slane %v2152, 2
      %v2455 = vsel %vm680, %v2453, %v2454
      %v2456 = vrot.slane %v2153, 2
      %v2457 = vsel %vm680, %v2454, %v2456
      %v2458 = vrot.slane %v2154, 2
      %v2459 = vrot.slane %v2155, 2
      %v2460 = vsel %vm680, %v2458, %v2459
      %v2461 = vrot.slane %v2156, 2
      %v2462 = vsel %vm680, %v2459, %v2461
      %v2463 = vrot.slane %v2157, 2
      %v2464 = vrot.slane %v2158, 2
      %v2465 = vsel %vm680, %v2463, %v2464
      %v2466 = vrot.slane %v2159, 2
      %v2467 = vsel %vm680, %v2464, %v2466
      %v2468 = vrot.slane %v2160, 2
      %v2469 = vrot.slane %v2161, 2
      %v2470 = vsel %vm680, %v2468, %v2469
      %v2471 = vrot.slane %v2162, 2
      %v2472 = vsel %vm680, %v2469, %v2471
      %2473 = vrot.lane.b32.xlu0 %v2395, 32
      %v2474 = vpop.permute.xlu0 %2473
      %2475 = vrot.lane.b32.xlu0 %v2397, 32
      %v2476 = vpop.permute.xlu0 %2475
      %2477 = vrot.lane.b32.xlu0 %v2400, 32
      %v2478 = vpop.permute.xlu0 %2477
      %2479 = vrot.lane.b32.xlu0 %v2402, 32
      %v2480 = vpop.permute.xlu0 %2479
      %2481 = vrot.lane.b32.xlu0 %v2405, 32
      %v2482 = vpop.permute.xlu0 %2481
      %2483 = vrot.lane.b32.xlu0 %v2407, 32
      %v2484 = vpop.permute.xlu0 %2483
      %2485 = vrot.lane.b32.xlu0 %v2410, 32
      %v2486 = vpop.permute.xlu0 %2485
      %2487 = vrot.lane.b32.xlu0 %v2412, 32
      %v2488 = vpop.permute.xlu0 %2487
      %2489 = vrot.lane.b32.xlu0 %v2415, 32
      %v2490 = vpop.permute.xlu0 %2489
      %2491 = vrot.lane.b32.xlu0 %v2417, 32
      %v2492 = vpop.permute.xlu0 %2491
      %2493 = vrot.lane.b32.xlu0 %v2420, 32
      %v2494 = vpop.permute.xlu0 %2493
      %2495 = vrot.lane.b32.xlu0 %v2422, 32
      %v2496 = vpop.permute.xlu0 %2495
      %2497 = vrot.lane.b32.xlu0 %v2425, 32
      %v2498 = vpop.permute.xlu0 %2497
      %2499 = vrot.lane.b32.xlu0 %v2427, 32
      %v2500 = vpop.permute.xlu0 %2499
      %2501 = vrot.lane.b32.xlu0 %v2430, 32
      %v2502 = vpop.permute.xlu0 %2501
      %2503 = vrot.lane.b32.xlu0 %v2432, 32
      %v2504 = vpop.permute.xlu0 %2503
      %2505 = vrot.lane.b32.xlu0 %v2435, 32
      %v2506 = vpop.permute.xlu0 %2505
      %2507 = vrot.lane.b32.xlu0 %v2437, 32
      %v2508 = vpop.permute.xlu0 %2507
      %2509 = vrot.lane.b32.xlu0 %v2440, 32
      %v2510 = vpop.permute.xlu0 %2509
      %2511 = vrot.lane.b32.xlu0 %v2442, 32
      %v2512 = vpop.permute.xlu0 %2511
      %2513 = vrot.lane.b32.xlu0 %v2445, 32
      %v2514 = vpop.permute.xlu0 %2513
      %2515 = vrot.lane.b32.xlu0 %v2447, 32
      %v2516 = vpop.permute.xlu0 %2515
      %2517 = vrot.lane.b32.xlu0 %v2450, 32
      %v2518 = vpop.permute.xlu0 %2517
      %2519 = vrot.lane.b32.xlu0 %v2452, 32
      %v2520 = vpop.permute.xlu0 %2519
      %2521 = vrot.lane.b32.xlu0 %v2455, 32
      %v2522 = vpop.permute.xlu0 %2521
      %2523 = vrot.lane.b32.xlu0 %v2457, 32
      %v2524 = vpop.permute.xlu0 %2523
      %2525 = vrot.lane.b32.xlu0 %v2460, 32
      %v2526 = vpop.permute.xlu0 %2525
      %2527 = vrot.lane.b32.xlu0 %v2462, 32
      %v2528 = vpop.permute.xlu0 %2527
      %2529 = vrot.lane.b32.xlu0 %v2465, 32
      %v2530 = vpop.permute.xlu0 %2529
      %2531 = vrot.lane.b32.xlu0 %v2467, 32
      %v2532 = vpop.permute.xlu0 %2531
      %2533 = vrot.lane.b32.xlu0 %v2470, 32
      %v2534 = vpop.permute.xlu0 %2533
      %2535 = vrot.lane.b32.xlu0 %v2472, 32
      %v2536 = vpop.permute.xlu0 %2535
      %2571 = vrot.lane.b32.xlu0 %v2118, 48
      %v2572 = vpop.permute.xlu0 %2571
      %2573 = vrot.lane.b32.xlu0 %v2119, 48
      %v2574 = vpop.permute.xlu0 %2573
      %2575 = vrot.lane.b32.xlu0 %v2121, 48
      %v2576 = vpop.permute.xlu0 %2575
      %2577 = vrot.lane.b32.xlu0 %v2122, 48
      %v2578 = vpop.permute.xlu0 %2577
      %2579 = vrot.lane.b32.xlu0 %v2124, 48
      %v2580 = vpop.permute.xlu0 %2579
      %2581 = vrot.lane.b32.xlu0 %v2125, 48
      %v2582 = vpop.permute.xlu0 %2581
      %2583 = vrot.lane.b32.xlu0 %v2127, 48
      %v2584 = vpop.permute.xlu0 %2583
      %2585 = vrot.lane.b32.xlu0 %v2128, 48
      %v2586 = vpop.permute.xlu0 %2585
      %2587 = vrot.lane.b32.xlu0 %v2130, 48
      %v2588 = vpop.permute.xlu0 %2587
      %2589 = vrot.lane.b32.xlu0 %v2131, 48
      %v2590 = vpop.permute.xlu0 %2589
      %2591 = vrot.lane.b32.xlu0 %v2133, 48
      %v2592 = vpop.permute.xlu0 %2591
      %2593 = vrot.lane.b32.xlu0 %v2134, 48
      %v2594 = vpop.permute.xlu0 %2593
      %2595 = vrot.lane.b32.xlu0 %v2136, 48
      %v2596 = vpop.permute.xlu0 %2595
      %2597 = vrot.lane.b32.xlu0 %v2137, 48
      %v2598 = vpop.permute.xlu0 %2597
      %2599 = vrot.lane.b32.xlu0 %v2139, 48
      %v2600 = vpop.permute.xlu0 %2599
      %2601 = vrot.lane.b32.xlu0 %v2140, 48
      %v2602 = vpop.permute.xlu0 %2601
      %2603 = vrot.lane.b32.xlu0 %v2142, 48
      %v2604 = vpop.permute.xlu0 %2603
      %2605 = vrot.lane.b32.xlu0 %v2143, 48
      %v2606 = vpop.permute.xlu0 %2605
      %2607 = vrot.lane.b32.xlu0 %v2145, 48
      %v2608 = vpop.permute.xlu0 %2607
      %2609 = vrot.lane.b32.xlu0 %v2146, 48
      %v2610 = vpop.permute.xlu0 %2609
      %2611 = vrot.lane.b32.xlu0 %v2148, 48
      %v2612 = vpop.permute.xlu0 %2611
      %2613 = vrot.lane.b32.xlu0 %v2149, 48
      %v2614 = vpop.permute.xlu0 %2613
      %2615 = vrot.lane.b32.xlu0 %v2151, 48
      %v2616 = vpop.permute.xlu0 %2615
      %2617 = vrot.lane.b32.xlu0 %v2152, 48
      %v2618 = vpop.permute.xlu0 %2617
      %2619 = vrot.lane.b32.xlu0 %v2154, 48
      %v2620 = vpop.permute.xlu0 %2619
      %2621 = vrot.lane.b32.xlu0 %v2155, 48
      %v2622 = vpop.permute.xlu0 %2621
      %2623 = vrot.lane.b32.xlu0 %v2157, 48
      %v2624 = vpop.permute.xlu0 %2623
      %2625 = vrot.lane.b32.xlu0 %v2158, 48
      %v2626 = vpop.permute.xlu0 %2625
      %2627 = vrot.lane.b32.xlu0 %v2160, 48
      %v2628 = vpop.permute.xlu0 %2627
      %2629 = vrot.lane.b32.xlu0 %v2161, 48
      %v2630 = vpop.permute.xlu0 %2629
      %2631 = vrot.lane.b32.xlu0 %v2163, 48
      %v2632 = vpop.permute.xlu0 %2631
      %2633 = vrot.lane.b32.xlu0 %v2164, 48
      %v2634 = vpop.permute.xlu0 %2633
      %v2668 = vrot.slane %v2163, 1
      %v2669 = vrot.slane %v2164, 1
      %v2670 = vsel %vm503, %v2668, %v2669
      %v2671 = vrot.slane %v2165, 1
      %v2672 = vsel %vm503, %v2669, %v2671
      %2673 = vrot.lane.b32.xlu0 %v2224, 64
      %v2674 = vpop.permute.xlu0 %2673
      %2675 = vrot.lane.b32.xlu0 %v2226, 64
      %v2676 = vpop.permute.xlu0 %2675
      %2677 = vrot.lane.b32.xlu0 %v2229, 64
      %v2678 = vpop.permute.xlu0 %2677
      %2679 = vrot.lane.b32.xlu0 %v2231, 64
      %v2680 = vpop.permute.xlu0 %2679
      %2681 = vrot.lane.b32.xlu0 %v2234, 64
      %v2682 = vpop.permute.xlu0 %2681
      %2683 = vrot.lane.b32.xlu0 %v2236, 64
      %v2684 = vpop.permute.xlu0 %2683
      %2685 = vrot.lane.b32.xlu0 %v2239, 64
      %v2686 = vpop.permute.xlu0 %2685
      %2687 = vrot.lane.b32.xlu0 %v2241, 64
      %v2688 = vpop.permute.xlu0 %2687
      %2689 = vrot.lane.b32.xlu0 %v2244, 64
      %v2690 = vpop.permute.xlu0 %2689
      %2691 = vrot.lane.b32.xlu0 %v2246, 64
      %v2692 = vpop.permute.xlu0 %2691
      %2693 = vrot.lane.b32.xlu0 %v2249, 64
      %v2694 = vpop.permute.xlu0 %2693
      %2695 = vrot.lane.b32.xlu0 %v2251, 64
      %v2696 = vpop.permute.xlu0 %2695
      %2697 = vrot.lane.b32.xlu0 %v2254, 64
      %v2698 = vpop.permute.xlu0 %2697
      %2699 = vrot.lane.b32.xlu0 %v2256, 64
      %v2700 = vpop.permute.xlu0 %2699
      %2701 = vrot.lane.b32.xlu0 %v2259, 64
      %v2702 = vpop.permute.xlu0 %2701
      %2703 = vrot.lane.b32.xlu0 %v2261, 64
      %v2704 = vpop.permute.xlu0 %2703
      %2705 = vrot.lane.b32.xlu0 %v2264, 64
      %v2706 = vpop.permute.xlu0 %2705
      %2707 = vrot.lane.b32.xlu0 %v2266, 64
      %v2708 = vpop.permute.xlu0 %2707
      %2709 = vrot.lane.b32.xlu0 %v2269, 64
      %v2710 = vpop.permute.xlu0 %2709
      %2711 = vrot.lane.b32.xlu0 %v2271, 64
      %v2712 = vpop.permute.xlu0 %2711
      %2713 = vrot.lane.b32.xlu0 %v2274, 64
      %v2714 = vpop.permute.xlu0 %2713
      %2715 = vrot.lane.b32.xlu0 %v2276, 64
      %v2716 = vpop.permute.xlu0 %2715
      %2717 = vrot.lane.b32.xlu0 %v2279, 64
      %v2718 = vpop.permute.xlu0 %2717
      %2719 = vrot.lane.b32.xlu0 %v2281, 64
      %v2720 = vpop.permute.xlu0 %2719
      %2721 = vrot.lane.b32.xlu0 %v2284, 64
      %v2722 = vpop.permute.xlu0 %2721
      %2723 = vrot.lane.b32.xlu0 %v2286, 64
      %v2724 = vpop.permute.xlu0 %2723
      %2725 = vrot.lane.b32.xlu0 %v2289, 64
      %v2726 = vpop.permute.xlu0 %2725
      %2727 = vrot.lane.b32.xlu0 %v2291, 64
      %v2728 = vpop.permute.xlu0 %2727
      %2729 = vrot.lane.b32.xlu0 %v2294, 64
      %v2730 = vpop.permute.xlu0 %2729
      %2731 = vrot.lane.b32.xlu0 %v2296, 64
      %v2732 = vpop.permute.xlu0 %2731
      %2733 = vrot.lane.b32.xlu0 %v2670, 64
      %v2734 = vpop.permute.xlu0 %2733
      %2735 = vrot.lane.b32.xlu0 %v2672, 64
      %v2736 = vpop.permute.xlu0 %2735
      %v2769 = vrot.slane %v2163, 2
      %v2770 = vrot.slane %v2164, 2
      %v2771 = vsel %vm680, %v2769, %v2770
      %v2772 = vrot.slane %v2165, 2
      %v2773 = vsel %vm680, %v2770, %v2772
      %2774 = vrot.lane.b32.xlu0 %v2400, 80
      %v2775 = vpop.permute.xlu0 %2774
      %2776 = vrot.lane.b32.xlu0 %v2402, 80
      %v2777 = vpop.permute.xlu0 %2776
      %2778 = vrot.lane.b32.xlu0 %v2405, 80
      %v2779 = vpop.permute.xlu0 %2778
      %2780 = vrot.lane.b32.xlu0 %v2407, 80
      %v2781 = vpop.permute.xlu0 %2780
      %2782 = vrot.lane.b32.xlu0 %v2410, 80
      %v2783 = vpop.permute.xlu0 %2782
      %2784 = vrot.lane.b32.xlu0 %v2412, 80
      %v2785 = vpop.permute.xlu0 %2784
      %2786 = vrot.lane.b32.xlu0 %v2415, 80
      %v2787 = vpop.permute.xlu0 %2786
      %2788 = vrot.lane.b32.xlu0 %v2417, 80
      %v2789 = vpop.permute.xlu0 %2788
      %2790 = vrot.lane.b32.xlu0 %v2420, 80
      %v2791 = vpop.permute.xlu0 %2790
      %2792 = vrot.lane.b32.xlu0 %v2422, 80
      %v2793 = vpop.permute.xlu0 %2792
      %2794 = vrot.lane.b32.xlu0 %v2425, 80
      %v2795 = vpop.permute.xlu0 %2794
      %2796 = vrot.lane.b32.xlu0 %v2427, 80
      %v2797 = vpop.permute.xlu0 %2796
      %2798 = vrot.lane.b32.xlu0 %v2430, 80
      %v2799 = vpop.permute.xlu0 %2798
      %2800 = vrot.lane.b32.xlu0 %v2432, 80
      %v2801 = vpop.permute.xlu0 %2800
      %2802 = vrot.lane.b32.xlu0 %v2435, 80
      %v2803 = vpop.permute.xlu0 %2802
      %2804 = vrot.lane.b32.xlu0 %v2437, 80
      %v2805 = vpop.permute.xlu0 %2804
      %2806 = vrot.lane.b32.xlu0 %v2440, 80
      %v2807 = vpop.permute.xlu0 %2806
      %2808 = vrot.lane.b32.xlu0 %v2442, 80
      %v2809 = vpop.permute.xlu0 %2808
      %2810 = vrot.lane.b32.xlu0 %v2445, 80
      %v2811 = vpop.permute.xlu0 %2810
      %2812 = vrot.lane.b32.xlu0 %v2447, 80
      %v2813 = vpop.permute.xlu0 %2812
      %2814 = vrot.lane.b32.xlu0 %v2450, 80
      %v2815 = vpop.permute.xlu0 %2814
      %2816 = vrot.lane.b32.xlu0 %v2452, 80
      %v2817 = vpop.permute.xlu0 %2816
      %2818 = vrot.lane.b32.xlu0 %v2455, 80
      %v2819 = vpop.permute.xlu0 %2818
      %2820 = vrot.lane.b32.xlu0 %v2457, 80
      %v2821 = vpop.permute.xlu0 %2820
      %2822 = vrot.lane.b32.xlu0 %v2460, 80
      %v2823 = vpop.permute.xlu0 %2822
      %2824 = vrot.lane.b32.xlu0 %v2462, 80
      %v2825 = vpop.permute.xlu0 %2824
      %2826 = vrot.lane.b32.xlu0 %v2465, 80
      %v2827 = vpop.permute.xlu0 %2826
      %2828 = vrot.lane.b32.xlu0 %v2467, 80
      %v2829 = vpop.permute.xlu0 %2828
      %2830 = vrot.lane.b32.xlu0 %v2470, 80
      %v2831 = vpop.permute.xlu0 %2830
      %2832 = vrot.lane.b32.xlu0 %v2472, 80
      %v2833 = vpop.permute.xlu0 %2832
      %2834 = vrot.lane.b32.xlu0 %v2771, 80
      %v2835 = vpop.permute.xlu0 %2834
      %2836 = vrot.lane.b32.xlu0 %v2773, 80
      %v2837 = vpop.permute.xlu0 %2836
      %2872 = vrot.lane.b32.xlu0 %v2121, 96
      %v2873 = vpop.permute.xlu0 %2872
      %2874 = vrot.lane.b32.xlu0 %v2122, 96
      %v2875 = vpop.permute.xlu0 %2874
      %2876 = vrot.lane.b32.xlu0 %v2124, 96
      %v2877 = vpop.permute.xlu0 %2876
      %2878 = vrot.lane.b32.xlu0 %v2125, 96
      %v2879 = vpop.permute.xlu0 %2878
      %2880 = vrot.lane.b32.xlu0 %v2127, 96
      %v2881 = vpop.permute.xlu0 %2880
      %2882 = vrot.lane.b32.xlu0 %v2128, 96
      %v2883 = vpop.permute.xlu0 %2882
      %2884 = vrot.lane.b32.xlu0 %v2130, 96
      %v2885 = vpop.permute.xlu0 %2884
      %2886 = vrot.lane.b32.xlu0 %v2131, 96
      %v2887 = vpop.permute.xlu0 %2886
      %2888 = vrot.lane.b32.xlu0 %v2133, 96
      %v2889 = vpop.permute.xlu0 %2888
      %2890 = vrot.lane.b32.xlu0 %v2134, 96
      %v2891 = vpop.permute.xlu0 %2890
      %2892 = vrot.lane.b32.xlu0 %v2136, 96
      %v2893 = vpop.permute.xlu0 %2892
      %2894 = vrot.lane.b32.xlu0 %v2137, 96
      %v2895 = vpop.permute.xlu0 %2894
      %2896 = vrot.lane.b32.xlu0 %v2139, 96
      %v2897 = vpop.permute.xlu0 %2896
      %2898 = vrot.lane.b32.xlu0 %v2140, 96
      %v2899 = vpop.permute.xlu0 %2898
      %2900 = vrot.lane.b32.xlu0 %v2142, 96
      %v2901 = vpop.permute.xlu0 %2900
      %2902 = vrot.lane.b32.xlu0 %v2143, 96
      %v2903 = vpop.permute.xlu0 %2902
      %2904 = vrot.lane.b32.xlu0 %v2145, 96
      %v2905 = vpop.permute.xlu0 %2904
      %2906 = vrot.lane.b32.xlu0 %v2146, 96
      %v2907 = vpop.permute.xlu0 %2906
      %2908 = vrot.lane.b32.xlu0 %v2148, 96
      %v2909 = vpop.permute.xlu0 %2908
      %2910 = vrot.lane.b32.xlu0 %v2149, 96
      %v2911 = vpop.permute.xlu0 %2910
      %2912 = vrot.lane.b32.xlu0 %v2151, 96
      %v2913 = vpop.permute.xlu0 %2912
      %2914 = vrot.lane.b32.xlu0 %v2152, 96
      %v2915 = vpop.permute.xlu0 %2914
      %2916 = vrot.lane.b32.xlu0 %v2154, 96
      %v2917 = vpop.permute.xlu0 %2916
      %2918 = vrot.lane.b32.xlu0 %v2155, 96
      %v2919 = vpop.permute.xlu0 %2918
      %2920 = vrot.lane.b32.xlu0 %v2157, 96
      %v2921 = vpop.permute.xlu0 %2920
      %2922 = vrot.lane.b32.xlu0 %v2158, 96
      %v2923 = vpop.permute.xlu0 %2922
      %2924 = vrot.lane.b32.xlu0 %v2160, 96
      %v2925 = vpop.permute.xlu0 %2924
      %2926 = vrot.lane.b32.xlu0 %v2161, 96
      %v2927 = vpop.permute.xlu0 %2926
      %2928 = vrot.lane.b32.xlu0 %v2163, 96
      %v2929 = vpop.permute.xlu0 %2928
      %2930 = vrot.lane.b32.xlu0 %v2164, 96
      %v2931 = vpop.permute.xlu0 %2930
      %2932 = vrot.lane.b32.xlu0 %v2166, 96
      %v2933 = vpop.permute.xlu0 %2932
      %2934 = vrot.lane.b32.xlu0 %v2167, 96
      %v2935 = vpop.permute.xlu0 %2934
      %v2969 = vrot.slane %v2166, 1
      %v2970 = vrot.slane %v2167, 1
      %v2971 = vsel %vm503, %v2969, %v2970
      %v2972 = vrot.slane %v2168, 1
      %v2973 = vsel %vm503, %v2970, %v2972
      %2974 = vrot.lane.b32.xlu0 %v2229, 112
      %v2975 = vpop.permute.xlu0 %2974
      %2976 = vrot.lane.b32.xlu0 %v2231, 112
      %v2977 = vpop.permute.xlu0 %2976
      %2978 = vrot.lane.b32.xlu0 %v2234, 112
      %v2979 = vpop.permute.xlu0 %2978
      %2980 = vrot.lane.b32.xlu0 %v2236, 112
      %v2981 = vpop.permute.xlu0 %2980
      %2982 = vrot.lane.b32.xlu0 %v2239, 112
      %v2983 = vpop.permute.xlu0 %2982
      %2984 = vrot.lane.b32.xlu0 %v2241, 112
      %v2985 = vpop.permute.xlu0 %2984
      %2986 = vrot.lane.b32.xlu0 %v2244, 112
      %v2987 = vpop.permute.xlu0 %2986
      %2988 = vrot.lane.b32.xlu0 %v2246, 112
      %v2989 = vpop.permute.xlu0 %2988
      %2990 = vrot.lane.b32.xlu0 %v2249, 112
      %v2991 = vpop.permute.xlu0 %2990
      %2992 = vrot.lane.b32.xlu0 %v2251, 112
      %v2993 = vpop.permute.xlu0 %2992
      %2994 = vrot.lane.b32.xlu0 %v2254, 112
      %v2995 = vpop.permute.xlu0 %2994
      %2996 = vrot.lane.b32.xlu0 %v2256, 112
      %v2997 = vpop.permute.xlu0 %2996
      %2998 = vrot.lane.b32.xlu0 %v2259, 112
      %v2999 = vpop.permute.xlu0 %2998
      %3000 = vrot.lane.b32.xlu0 %v2261, 112
      %v3001 = vpop.permute.xlu0 %3000
      %3002 = vrot.lane.b32.xlu0 %v2264, 112
      %v3003 = vpop.permute.xlu0 %3002
      %3004 = vrot.lane.b32.xlu0 %v2266, 112
      %v3005 = vpop.permute.xlu0 %3004
      %3006 = vrot.lane.b32.xlu0 %v2269, 112
      %v3007 = vpop.permute.xlu0 %3006
      %3008 = vrot.lane.b32.xlu0 %v2271, 112
      %v3009 = vpop.permute.xlu0 %3008
      %3010 = vrot.lane.b32.xlu0 %v2274, 112
      %v3011 = vpop.permute.xlu0 %3010
      %3012 = vrot.lane.b32.xlu0 %v2276, 112
      %v3013 = vpop.permute.xlu0 %3012
      %3014 = vrot.lane.b32.xlu0 %v2279, 112
      %v3015 = vpop.permute.xlu0 %3014
      %3016 = vrot.lane.b32.xlu0 %v2281, 112
      %v3017 = vpop.permute.xlu0 %3016
      %3018 = vrot.lane.b32.xlu0 %v2284, 112
      %v3019 = vpop.permute.xlu0 %3018
      %3020 = vrot.lane.b32.xlu0 %v2286, 112
      %v3021 = vpop.permute.xlu0 %3020
      %3022 = vrot.lane.b32.xlu0 %v2289, 112
      %v3023 = vpop.permute.xlu0 %3022
      %3024 = vrot.lane.b32.xlu0 %v2291, 112
      %v3025 = vpop.permute.xlu0 %3024
      %3026 = vrot.lane.b32.xlu0 %v2294, 112
      %v3027 = vpop.permute.xlu0 %3026
      %3028 = vrot.lane.b32.xlu0 %v2296, 112
      %v3029 = vpop.permute.xlu0 %3028
      %3030 = vrot.lane.b32.xlu0 %v2670, 112
      %v3031 = vpop.permute.xlu0 %3030
      %3032 = vrot.lane.b32.xlu0 %v2672, 112
      %v3033 = vpop.permute.xlu0 %3032
      %3034 = vrot.lane.b32.xlu0 %v2971, 112
      %v3035 = vpop.permute.xlu0 %3034
      %3036 = vrot.lane.b32.xlu0 %v2973, 112
      %v3037 = vpop.permute.xlu0 %3036
      %v3070 = vrot.slane %v2166, 2
      %v3071 = vrot.slane %v2167, 2
      %v3072 = vsel %vm680, %v3070, %v3071
      %v3073 = vrot.slane %v2168, 2
      %v3074 = vsel %vm680, %v3071, %v3073
      %v3107 = vsel %vm1491, %v2115, %v2298
      %v3108 = vsel %vm1491, %v2116, %v2300
      %v3109 = vsel %vm1491, %v2118, %v2302
      %v3110 = vsel %vm1491, %v2119, %v2304
      %v3111 = vsel %vm1491, %v2121, %v2306
      %v3112 = vsel %vm1491, %v2122, %v2308
      %v3113 = vsel %vm1491, %v2124, %v2310
      %v3114 = vsel %vm1491, %v2125, %v2312
      %v3115 = vsel %vm1491, %v2127, %v2314
      %v3116 = vsel %vm1491, %v2128, %v2316
      %v3117 = vsel %vm1491, %v2130, %v2318
      %v3118 = vsel %vm1491, %v2131, %v2320
      %v3119 = vsel %vm1491, %v2133, %v2322
      %v3120 = vsel %vm1491, %v2134, %v2324
      %v3121 = vsel %vm1491, %v2136, %v2326
      %v3122 = vsel %vm1491, %v2137, %v2328
      %v3123 = vsel %vm1491, %v2139, %v2330
      %v3124 = vsel %vm1491, %v2140, %v2332
      %v3125 = vsel %vm1491, %v2142, %v2334
      %v3126 = vsel %vm1491, %v2143, %v2336
      %v3127 = vsel %vm1491, %v2145, %v2338
      %v3128 = vsel %vm1491, %v2146, %v2340
      %v3129 = vsel %vm1491, %v2148, %v2342
      %v3130 = vsel %vm1491, %v2149, %v2344
      %v3131 = vsel %vm1491, %v2151, %v2346
      %v3132 = vsel %vm1491, %v2152, %v2348
      %v3133 = vsel %vm1491, %v2154, %v2350
      %v3134 = vsel %vm1491, %v2155, %v2352
      %v3135 = vsel %vm1491, %v2157, %v2354
      %v3136 = vsel %vm1491, %v2158, %v2356
      %v3137 = vsel %vm1491, %v2160, %v2358
      %v3138 = vsel %vm1491, %v2161, %v2360
      %v3139 = vsel %vm1557, %v3107, %v2474
      %v3140 = vsel %vm1557, %v3108, %v2476
      %v3141 = vsel %vm1557, %v3109, %v2478
      %v3142 = vsel %vm1557, %v3110, %v2480
      %v3143 = vsel %vm1557, %v3111, %v2482
      %v3144 = vsel %vm1557, %v3112, %v2484
      %v3145 = vsel %vm1557, %v3113, %v2486
      %v3146 = vsel %vm1557, %v3114, %v2488
      %v3147 = vsel %vm1557, %v3115, %v2490
      %v3148 = vsel %vm1557, %v3116, %v2492
      %v3149 = vsel %vm1557, %v3117, %v2494
      %v3150 = vsel %vm1557, %v3118, %v2496
      %v3151 = vsel %vm1557, %v3119, %v2498
      %v3152 = vsel %vm1557, %v3120, %v2500
      %v3153 = vsel %vm1557, %v3121, %v2502
      %v3154 = vsel %vm1557, %v3122, %v2504
      %v3155 = vsel %vm1557, %v3123, %v2506
      %v3156 = vsel %vm1557, %v3124, %v2508
      %v3157 = vsel %vm1557, %v3125, %v2510
      %v3158 = vsel %vm1557, %v3126, %v2512
      %v3159 = vsel %vm1557, %v3127, %v2514
      %v3160 = vsel %vm1557, %v3128, %v2516
      %v3161 = vsel %vm1557, %v3129, %v2518
      %v3162 = vsel %vm1557, %v3130, %v2520
      %v3163 = vsel %vm1557, %v3131, %v2522
      %v3164 = vsel %vm1557, %v3132, %v2524
      %v3165 = vsel %vm1557, %v3133, %v2526
      %v3166 = vsel %vm1557, %v3134, %v2528
      %v3167 = vsel %vm1557, %v3135, %v2530
      %v3168 = vsel %vm1557, %v3136, %v2532
      %v3169 = vsel %vm1557, %v3137, %v2534
      %v3170 = vsel %vm1557, %v3138, %v2536
      %v3171 = vsel %vm1623, %v3139, %v2572
      %v3172 = vsel %vm1623, %v3140, %v2574
      %v3173 = vsel %vm1623, %v3141, %v2576
      %v3174 = vsel %vm1623, %v3142, %v2578
      %v3175 = vsel %vm1623, %v3143, %v2580
      %v3176 = vsel %vm1623, %v3144, %v2582
      %v3177 = vsel %vm1623, %v3145, %v2584
      %v3178 = vsel %vm1623, %v3146, %v2586
      %v3179 = vsel %vm1623, %v3147, %v2588
      %v3180 = vsel %vm1623, %v3148, %v2590
      %v3181 = vsel %vm1623, %v3149, %v2592
      %v3182 = vsel %vm1623, %v3150, %v2594
      %v3183 = vsel %vm1623, %v3151, %v2596
      %v3184 = vsel %vm1623, %v3152, %v2598
      %v3185 = vsel %vm1623, %v3153, %v2600
      %v3186 = vsel %vm1623, %v3154, %v2602
      %v3187 = vsel %vm1623, %v3155, %v2604
      %v3188 = vsel %vm1623, %v3156, %v2606
      %v3189 = vsel %vm1623, %v3157, %v2608
      %v3190 = vsel %vm1623, %v3158, %v2610
      %v3191 = vsel %vm1623, %v3159, %v2612
      %v3192 = vsel %vm1623, %v3160, %v2614
      %v3193 = vsel %vm1623, %v3161, %v2616
      %v3194 = vsel %vm1623, %v3162, %v2618
      %v3195 = vsel %vm1623, %v3163, %v2620
      %v3196 = vsel %vm1623, %v3164, %v2622
      %v3197 = vsel %vm1623, %v3165, %v2624
      %v3198 = vsel %vm1623, %v3166, %v2626
      %v3199 = vsel %vm1623, %v3167, %v2628
      %v3200 = vsel %vm1623, %v3168, %v2630
      %v3201 = vsel %vm1623, %v3169, %v2632
      %v3202 = vsel %vm1623, %v3170, %v2634
      %v3203 = vsel %vm1689, %v3171, %v2674
      %v3204 = vsel %vm1689, %v3172, %v2676
      %v3205 = vsel %vm1689, %v3173, %v2678
      %v3206 = vsel %vm1689, %v3174, %v2680
      %v3207 = vsel %vm1689, %v3175, %v2682
      %v3208 = vsel %vm1689, %v3176, %v2684
      %v3209 = vsel %vm1689, %v3177, %v2686
      %v3210 = vsel %vm1689, %v3178, %v2688
      %v3211 = vsel %vm1689, %v3179, %v2690
      %v3212 = vsel %vm1689, %v3180, %v2692
      %v3213 = vsel %vm1689, %v3181, %v2694
      %v3214 = vsel %vm1689, %v3182, %v2696
      %v3215 = vsel %vm1689, %v3183, %v2698
      %v3216 = vsel %vm1689, %v3184, %v2700
      %v3217 = vsel %vm1689, %v3185, %v2702
      %v3218 = vsel %vm1689, %v3186, %v2704
      %v3219 = vsel %vm1689, %v3187, %v2706
      %v3220 = vsel %vm1689, %v3188, %v2708
      %v3221 = vsel %vm1689, %v3189, %v2710
      %v3222 = vsel %vm1689, %v3190, %v2712
      %v3223 = vsel %vm1689, %v3191, %v2714
      %v3224 = vsel %vm1689, %v3192, %v2716
      %v3225 = vsel %vm1689, %v3193, %v2718
      %v3226 = vsel %vm1689, %v3194, %v2720
      %v3227 = vsel %vm1689, %v3195, %v2722
      %v3228 = vsel %vm1689, %v3196, %v2724
      %v3229 = vsel %vm1689, %v3197, %v2726
      %v3230 = vsel %vm1689, %v3198, %v2728
      %v3231 = vsel %vm1689, %v3199, %v2730
      %v3232 = vsel %vm1689, %v3200, %v2732
      %v3233 = vsel %vm1689, %v3201, %v2734
      %v3234 = vsel %vm1689, %v3202, %v2736
      %vm3235 = vcmask 654336
      %v3236 = vsel %vm3235, %v3203, %v2775
      %v3237 = vsel %vm3235, %v3204, %v2777
      %v3238 = vsel %vm3235, %v3205, %v2779
      %v3239 = vsel %vm3235, %v3206, %v2781
      %v3240 = vsel %vm3235, %v3207, %v2783
      %v3241 = vsel %vm3235, %v3208, %v2785
      %v3242 = vsel %vm3235, %v3209, %v2787
      %v3243 = vsel %vm3235, %v3210, %v2789
      %v3244 = vsel %vm3235, %v3211, %v2791
      %v3245 = vsel %vm3235, %v3212, %v2793
      %v3246 = vsel %vm3235, %v3213, %v2795
      %v3247 = vsel %vm3235, %v3214, %v2797
      %v3248 = vsel %vm3235, %v3215, %v2799
      %v3249 = vsel %vm3235, %v3216, %v2801
      %v3250 = vsel %vm3235, %v3217, %v2803
      %v3251 = vsel %vm3235, %v3218, %v2805
      %v3252 = vsel %vm3235, %v3219, %v2807
      %v3253 = vsel %vm3235, %v3220, %v2809
      %v3254 = vsel %vm3235, %v3221, %v2811
      %v3255 = vsel %vm3235, %v3222, %v2813
      %v3256 = vsel %vm3235, %v3223, %v2815
      %v3257 = vsel %vm3235, %v3224, %v2817
      %v3258 = vsel %vm3235, %v3225, %v2819
      %v3259 = vsel %vm3235, %v3226, %v2821
      %v3260 = vsel %vm3235, %v3227, %v2823
      %v3261 = vsel %vm3235, %v3228, %v2825
      %v3262 = vsel %vm3235, %v3229, %v2827
      %v3263 = vsel %vm3235, %v3230, %v2829
      %v3264 = vsel %vm3235, %v3231, %v2831
      %v3265 = vsel %vm3235, %v3232, %v2833
      %v3266 = vsel %vm3235, %v3233, %v2835
      %v3267 = vsel %vm3235, %v3234, %v2837
      %vm3268 = vcmask 785408
      %v3269 = vsel %vm3268, %v3236, %v2873
      %v3270 = vsel %vm3268, %v3237, %v2875
      %v3271 = vsel %vm3268, %v3238, %v2877
      %v3272 = vsel %vm3268, %v3239, %v2879
      %v3273 = vsel %vm3268, %v3240, %v2881
      %v3274 = vsel %vm3268, %v3241, %v2883
      %v3275 = vsel %vm3268, %v3242, %v2885
      %v3276 = vsel %vm3268, %v3243, %v2887
      %v3277 = vsel %vm3268, %v3244, %v2889
      %v3278 = vsel %vm3268, %v3245, %v2891
      %v3279 = vsel %vm3268, %v3246, %v2893
      %v3280 = vsel %vm3268, %v3247, %v2895
      %v3281 = vsel %vm3268, %v3248, %v2897
      %v3282 = vsel %vm3268, %v3249, %v2899
      %v3283 = vsel %vm3268, %v3250, %v2901
      %v3284 = vsel %vm3268, %v3251, %v2903
      %v3285 = vsel %vm3268, %v3252, %v2905
      %v3286 = vsel %vm3268, %v3253, %v2907
      %v3287 = vsel %vm3268, %v3254, %v2909
      %v3288 = vsel %vm3268, %v3255, %v2911
      %v3289 = vsel %vm3268, %v3256, %v2913
      %v3290 = vsel %vm3268, %v3257, %v2915
      %v3291 = vsel %vm3268, %v3258, %v2917
      %v3292 = vsel %vm3268, %v3259, %v2919
      %v3293 = vsel %vm3268, %v3260, %v2921
      %v3294 = vsel %vm3268, %v3261, %v2923
      %v3295 = vsel %vm3268, %v3262, %v2925
      %v3296 = vsel %vm3268, %v3263, %v2927
      %v3297 = vsel %vm3268, %v3264, %v2929
      %v3298 = vsel %vm3268, %v3265, %v2931
      %v3299 = vsel %vm3268, %v3266, %v2933
      %v3300 = vsel %vm3268, %v3267, %v2935
      %vm3301 = vcmask 916480
      %v3302 = vsel %vm3301, %v3269, %v2975
      %v3303 = vsel %vm3301, %v3270, %v2977
      %v3304 = vsel %vm3301, %v3271, %v2979
      %v3305 = vsel %vm3301, %v3272, %v2981
      %v3306 = vsel %vm3301, %v3273, %v2983
      %v3307 = vsel %vm3301, %v3274, %v2985
      %v3308 = vsel %vm3301, %v3275, %v2987
      %v3309 = vsel %vm3301, %v3276, %v2989
      %v3310 = vsel %vm3301, %v3277, %v2991
      %v3311 = vsel %vm3301, %v3278, %v2993
      %v3312 = vsel %vm3301, %v3279, %v2995
      %v3313 = vsel %vm3301, %v3280, %v2997
      %v3314 = vsel %vm3301, %v3281, %v2999
      %v3315 = vsel %vm3301, %v3282, %v3001
      %v3316 = vsel %vm3301, %v3283, %v3003
      %v3317 = vsel %vm3301, %v3284, %v3005
      %v3318 = vsel %vm3301, %v3285, %v3007
      %v3319 = vsel %vm3301, %v3286, %v3009
      %v3320 = vsel %vm3301, %v3287, %v3011
      %v3321 = vsel %vm3301, %v3288, %v3013
      %v3322 = vsel %vm3301, %v3289, %v3015
      %v3323 = vsel %vm3301, %v3290, %v3017
      %v3324 = vsel %vm3301, %v3291, %v3019
      %v3325 = vsel %vm3301, %v3292, %v3021
      %v3326 = vsel %vm3301, %v3293, %v3023
      %v3327 = vsel %vm3301, %v3294, %v3025
      %v3328 = vsel %vm3301, %v3295, %v3027
      %v3329 = vsel %vm3301, %v3296, %v3029
      %v3330 = vsel %vm3301, %v3297, %v3031
      %v3331 = vsel %vm3301, %v3298, %v3033
      %v3332 = vsel %vm3301, %v3299, %v3035
      %v3333 = vsel %vm3301, %v3300, %v3037
      %v3334 = vpack.c.bf16 %v3303, %v3302
      %v3335 = vpack.c.bf16 %v2407, %v2405
      %v3336 = vpack.c.bf16 %v3305, %v3304
      %v3337 = vpack.c.bf16 %v2412, %v2410
      %v3338 = vpack.c.bf16 %v3307, %v3306
      %v3339 = vpack.c.bf16 %v2417, %v2415
      %v3340 = vpack.c.bf16 %v3309, %v3308
      %v3341 = vpack.c.bf16 %v2422, %v2420
      %v3342 = vpack.c.bf16 %v3311, %v3310
      %v3343 = vpack.c.bf16 %v2427, %v2425
      %v3344 = vpack.c.bf16 %v3313, %v3312
      %v3345 = vpack.c.bf16 %v2432, %v2430
      %v3346 = vpack.c.bf16 %v3315, %v3314
      %v3347 = vpack.c.bf16 %v2437, %v2435
      %v3348 = vpack.c.bf16 %v3317, %v3316
      %v3349 = vpack.c.bf16 %v2442, %v2440
      %v3350 = vpack.c.bf16 %v3319, %v3318
      %v3351 = vpack.c.bf16 %v2447, %v2445
      %v3352 = vpack.c.bf16 %v3321, %v3320
      %v3353 = vpack.c.bf16 %v2452, %v2450
      %v3354 = vpack.c.bf16 %v3323, %v3322
      %v3355 = vpack.c.bf16 %v2457, %v2455
      %v3356 = vpack.c.bf16 %v3325, %v3324
      %v3357 = vpack.c.bf16 %v2462, %v2460
      %v3358 = vpack.c.bf16 %v3327, %v3326
      %v3359 = vpack.c.bf16 %v2467, %v2465
      %v3360 = vpack.c.bf16 %v3329, %v3328
      %v3361 = vpack.c.bf16 %v2472, %v2470
      %v3362 = vpack.c.bf16 %v3331, %v3330
      %v3363 = vpack.c.bf16 %v2773, %v2771
      %v3364 = vpack.c.bf16 %v3333, %v3332
      %v3365 = vpack.c.bf16 %v3074, %v3072
      %v3366 = vld [vmem:[%s3] sm:$0xf]
      %v3367 = vld [vmem:[%s3 + $0x4] sm:$0xf]
      %v3368 = vld [vmem:[%s3 + $0x8] sm:$0xf]
      %v3369 = vld [vmem:[%s3 + $0xc] sm:$0xf]
      %v3370 = vld [vmem:[%s3 + $0x10] sm:$0xf]
      %v3371 = vld [vmem:[%s3 + $0x14] sm:$0xf]
      %v3372 = vld [vmem:[%s3 + $0x18] sm:$0xf]
      %v3373 = vld [vmem:[%s3 + $0x1c] sm:$0xf]
      %v3374 = vld [vmem:[%s3 + $0x20] sm:$0xf]
      %v3375 = vld [vmem:[%s3 + $0x24] sm:$0xf]
      %v3376 = vld [vmem:[%s3 + $0x28] sm:$0xf]
      %v3377 = vld [vmem:[%s3 + $0x2c] sm:$0xf]
      %v3378 = vld [vmem:[%s3 + $0x30] sm:$0xf]
      %v3379 = vld [vmem:[%s3 + $0x34] sm:$0xf]
      %v3380 = vld [vmem:[%s3 + $0x38] sm:$0xf]
      %v3381 = vld [vmem:[%s3 + $0x3c] sm:$0xf]
      %v3382 = vld [vmem:[%s3 + $0x40] sm:$0xf]
      %v3383 = vld [vmem:[%s3 + $0x44] sm:$0xf]
      %v3384 = vld [vmem:[%s4] sm:$0x1]
      %v3386 = vlaneseq
      %v3387 = vshrl.u32 %v3386, 7
      %v3388 = vsub.s32 0, %v3387
      %v3389 = vrot.slane %v3384, %v3388
      %v3409 = vunpack.c.l.b16 %v3366
      %v3410 = vunpack.c.l.b16 %v3367
      %v3411 = vunpack.c.l.b16 %v3368
      %v3412 = vunpack.c.l.b16 %v3369
      %v3413 = vunpack.c.l.b16 %v3370
      %v3414 = vunpack.c.l.b16 %v3371
      %v3415 = vunpack.c.l.b16 %v3372
      %v3416 = vunpack.c.l.b16 %v3373
      %v3417 = vunpack.c.l.b16 %v3374
      %v3418 = vunpack.c.l.b16 %v3375
      %v3419 = vunpack.c.l.b16 %v3376
      %v3420 = vunpack.c.l.b16 %v3377
      %v3421 = vunpack.c.l.b16 %v3378
      %v3422 = vunpack.c.l.b16 %v3379
      %v3423 = vunpack.c.l.b16 %v3380
      %v3424 = vunpack.c.l.b16 %v3381
      %v3425 = vunpack.c.l.b16 %v3382
      %v3426 = vunpack.c.l.b16 %v3383
      %v3427 = vpack.c.b16 %v3410, %v3409
      %v3428 = vpack.c.b16 %v3412, %v3411
      %v3429 = vpack.c.b16 %v3414, %v3413
      %v3430 = vpack.c.b16 %v3416, %v3415
      %v3431 = vpack.c.b16 %v3418, %v3417
      %v3432 = vpack.c.b16 %v3420, %v3419
      %v3433 = vpack.c.b16 %v3422, %v3421
      %v3434 = vpack.c.b16 %v3424, %v3423
      %v3435 = vpack.c.b16 %v3426, %v3425
      %v3446 = vsel %vm1491, %v3335, 0
      %v3449 = vsel %vm1491, %v3337, 0
      %v3452 = vsel %vm1491, %v3339, 0
      %v3455 = vsel %vm1491, %v3341, 0
      %v3458 = vsel %vm1491, %v3343, 0
      %v3461 = vsel %vm1491, %v3345, 0
      %v3464 = vsel %vm1491, %v3347, 0
      %v3467 = vsel %vm1491, %v3349, 0
      %v3470 = vsel %vm1491, %v3351, 0
      %v3473 = vsel %vm1491, %v3353, 0
      %v3476 = vsel %vm1491, %v3355, 0
      %v3479 = vsel %vm1491, %v3357, 0
      %v3482 = vsel %vm1491, %v3359, 0
      %v3485 = vsel %vm1491, %v3361, 0
      %v3488 = vsel %vm1491, %v3363, 0
      %v3491 = vsel %vm1491, %v3365, 0
      %3493 = vmatprep.subr.bf16.mxu0 0
      %3494 = vmatpush1.bf16.msra.mxu0 %v3427
      %3495 = vmatprep.subr.bf16.mxu0 0
      %3496 = vmatpush1.bf16.msra.mxu0 %v3428
      %3497 = vmatprep.subr.bf16.mxu0 0
      %3498 = vmatpush1.bf16.msra.mxu0 %v3429
      %3499 = vmatprep.subr.bf16.mxu0 0
      %3500 = vmatpush1.bf16.msra.mxu0 %v3430
      %3501 = vmatprep.subr.bf16.mxu0 0
      %3502 = vmatpush1.bf16.msra.mxu0 %v3431
      %3503 = vmatprep.subr.bf16.mxu0 0
      %3504 = vmatpush1.bf16.msra.mxu0 %v3432
      %3505 = vmatprep.subr.bf16.mxu0 0
      %3506 = vmatpush1.bf16.msra.mxu0 %v3433
      %3507 = vmatprep.subr.bf16.mxu0 0
      %3508 = vmatpush1.bf16.msra.mxu0 %v3434
      %3509 = vmatprep.subr.bf16.mxu0 0
      %3510 = vmatpush1.bf16.msra.mxu0 %v3435
      %3511 = vmatprep.subr.bf16.mxu0 0
      %3512 = vmatpush1.bf16.msra.mxu0 0
      %3513 = vmatprep.subr.bf16.mxu0 0
      %3514 = vmatpush1.bf16.msra.mxu0 0
      %3515 = vmatprep.subr.bf16.mxu0 0
      %3516 = vmatpush1.bf16.msra.mxu0 0
      %3517 = vmatprep.subr.bf16.mxu0 0
      %3518 = vmatpush1.bf16.msra.mxu0 0
      %3519 = vmatprep.subr.bf16.mxu0 0
      %3520 = vmatpush1.bf16.msra.mxu0 0
      %3521 = vmatprep.subr.bf16.mxu0 0
      %3522 = vmatpush1.bf16.msra.mxu0 0
      %3523 = vmatprep.subr.bf16.mxu0 0
      %3524 = vmatpush1.bf16.msra.mxu0 0
      %3525 = vmatprep.mubr.bf16.mxu0 %v3446
      %3526 = vmatmul.mubr.bf16.gmra.mrb[0].mxu0 %v3334
      %v3527 = vpop.f32.mrb[0].mxu0
      %v3528 = vadd.f32 %v3389, %v3527
      %v3529 = vpop.f32.mrb[0].mxu0
      %v3530 = vpop.f32.mrb[0].mxu0
      %v3531 = vadd.f32 %v3389, %v3530
      %v3532 = vpop.f32.mrb[0].mxu0
      %3533 = vmatprep.mubr.bf16.mxu0 %v3449
      %3534 = vmatmul.mubr.bf16.gmra.mrb[0].mxu0 %v3336
      %v3535 = vpop.f32.mrb[0].mxu0
      %v3536 = vadd.f32 %v3389, %v3535
      %v3537 = vpop.f32.mrb[0].mxu0
      %v3538 = vpop.f32.mrb[0].mxu0
      %v3539 = vadd.f32 %v3389, %v3538
      %v3540 = vpop.f32.mrb[0].mxu0
      %3541 = vmatprep.mubr.bf16.mxu0 %v3452
      %3542 = vmatmul.mubr.bf16.gmra.mrb[0].mxu0 %v3338
      %v3543 = vpop.f32.mrb[0].mxu0
      %v3544 = vadd.f32 %v3389, %v3543
      %v3545 = vpop.f32.mrb[0].mxu0
      %v3546 = vpop.f32.mrb[0].mxu0
      %v3547 = vadd.f32 %v3389, %v3546
      %v3548 = vpop.f32.mrb[0].mxu0
      %3549 = vmatprep.mubr.bf16.mxu0 %v3455
      %3550 = vmatmul.mubr.bf16.gmra.mrb[0].mxu0 %v3340
      %v3551 = vpop.f32.mrb[0].mxu0
      %v3552 = vadd.f32 %v3389, %v3551
      %v3553 = vpop.f32.mrb[0].mxu0
      %v3554 = vpop.f32.mrb[0].mxu0
      %v3555 = vadd.f32 %v3389, %v3554
      %v3556 = vpop.f32.mrb[0].mxu0
      %3557 = vmatprep.mubr.bf16.mxu0 %v3458
      %3558 = vmatmul.mubr.bf16.gmra.mrb[0].mxu0 %v3342
      %v3559 = vpop.f32.mrb[0].mxu0
      %v3560 = vadd.f32 %v3389, %v3559
      %v3561 = vpop.f32.mrb[0].mxu0
      %v3562 = vpop.f32.mrb[0].mxu0
      %v3563 = vadd.f32 %v3389, %v3562
      %v3564 = vpop.f32.mrb[0].mxu0
      %3565 = vmatprep.mubr.bf16.mxu0 %v3461
      %3566 = vmatmul.mubr.bf16.gmra.mrb[0].mxu0 %v3344
      %v3567 = vpop.f32.mrb[0].mxu0
      %v3568 = vadd.f32 %v3389, %v3567
      %v3569 = vpop.f32.mrb[0].mxu0
      %v3570 = vpop.f32.mrb[0].mxu0
      %v3571 = vadd.f32 %v3389, %v3570
      %v3572 = vpop.f32.mrb[0].mxu0
      %3573 = vmatprep.mubr.bf16.mxu0 %v3464
      %3574 = vmatmul.mubr.bf16.gmra.mrb[0].mxu0 %v3346
      %v3575 = vpop.f32.mrb[0].mxu0
      %v3576 = vadd.f32 %v3389, %v3575
      %v3577 = vpop.f32.mrb[0].mxu0
      %v3578 = vpop.f32.mrb[0].mxu0
      %v3579 = vadd.f32 %v3389, %v3578
      %v3580 = vpop.f32.mrb[0].mxu0
      %3581 = vmatprep.mubr.bf16.mxu0 %v3467
      %3582 = vmatmul.mubr.bf16.gmra.mrb[0].mxu0 %v3348
      %v3583 = vpop.f32.mrb[0].mxu0
      %v3584 = vadd.f32 %v3389, %v3583
      %v3585 = vpop.f32.mrb[0].mxu0
      %v3586 = vpop.f32.mrb[0].mxu0
      %v3587 = vadd.f32 %v3389, %v3586
      %v3588 = vpop.f32.mrb[0].mxu0
      %3589 = vmatprep.mubr.bf16.mxu0 %v3470
      %3590 = vmatmul.mubr.bf16.gmra.mrb[0].mxu0 %v3350
      %v3591 = vpop.f32.mrb[0].mxu0
      %v3592 = vadd.f32 %v3389, %v3591
      %v3593 = vpop.f32.mrb[0].mxu0
      %v3594 = vpop.f32.mrb[0].mxu0
      %v3595 = vadd.f32 %v3389, %v3594
      %v3596 = vpop.f32.mrb[0].mxu0
      %3597 = vmatprep.mubr.bf16.mxu0 %v3473
      %3598 = vmatmul.mubr.bf16.gmra.mrb[0].mxu0 %v3352
      %v3599 = vpop.f32.mrb[0].mxu0
      %v3600 = vadd.f32 %v3389, %v3599
      %v3601 = vpop.f32.mrb[0].mxu0
      %v3602 = vpop.f32.mrb[0].mxu0
      %v3603 = vadd.f32 %v3389, %v3602
      %v3604 = vpop.f32.mrb[0].mxu0
      %3605 = vmatprep.mubr.bf16.mxu0 %v3476
      %3606 = vmatmul.mubr.bf16.gmra.mrb[0].mxu0 %v3354
      %v3607 = vpop.f32.mrb[0].mxu0
      %v3608 = vadd.f32 %v3389, %v3607
      %v3609 = vpop.f32.mrb[0].mxu0
      %v3610 = vpop.f32.mrb[0].mxu0
      %v3611 = vadd.f32 %v3389, %v3610
      %v3612 = vpop.f32.mrb[0].mxu0
      %3613 = vmatprep.mubr.bf16.mxu0 %v3479
      %3614 = vmatmul.mubr.bf16.gmra.mrb[0].mxu0 %v3356
      %v3615 = vpop.f32.mrb[0].mxu0
      %v3616 = vadd.f32 %v3389, %v3615
      %v3617 = vpop.f32.mrb[0].mxu0
      %v3618 = vpop.f32.mrb[0].mxu0
      %v3619 = vadd.f32 %v3389, %v3618
      %v3620 = vpop.f32.mrb[0].mxu0
      %3621 = vmatprep.mubr.bf16.mxu0 %v3482
      %3622 = vmatmul.mubr.bf16.gmra.mrb[0].mxu0 %v3358
      %v3623 = vpop.f32.mrb[0].mxu0
      %v3624 = vadd.f32 %v3389, %v3623
      %v3625 = vpop.f32.mrb[0].mxu0
      %v3626 = vpop.f32.mrb[0].mxu0
      %v3627 = vadd.f32 %v3389, %v3626
      %v3628 = vpop.f32.mrb[0].mxu0
      %3629 = vmatprep.mubr.bf16.mxu0 %v3485
      %3630 = vmatmul.mubr.bf16.gmra.mrb[0].mxu0 %v3360
      %v3631 = vpop.f32.mrb[0].mxu0
      %v3632 = vadd.f32 %v3389, %v3631
      %v3633 = vpop.f32.mrb[0].mxu0
      %v3634 = vpop.f32.mrb[0].mxu0
      %v3635 = vadd.f32 %v3389, %v3634
      %v3636 = vpop.f32.mrb[0].mxu0
      %3637 = vmatprep.mubr.bf16.mxu0 %v3488
      %3638 = vmatmul.mubr.bf16.gmra.mrb[0].mxu0 %v3362
      %v3639 = vpop.f32.mrb[0].mxu0
      %v3640 = vadd.f32 %v3389, %v3639
      %v3641 = vpop.f32.mrb[0].mxu0
      %v3642 = vpop.f32.mrb[0].mxu0
      %v3643 = vadd.f32 %v3389, %v3642
      %v3644 = vpop.f32.mrb[0].mxu0
      %3645 = vmatprep.mubr.bf16.mxu0 %v3491
      %3646 = vmatmul.mubr.bf16.gmra.mrb[0].mxu0 %v3364
      %v3647 = vpop.f32.mrb[0].mxu0
      %v3648 = vadd.f32 %v3389, %v3647
      %v3649 = vpop.f32.mrb[0].mxu0
      %v3650 = vpop.f32.mrb[0].mxu0
      %v3651 = vadd.f32 %v3389, %v3650
      %v3652 = vpop.f32.mrb[0].mxu0
      %3653 = vdwg.mxu0
      %v3654 = vpack.c.bf16 %v281, %v280
      %v3655 = vpack.c.bf16 %v283, %v282
      %v3656 = vpack.c.bf16 %v285, %v284
      %v3657 = vpack.c.bf16 %v287, %v286
      %v3658 = vpack.c.bf16 %v289, %v288
      %v3659 = vpack.c.bf16 %v291, %v290
      %v3660 = vpack.c.bf16 %v293, %v292
      %v3661 = vpack.c.bf16 %v295, %v294
      %v3662 = vpack.c.bf16 %v297, %v296
      %v3663 = vpack.c.bf16 %v299, %v298
      %v3664 = vpack.c.bf16 %v301, %v300
      %v3665 = vpack.c.bf16 %v303, %v302
      %v3666 = vpack.c.bf16 %v305, %v304
      %v3667 = vpack.c.bf16 %v307, %v306
      %v3668 = vpack.c.bf16 %v309, %v308
      %v3669 = vpack.c.bf16 %v311, %v310
      %v3670 = vld [vmem:[%s5] sm:$0xf]
      %v3671 = vld [vmem:[%s6] sm:$0x1]
      %v3673 = vlaneseq
      %v3674 = vshrl.u32 %v3673, 7
      %v3675 = vsub.s32 0, %v3674
      %v3676 = vrot.slane %v3671, %v3675
      %v3679 = vsel %vm312, %v3654, 0
      %v3682 = vsel %vm312, %v3655, 0
      %v3685 = vsel %vm312, %v3656, 0
      %v3688 = vsel %vm312, %v3657, 0
      %v3691 = vsel %vm312, %v3658, 0
      %v3694 = vsel %vm312, %v3659, 0
      %v3697 = vsel %vm312, %v3660, 0
      %v3700 = vsel %vm312, %v3661, 0
      %v3703 = vsel %vm312, %v3662, 0
      %v3706 = vsel %vm312, %v3663, 0
      %v3709 = vsel %vm312, %v3664, 0
      %v3712 = vsel %vm312, %v3665, 0
      %v3715 = vsel %vm312, %v3666, 0
      %v3718 = vsel %vm312, %v3667, 0
      %v3721 = vsel %vm312, %v3668, 0
      %v3724 = vsel %vm312, %v3669, 0
      %v3727 = vsel %vm1830, %v3670, 0
      %3729 = vmatprep.subr.bf16.mxu0 0
      %3730 = vmatpush1.bf16.msra.mxu0 %v3727
      %3731 = vmatprep.subr.bf16.mxu0 0
      %3732 = vmatpush1.bf16.msra.mxu0 0
      %3733 = vmatprep.subr.bf16.mxu0 0
      %3734 = vmatpush1.bf16.msra.mxu0 0
      %3735 = vmatprep.subr.bf16.mxu0 0
      %3736 = vmatpush1.bf16.msra.mxu0 0
      %3737 = vmatprep.subr.bf16.mxu0 0
      %3738 = vmatpush1.bf16.msra.mxu0 0
      %3739 = vmatprep.subr.bf16.mxu0 0
      %3740 = vmatpush1.bf16.msra.mxu0 0
      %3741 = vmatprep.subr.bf16.mxu0 0
      %3742 = vmatpush1.bf16.msra.mxu0 0
      %3743 = vmatprep.subr.bf16.mxu0 0
      %3744 = vmatpush1.bf16.msra.mxu0 0
      %3745 = vmatprep.subr.bf16.mxu0 0
      %3746 = vmatpush1.bf16.msra.mxu0 0
      %3747 = vmatprep.subr.bf16.mxu0 0
      %3748 = vmatpush1.bf16.msra.mxu0 0
      %3749 = vmatprep.subr.bf16.mxu0 0
      %3750 = vmatpush1.bf16.msra.mxu0 0
      %3751 = vmatprep.subr.bf16.mxu0 0
      %3752 = vmatpush1.bf16.msra.mxu0 0
      %3753 = vmatprep.subr.bf16.mxu0 0
      %3754 = vmatpush1.bf16.msra.mxu0 0
      %3755 = vmatprep.subr.bf16.mxu0 0
      %3756 = vmatpush1.bf16.msra.mxu0 0
      %3757 = vmatprep.subr.bf16.mxu0 0
      %3758 = vmatpush1.bf16.msra.mxu0 0
      %3759 = vmatprep.subr.bf16.mxu0 0
      %3760 = vmatpush1.bf16.msra.mxu0 0
      %3761 = vmatprep.mubr.bf16.mxu0 0
      %3762 = vmatmul.mubr.bf16.gmra.mrb[0].mxu0 %v3679
      %v3763 = vpop.f32.mrb[0].mxu0
      %v3764 = vadd.f32 %v3676, %v3763
      %v3765 = vpop.f32.mrb[0].mxu0
      %v3766 = vpop.f32.mrb[0].mxu0
      %v3767 = vadd.f32 %v3676, %v3766
      %v3768 = vpop.f32.mrb[0].mxu0
      %3769 = vmatprep.mubr.bf16.mxu0 0
      %3770 = vmatmul.mubr.bf16.gmra.mrb[0].mxu0 %v3682
      %v3771 = vpop.f32.mrb[0].mxu0
      %v3772 = vadd.f32 %v3676, %v3771
      %v3773 = vpop.f32.mrb[0].mxu0
      %v3774 = vpop.f32.mrb[0].mxu0
      %v3775 = vadd.f32 %v3676, %v3774
      %v3776 = vpop.f32.mrb[0].mxu0
      %3777 = vmatprep.mubr.bf16.mxu0 0
      %3778 = vmatmul.mubr.bf16.gmra.mrb[0].mxu0 %v3685
      %v3779 = vpop.f32.mrb[0].mxu0
      %v3780 = vadd.f32 %v3676, %v3779
      %v3781 = vpop.f32.mrb[0].mxu0
      %v3782 = vpop.f32.mrb[0].mxu0
      %v3783 = vadd.f32 %v3676, %v3782
      %v3784 = vpop.f32.mrb[0].mxu0
      %3785 = vmatprep.mubr.bf16.mxu0 0
      %3786 = vmatmul.mubr.bf16.gmra.mrb[0].mxu0 %v3688
      %v3787 = vpop.f32.mrb[0].mxu0
      %v3788 = vadd.f32 %v3676, %v3787
      %v3789 = vpop.f32.mrb[0].mxu0
      %v3790 = vpop.f32.mrb[0].mxu0
      %v3791 = vadd.f32 %v3676, %v3790
      %v3792 = vpop.f32.mrb[0].mxu0
      %3793 = vmatprep.mubr.bf16.mxu0 0
      %3794 = vmatmul.mubr.bf16.gmra.mrb[0].mxu0 %v3691
      %v3795 = vpop.f32.mrb[0].mxu0
      %v3796 = vadd.f32 %v3676, %v3795
      %v3797 = vpop.f32.mrb[0].mxu0
      %v3798 = vpop.f32.mrb[0].mxu0
      %v3799 = vadd.f32 %v3676, %v3798
      %v3800 = vpop.f32.mrb[0].mxu0
      %3801 = vmatprep.mubr.bf16.mxu0 0
      %3802 = vmatmul.mubr.bf16.gmra.mrb[0].mxu0 %v3694
      %v3803 = vpop.f32.mrb[0].mxu0
      %v3804 = vadd.f32 %v3676, %v3803
      %v3805 = vpop.f32.mrb[0].mxu0
      %v3806 = vpop.f32.mrb[0].mxu0
      %v3807 = vadd.f32 %v3676, %v3806
      %v3808 = vpop.f32.mrb[0].mxu0
      %3809 = vmatprep.mubr.bf16.mxu0 0
      %3810 = vmatmul.mubr.bf16.gmra.mrb[0].mxu0 %v3697
      %v3811 = vpop.f32.mrb[0].mxu0
      %v3812 = vadd.f32 %v3676, %v3811
      %v3813 = vpop.f32.mrb[0].mxu0
      %v3814 = vpop.f32.mrb[0].mxu0
      %v3815 = vadd.f32 %v3676, %v3814
      %v3816 = vpop.f32.mrb[0].mxu0
      %3817 = vmatprep.mubr.bf16.mxu0 0
      %3818 = vmatmul.mubr.bf16.gmra.mrb[0].mxu0 %v3700
      %v3819 = vpop.f32.mrb[0].mxu0
      %v3820 = vadd.f32 %v3676, %v3819
      %v3821 = vpop.f32.mrb[0].mxu0
      %v3822 = vpop.f32.mrb[0].mxu0
      %v3823 = vadd.f32 %v3676, %v3822
      %v3824 = vpop.f32.mrb[0].mxu0
      %3825 = vmatprep.mubr.bf16.mxu0 0
      %3826 = vmatmul.mubr.bf16.gmra.mrb[0].mxu0 %v3703
      %v3827 = vpop.f32.mrb[0].mxu0
      %v3828 = vadd.f32 %v3676, %v3827
      %v3829 = vpop.f32.mrb[0].mxu0
      %v3830 = vpop.f32.mrb[0].mxu0
      %v3831 = vadd.f32 %v3676, %v3830
      %v3832 = vpop.f32.mrb[0].mxu0
      %3833 = vmatprep.mubr.bf16.mxu0 0
      %3834 = vmatmul.mubr.bf16.gmra.mrb[0].mxu0 %v3706
      %v3835 = vpop.f32.mrb[0].mxu0
      %v3836 = vadd.f32 %v3676, %v3835
      %v3837 = vpop.f32.mrb[0].mxu0
      %v3838 = vpop.f32.mrb[0].mxu0
      %v3839 = vadd.f32 %v3676, %v3838
      %v3840 = vpop.f32.mrb[0].mxu0
      %3841 = vmatprep.mubr.bf16.mxu0 0
      %3842 = vmatmul.mubr.bf16.gmra.mrb[0].mxu0 %v3709
      %v3843 = vpop.f32.mrb[0].mxu0
      %v3844 = vadd.f32 %v3676, %v3843
      %v3845 = vpop.f32.mrb[0].mxu0
      %v3846 = vpop.f32.mrb[0].mxu0
      %v3847 = vadd.f32 %v3676, %v3846
      %v3848 = vpop.f32.mrb[0].mxu0
      %3849 = vmatprep.mubr.bf16.mxu0 0
      %3850 = vmatmul.mubr.bf16.gmra.mrb[0].mxu0 %v3712
      %v3851 = vpop.f32.mrb[0].mxu0
      %v3852 = vadd.f32 %v3676, %v3851
      %v3853 = vpop.f32.mrb[0].mxu0
      %v3854 = vpop.f32.mrb[0].mxu0
      %v3855 = vadd.f32 %v3676, %v3854
      %v3856 = vpop.f32.mrb[0].mxu0
      %3857 = vmatprep.mubr.bf16.mxu0 0
      %3858 = vmatmul.mubr.bf16.gmra.mrb[0].mxu0 %v3715
      %v3859 = vpop.f32.mrb[0].mxu0
      %v3860 = vadd.f32 %v3676, %v3859
      %v3861 = vpop.f32.mrb[0].mxu0
      %v3862 = vpop.f32.mrb[0].mxu0
      %v3863 = vadd.f32 %v3676, %v3862
      %v3864 = vpop.f32.mrb[0].mxu0
      %3865 = vmatprep.mubr.bf16.mxu0 0
      %3866 = vmatmul.mubr.bf16.gmra.mrb[0].mxu0 %v3718
      %v3867 = vpop.f32.mrb[0].mxu0
      %v3868 = vadd.f32 %v3676, %v3867
      %v3869 = vpop.f32.mrb[0].mxu0
      %v3870 = vpop.f32.mrb[0].mxu0
      %v3871 = vadd.f32 %v3676, %v3870
      %v3872 = vpop.f32.mrb[0].mxu0
      %3873 = vmatprep.mubr.bf16.mxu0 0
      %3874 = vmatmul.mubr.bf16.gmra.mrb[0].mxu0 %v3721
      %v3875 = vpop.f32.mrb[0].mxu0
      %v3876 = vadd.f32 %v3676, %v3875
      %v3877 = vpop.f32.mrb[0].mxu0
      %v3878 = vpop.f32.mrb[0].mxu0
      %v3879 = vadd.f32 %v3676, %v3878
      %v3880 = vpop.f32.mrb[0].mxu0
      %3881 = vmatprep.mubr.bf16.mxu0 0
      %3882 = vmatmul.mubr.bf16.gmra.mrb[0].mxu0 %v3724
      %v3883 = vpop.f32.mrb[0].mxu0
      %v3884 = vadd.f32 %v3676, %v3883
      %v3885 = vpop.f32.mrb[0].mxu0
      %v3886 = vpop.f32.mrb[0].mxu0
      %v3887 = vadd.f32 %v3676, %v3886
      %v3888 = vpop.f32.mrb[0].mxu0
      %3889 = vdwg.mxu0
      %v3890 = vadd.f32 %v3528, %v3764
      %v3891 = vadd.f32 %v3531, %v3767
      %v3892 = vadd.f32 %v3536, %v3772
      %v3893 = vadd.f32 %v3539, %v3775
      %v3894 = vadd.f32 %v3544, %v3780
      %v3895 = vadd.f32 %v3547, %v3783
      %v3896 = vadd.f32 %v3552, %v3788
      %v3897 = vadd.f32 %v3555, %v3791
      %v3898 = vadd.f32 %v3560, %v3796
      %v3899 = vadd.f32 %v3563, %v3799
      %v3900 = vadd.f32 %v3568, %v3804
      %v3901 = vadd.f32 %v3571, %v3807
      %v3902 = vadd.f32 %v3576, %v3812
      %v3903 = vadd.f32 %v3579, %v3815
      %v3904 = vadd.f32 %v3584, %v3820
      %v3905 = vadd.f32 %v3587, %v3823
      %v3906 = vadd.f32 %v3592, %v3828
      %v3907 = vadd.f32 %v3595, %v3831
      %v3908 = vadd.f32 %v3600, %v3836
      %v3909 = vadd.f32 %v3603, %v3839
      %v3910 = vadd.f32 %v3608, %v3844
      %v3911 = vadd.f32 %v3611, %v3847
      %v3912 = vadd.f32 %v3616, %v3852
      %v3913 = vadd.f32 %v3619, %v3855
      %v3914 = vadd.f32 %v3624, %v3860
      %v3915 = vadd.f32 %v3627, %v3863
      %v3916 = vadd.f32 %v3632, %v3868
      %v3917 = vadd.f32 %v3635, %v3871
      %v3918 = vadd.f32 %v3640, %v3876
      %v3919 = vadd.f32 %v3643, %v3879
      %v3920 = vadd.f32 %v3648, %v3884
      %v3921 = vadd.f32 %v3651, %v3887
      %3922 = vst.msk [vmem:[%s278] sm:$0xff] %vm1491, %v3890
      %3923 = vst.msk [vmem:[%s278 + $0x8] sm:$0xff] %vm1491, %v3891
      %3924 = vst.msk [vmem:[%s278 + $0x10] sm:$0xff] %vm1491, %v3892
      %3925 = vst.msk [vmem:[%s278 + $0x18] sm:$0xff] %vm1491, %v3893
      %3926 = vst.msk [vmem:[%s278 + $0x20] sm:$0xff] %vm1491, %v3894
      %3927 = vst.msk [vmem:[%s278 + $0x28] sm:$0xff] %vm1491, %v3895
      %3928 = vst.msk [vmem:[%s278 + $0x30] sm:$0xff] %vm1491, %v3896
      %3929 = vst.msk [vmem:[%s278 + $0x38] sm:$0xff] %vm1491, %v3897
      %3930 = vst.msk [vmem:[%s278 + $0x40] sm:$0xff] %vm1491, %v3898
      %3931 = vst.msk [vmem:[%s278 + $0x48] sm:$0xff] %vm1491, %v3899
      %3932 = vst.msk [vmem:[%s278 + $0x50] sm:$0xff] %vm1491, %v3900
      %3933 = vst.msk [vmem:[%s278 + $0x58] sm:$0xff] %vm1491, %v3901
      %3934 = vst.msk [vmem:[%s278 + $0x60] sm:$0xff] %vm1491, %v3902
      %3935 = vst.msk [vmem:[%s278 + $0x68] sm:$0xff] %vm1491, %v3903
      %3936 = vst.msk [vmem:[%s278 + $0x70] sm:$0xff] %vm1491, %v3904
      %3937 = vst.msk [vmem:[%s278 + $0x78] sm:$0xff] %vm1491, %v3905
      %3938 = vst.msk [vmem:[%s278 + $0x80] sm:$0xff] %vm1491, %v3906
      %3939 = vst.msk [vmem:[%s278 + $0x88] sm:$0xff] %vm1491, %v3907
      %3940 = vst.msk [vmem:[%s278 + $0x90] sm:$0xff] %vm1491, %v3908
      %3941 = vst.msk [vmem:[%s278 + $0x98] sm:$0xff] %vm1491, %v3909
      %3942 = vst.msk [vmem:[%s278 + $0xa0] sm:$0xff] %vm1491, %v3910
      %3943 = vst.msk [vmem:[%s278 + $0xa8] sm:$0xff] %vm1491, %v3911
      %3944 = vst.msk [vmem:[%s278 + $0xb0] sm:$0xff] %vm1491, %v3912
      %3945 = vst.msk [vmem:[%s278 + $0xb8] sm:$0xff] %vm1491, %v3913
      %3946 = vst.msk [vmem:[%s278 + $0xc0] sm:$0xff] %vm1491, %v3914
      %3947 = vst.msk [vmem:[%s278 + $0xc8] sm:$0xff] %vm1491, %v3915
      %3948 = vst.msk [vmem:[%s278 + $0xd0] sm:$0xff] %vm1491, %v3916
      %3949 = vst.msk [vmem:[%s278 + $0xd8] sm:$0xff] %vm1491, %v3917
      %3950 = vst.msk [vmem:[%s278 + $0xe0] sm:$0xff] %vm1491, %v3918
      %3951 = vst.msk [vmem:[%s278 + $0xe8] sm:$0xff] %vm1491, %v3919
      %3952 = vst.msk [vmem:[%s278 + $0xf0] sm:$0xff] %vm1491, %v3920
      %3953 = vst.msk [vmem:[%s278 + $0xf8] sm:$0xff] %vm1491, %v3921
      %p3954 = scmp.lt.s32.totalorder %s18, 1
      %s3955 = scalar_select %p3954, %s18, 1
      %s3956 = smul.addr %s3955, 32
      %s3957 = smul.addr %s3956, 8
      %s3958 = scalar_lea.vmem %s7, %s3957
      // Predicated region
      $region49: #{conv_block_forward.1} parent=47 // pred_check
        %p3959 = pneg %p188
      $region50: #{conv_block_forward.1} parent=47 // pred_check_branch
        %3961 = sbr.rel (%p3959) target = $region52
      $region51: #{conv_block_forward.1} parent=47 // pred_region
        _
      $region52: #{conv_block_forward.1} parent=47 // pred_fallthru
        _
    $region48: #{conv_block_forward.1} parent=5 // pred_fallthru
      _
    %p3962 = scmp.le.s32.totalorder 2, %s13
    // Predicated region
    $region53: #{conv_block_forward.1} parent=5 // pred_check
      %p3963 = pneg %p3962
    $region54: #{conv_block_forward.1} parent=5 // pred_check_branch
      %3965 = sbr.rel (%p3963) target = $region56
    $region55: #{conv_block_forward.1} parent=5 // pred_region
      %s3966 = ssub.s32 %s13, 2
      // Predicated region
      $region57: #{conv_block_forward.1} parent=55 // pred_check
        %p3967 = pneg %p194
      $region58: #{conv_block_forward.1} parent=55 // pred_check_branch
        %3969 = sbr.rel (%p3967) target = $region60
      $region59: #{conv_block_forward.1} parent=55 // pred_region
        %p3970 = scmp.lt.s32.totalorder %s19, 1
        %s3971 = scalar_select %p3970, %s19, 1
        %s3972 = smul.addr %s3971, 32
        %s3973 = smul.addr %s3972, 8
        %s3974 = scalar_lea.vmem %s7, %s3973
      $region60: #{conv_block_forward.1} parent=55 // pred_fallthru
        _
    $region56: #{conv_block_forward.1} parent=5 // pred_fallthru
      _
  $region6: #{conv_block_forward.1} parent=0 // loop_footer
    %s17 = sadd.s32 1, %s13
  $region7: #{conv_block_forward.1} parent=0 // loop_footer_branch
    %12 = sbr.rel target = $region3
  $region8: #{conv_block_forward.1} parent=0 // loop_exit
    _

</llo_original>
